<compile_context>
chip_gen: v5e
topology: v5e:2x2
jax: 0.10.0
libtpu: 0.0.40
codegen_flags: <defaults>
</compile_context>

<pallas_src>
import numpy as np
import jax
import jax.numpy as jnp
from jax.experimental import pallas as pl
from jax.experimental.pallas import tpu as pltpu

NEG_SLOPE = 0.01  # nn.LeakyReLU() default negative_slope


# ------------------------------ fused kernel -------------------------------

def _nohit_kernel(z1f_ref, z2f_ref, z3s_ref, w1_ref, b1_ref, w2_ref, b2_ref,
                  o_ref, xpad_ref):
    # xpad_ref : (S2+2, S1+2, C) f32  — single padded HWC scratch (H=S2, W=S1),
    #            reused by both conv stages (border stays zero).
    Hp, Wp, C = xpad_ref.shape
    H, W = Hp - 2, Wp - 2            # H == S2, W == S1
    S1 = W
    r2 = z2f_ref.shape[0]
    r3 = z2f_ref.shape[1] // H       # z2f is (r2, S2*r3)
    r1 = z3s_ref.shape[0] // r3      # z3s is (r1*r3, C)

    # ---- zero ONLY the pad border (interior is fully overwritten below) ------
    zrow = jnp.zeros((1, Wp, C), jnp.float32)
    zcol = jnp.zeros((H, 1, C), jnp.float32)
    xpad_ref[0:1, :, :] = zrow
    xpad_ref[Hp - 1:Hp, :, :] = zrow
    xpad_ref[1:1 + H, 0:1, :] = zcol
    xpad_ref[1:1 + H, Wp - 1:Wp, :] = zcol

    # ---- tensor-ring product --------------------------------------------------
    # X[i,j,k] = sum_{a,b,c} Z1[a,i,b] Z2[b,j,c] Z3[c,k,a]
    # 1st contraction (over b), one matmul:
    #   G[(a,i), (j,c)] = sum_b Z1[a,i,b] Z2[b,j,c]
    G = jnp.dot(z1f_ref[...], z2f_ref[...],
                preferred_element_type=jnp.float32)          # (r1*S1, S2*r3)
    # 2nd contraction (over a,c), one matmul whose rows are in (j, i) order:
    #   lhs[(j*S1+i), (a*r3+c)] = G[(a*S1+i), (j*r3+c)]
    lhs = jnp.concatenate(
        [jnp.concatenate(
            [G[a * S1:(a + 1) * S1, j * r3:(j + 1) * r3] for a in range(r1)],
            axis=1)
         for j in range(H)], axis=0)                         # (H*W, r1*r3)
    x_hwc = jnp.dot(lhs, z3s_ref[...],
                    preferred_element_type=jnp.float32)      # (H*W, C)
    # image[h=j, w=i, c=k] = X[i,j,k]  — one whole-interior store
    xpad_ref[1:1 + H, 1:1 + W, :] = x_hwc.reshape(H, W, C)

    # ---- 3x3 conv (stride 1, pad 1) + LeakyReLU, no im2col slab ---------------
    # 9 accumulating (H*W, C)@(C, C) bf16 matmuls read straight from the
    # padded scratch; f32 accumulation on the VPU.
    def conv3x3_lrelu(w_ref, b_ref):
        acc = jnp.zeros((H * W, C), jnp.float32)
        for dh in range(3):
            for dw in range(3):
                t = dh * 3 + dw
                win = xpad_ref[dh:dh + H, dw:dw + W, :].reshape(H * W, C)
                acc = acc + jnp.dot(win.astype(jnp.bfloat16),
                                    w_ref[t * C:(t + 1) * C, :],
                                    preferred_element_type=jnp.float32)
        acc = acc + b_ref[...]                               # (1, C) bias
        return jnp.where(acc > 0, acc, NEG_SLOPE * acc)      # LeakyReLU f32

    h1 = conv3x3_lrelu(w1_ref, b1_ref)                       # (H*W, C)
    # re-pad conv1 output in place with ONE store (border is already zero)
    xpad_ref[1:1 + H, 1:1 + W, :] = h1.reshape(H, W, C)
    h2 = conv3x3_lrelu(w2_ref, b2_ref)                       # (H*W, C)

    # final output as one whole-ref store; wrapper reshapes to (S2, S1, S3)
    o_ref[...] = h2


# ------------------------------ forward wrapper ----------------------------

@jax.jit
def nohit_forward(Z1, Z2, Z3, w1_hwio, b1, w2_hwio, b2):
    """NoHiT.forward() -> array of shape (S2, S1, S3) (matches torch output)."""
    r1, S1, r2 = Z1.shape
    r2b, S2, r3 = Z2.shape
    r3b, S3, r1b = Z3.shape
    assert (r2b, r3b, r1b) == (r2, r3, r1)

    # cheap parameter-side layout plumbing only (fused by XLA)
    z1f = Z1.reshape(r1 * S1, r2)                            # [(a,i), b]
    z2f = Z2.reshape(r2, S2 * r3)                            # [b, (j,c)]
    z3s = jnp.transpose(Z3, (2, 0, 1)).reshape(r1 * r3, S3)  # [(a,c), k]
    w1m = w1_hwio.reshape(9 * S3, S3).astype(jnp.bfloat16)   # [(dh,dw,cin), cout]
    w2m = w2_hwio.reshape(9 * S3, S3).astype(jnp.bfloat16)
    b1m = b1.reshape(1, S3).astype(jnp.float32)
    b2m = b2.reshape(1, S3).astype(jnp.float32)

    flops = (2 * (r1 * S1) * r2 * (S2 * r3)                  # TR contraction over b
             + 2 * (S2 * S1) * (r1 * r3) * S3                # TR contraction over (a,c)
             + 2 * 2 * 9 * (S2 * S1) * S3 * S3)              # two 3x3 convs
    bytes_accessed = (4 * (z1f.size + z2f.size + z3s.size + b1m.size + b2m.size
                           + S2 * S1 * S3)
                      + 2 * (w1m.size + w2m.size))

    out_flat = pl.pallas_call(
        _nohit_kernel,
        out_shape=jax.ShapeDtypeStruct((S2 * S1, S3), jnp.float32),
        grid=(1,),
        in_specs=[
            pl.BlockSpec((r1 * S1, r2), lambda i: (0, 0)),   # Z1 flat
            pl.BlockSpec((r2, S2 * r3), lambda i: (0, 0)),   # Z2 flat
            pl.BlockSpec((r1 * r3, S3), lambda i: (0, 0)),   # Z3 regrouped
            pl.BlockSpec((9 * S3, S3), lambda i: (0, 0)),    # w1 (bf16)
            pl.BlockSpec((1, S3), lambda i: (0, 0)),         # b1
            pl.BlockSpec((9 * S3, S3), lambda i: (0, 0)),    # w2 (bf16)
            pl.BlockSpec((1, S3), lambda i: (0, 0)),         # b2
        ],
        out_specs=pl.BlockSpec((S2 * S1, S3), lambda i: (0, 0)),
        scratch_shapes=[
            pltpu.VMEM((S2 + 2, S1 + 2, S3), jnp.float32),   # single padded image
        ],
        compiler_params=pltpu.CompilerParams(
            dimension_semantics=("arbitrary",)),
        cost_estimate=pl.CostEstimate(flops=flops, transcendentals=0,
                                      bytes_accessed=bytes_accessed),
    )(z1f, z2f, z3s, w1m, b1m, w2m, b2m)

    return out_flat.reshape(S2, S1, S3)                      # free row-major reshape


# --------------------------------- main -------------------------------------

if __name__ == "__main__":
    S1, S2, S3 = 16, 8, 32      # W, H, C of the conv stage
    r1, r2, r3 = 3, 4, 5

    key = jax.random.PRNGKey(0)
    k1, k2, k3, k4, k5, k6, k7 = jax.random.split(key, 7)

    def xavier_normal(k, shape):
        # torch.nn.init.xavier_normal_ semantics for 3-D tensors
        recep = int(np.prod(shape[2:])) if len(shape) > 2 else 1
        fan_in = shape[1] * recep
        fan_out = shape[0] * recep
        std = (2.0 / (fan_in + fan_out)) ** 0.5
        return std * jax.random.normal(k, shape, jnp.float32)

    Z1 = xavier_normal(k1, (r1, S1, r2))
    Z2 = xavier_normal(k2, (r2, S2, r3))
    Z3 = xavier_normal(k3, (r3, S3, r1))

    # Conv2d(S3, S3, 3) default-ish init (uniform +-1/sqrt(fan_in)), HWIO layout
    fan_in = S3 * 9
    bound = 1.0 / (fan_in ** 0.5)
    w1 = jax.random.uniform(k4, (3, 3, S3, S3), jnp.float32, -bound, bound)
    b1 = jax.random.uniform(k5, (S3,), jnp.float32, -bound, bound)
    w2 = jax.random.uniform(k6, (3, 3, S3, S3), jnp.float32, -bound, bound)
    b2 = jax.random.uniform(k7, (S3,), jnp.float32, -bound, bound)

    out = jax.block_until_ready(nohit_forward(Z1, Z2, Z3, w1, b1, w2, b2))
    assert out.shape == (S2, S1, S3), out.shape

    # ---- pure-JAX reference check ----
    X_ref = jnp.einsum('aib,bjc,cka->ijk', Z1, Z2, Z3,
                       precision=jax.lax.Precision.HIGHEST)
    x_nhwc = jnp.transpose(X_ref, (1, 0, 2))[None]           # (1, S2, S1, S3)

    def ref_block(x, w, b):
        y = jax.lax.conv_general_dilated(
            x, w, (1, 1), 'SAME',
            dimension_numbers=('NHWC', 'HWIO', 'NHWC'),
            precision=jax.lax.Precision.HIGHEST)
        y = y + b.reshape(1, 1, 1, -1)
        return jnp.where(y > 0, y, NEG_SLOPE * y)

    ref = ref_block(ref_block(x_nhwc, w1, b1), w2, b2)[0]    # (S2, S1, S3)

    # bf16 MXU inputs (f32 accumulation) => bf16-class tolerance
    if not np.allclose(np.asarray(out), np.asarray(ref), atol=5e-3, rtol=2e-2):
        raise AssertionError("Pallas NoHiT output does not match JAX reference")

    print("KERNEL_OK")
</pallas_src>

<mosaic_0001>
module attributes {stable_mosaic.version = 11 : i64} {
  func.func @_nohit_kernel(%arg0: i32, %arg1: memref<48x4xf32, #tpu.memory_space<vmem>>, %arg2: memref<4x40xf32, #tpu.memory_space<vmem>>, %arg3: memref<15x32xf32, #tpu.memory_space<vmem>>, %arg4: memref<288x32xbf16, #tpu.memory_space<vmem>>, %arg5: memref<1x32xf32, #tpu.memory_space<vmem>>, %arg6: memref<288x32xbf16, #tpu.memory_space<vmem>>, %arg7: memref<1x32xf32, #tpu.memory_space<vmem>>, %arg8: memref<128x32xf32, #tpu.memory_space<vmem>>, %arg9: memref<10x18x32xf32, #tpu.memory_space<vmem>>) attributes {dimension_semantics = [#tpu.dimension_semantics<arbitrary>], iteration_bounds = array<i64: 1>, scalar_prefetch = 0 : i64, scratch_operands = 1 : i64, tpu.core_type = #tpu.core_type<tc>, window_params = [{pipeline_mode = #tpu.pipeline_mode<synchronous>, transform_indices = @transform_0, window_bounds = array<i64: 48, 4>}, {pipeline_mode = #tpu.pipeline_mode<synchronous>, transform_indices = @transform_1, window_bounds = array<i64: 4, 40>}, {pipeline_mode = #tpu.pipeline_mode<synchronous>, transform_indices = @transform_2, window_bounds = array<i64: 15, 32>}, {pipeline_mode = #tpu.pipeline_mode<synchronous>, transform_indices = @transform_3, window_bounds = array<i64: 288, 32>}, {pipeline_mode = #tpu.pipeline_mode<synchronous>, transform_indices = @transform_4, window_bounds = array<i64: 1, 32>}, {pipeline_mode = #tpu.pipeline_mode<synchronous>, transform_indices = @transform_5, window_bounds = array<i64: 288, 32>}, {pipeline_mode = #tpu.pipeline_mode<synchronous>, transform_indices = @transform_6, window_bounds = array<i64: 1, 32>}, {pipeline_mode = #tpu.pipeline_mode<synchronous>, transform_indices = @transform_7, window_bounds = array<i64: 128, 32>}]} {
    %cst = arith.constant 0.000000e+00 : f32
    %0 = vector.broadcast %cst : f32 to vector<1x18x32xf32>
    %cst_0 = arith.constant 0.000000e+00 : f32
    %1 = vector.broadcast %cst_0 : f32 to vector<8x1x32xf32>
    %c0 = arith.constant 0 : index
    %c0_1 = arith.constant 0 : index
    %c0_2 = arith.constant 0 : index
    %2 = vector.load %arg9[%c0, %c0_1, %c0_2] : memref<10x18x32xf32, #tpu.memory_space<vmem>>, vector<1x18x32xf32>
    tpu.vector_store %arg9[%c0, %c0_1, %c0_2], %0 {strides = array<i32>} : memref<10x18x32xf32, #tpu.memory_space<vmem>>, vector<1x18x32xf32>,
    %c9 = arith.constant 9 : index
    %c0_3 = arith.constant 0 : index
    %c0_4 = arith.constant 0 : index
    %3 = vector.load %arg9[%c9, %c0_3, %c0_4] : memref<10x18x32xf32, #tpu.memory_space<vmem>>, vector<1x18x32xf32>
    tpu.vector_store %arg9[%c9, %c0_3, %c0_4], %0 {strides = array<i32>} : memref<10x18x32xf32, #tpu.memory_space<vmem>>, vector<1x18x32xf32>,
    %c1 = arith.constant 1 : index
    %c0_5 = arith.constant 0 : index
    %c0_6 = arith.constant 0 : index
    %4 = vector.load %arg9[%c1, %c0_5, %c0_6] : memref<10x18x32xf32, #tpu.memory_space<vmem>>, vector<8x1x32xf32>
    tpu.vector_store %arg9[%c1, %c0_5, %c0_6], %1 {strides = array<i32>} : memref<10x18x32xf32, #tpu.memory_space<vmem>>, vector<8x1x32xf32>,
    %c1_7 = arith.constant 1 : index
    %c17 = arith.constant 17 : index
    %c0_8 = arith.constant 0 : index
    %5 = vector.load %arg9[%c1_7, %c17, %c0_8] : memref<10x18x32xf32, #tpu.memory_space<vmem>>, vector<8x1x32xf32>
    tpu.vector_store %arg9[%c1_7, %c17, %c0_8], %1 {strides = array<i32>} : memref<10x18x32xf32, #tpu.memory_space<vmem>>, vector<8x1x32xf32>,
    %c0_9 = arith.constant 0 : index
    %c0_10 = arith.constant 0 : index
    %6 = vector.load %arg1[%c0_9, %c0_10] : memref<48x4xf32, #tpu.memory_space<vmem>>, vector<48x4xf32>
    %c0_11 = arith.constant 0 : index
    %c0_12 = arith.constant 0 : index
    %7 = vector.load %arg2[%c0_11, %c0_12] : memref<4x40xf32, #tpu.memory_space<vmem>>, vector<4x40xf32>
    %cst_13 = arith.constant dense<0.000000e+00> : vector<48x40xf32>
    %8 = tpu.matmul %6, %7, %cst_13 {dimension_numbers = #tpu.dot_dimension_numbers<[1], [0], [0], [1], [0, 0, 1, 1], [], []>} : vector<48x4xf32>, vector<4x40xf32>, vector<48x40xf32> -> vector<48x40xf32>
    %9 = vector.extract_strided_slice %8 {offsets = [0, 0], sizes = [16, 5], strides = [1, 1]} : vector<48x40xf32> to vector<16x5xf32>
    %10 = vector.extract_strided_slice %8 {offsets = [16, 0], sizes = [16, 5], strides = [1, 1]} : vector<48x40xf32> to vector<16x5xf32>
    %11 = vector.extract_strided_slice %8 {offsets = [32, 0], sizes = [16, 5], strides = [1, 1]} : vector<48x40xf32> to vector<16x5xf32>
    %12 = tpu.concatenate %9, %10, %11 in 1 : vector<16x5xf32>, vector<16x5xf32>, vector<16x5xf32> -> vector<16x15xf32>
    %13 = vector.extract_strided_slice %8 {offsets = [0, 5], sizes = [16, 5], strides = [1, 1]} : vector<48x40xf32> to vector<16x5xf32>
    %14 = vector.extract_strided_slice %8 {offsets = [16, 5], sizes = [16, 5], strides = [1, 1]} : vector<48x40xf32> to vector<16x5xf32>
    %15 = vector.extract_strided_slice %8 {offsets = [32, 5], sizes = [16, 5], strides = [1, 1]} : vector<48x40xf32> to vector<16x5xf32>
    %16 = tpu.concatenate %13, %14, %15 in 1 : vector<16x5xf32>, vector<16x5xf32>, vector<16x5xf32> -> vector<16x15xf32>
    %17 = vector.extract_strided_slice %8 {offsets = [0, 10], sizes = [16, 5], strides = [1, 1]} : vector<48x40xf32> to vector<16x5xf32>
    %18 = vector.extract_strided_slice %8 {offsets = [16, 10], sizes = [16, 5], strides = [1, 1]} : vector<48x40xf32> to vector<16x5xf32>
    %19 = vector.extract_strided_slice %8 {offsets = [32, 10], sizes = [16, 5], strides = [1, 1]} : vector<48x40xf32> to vector<16x5xf32>
    %20 = tpu.concatenate %17, %18, %19 in 1 : vector<16x5xf32>, vector<16x5xf32>, vector<16x5xf32> -> vector<16x15xf32>
    %21 = vector.extract_strided_slice %8 {offsets = [0, 15], sizes = [16, 5], strides = [1, 1]} : vector<48x40xf32> to vector<16x5xf32>
    %22 = vector.extract_strided_slice %8 {offsets = [16, 15], sizes = [16, 5], strides = [1, 1]} : vector<48x40xf32> to vector<16x5xf32>
    %23 = vector.extract_strided_slice %8 {offsets = [32, 15], sizes = [16, 5], strides = [1, 1]} : vector<48x40xf32> to vector<16x5xf32>
    %24 = tpu.concatenate %21, %22, %23 in 1 : vector<16x5xf32>, vector<16x5xf32>, vector<16x5xf32> -> vector<16x15xf32>
    %25 = vector.extract_strided_slice %8 {offsets = [0, 20], sizes = [16, 5], strides = [1, 1]} : vector<48x40xf32> to vector<16x5xf32>
    %26 = vector.extract_strided_slice %8 {offsets = [16, 20], sizes = [16, 5], strides = [1, 1]} : vector<48x40xf32> to vector<16x5xf32>
    %27 = vector.extract_strided_slice %8 {offsets = [32, 20], sizes = [16, 5], strides = [1, 1]} : vector<48x40xf32> to vector<16x5xf32>
    %28 = tpu.concatenate %25, %26, %27 in 1 : vector<16x5xf32>, vector<16x5xf32>, vector<16x5xf32> -> vector<16x15xf32>
    %29 = vector.extract_strided_slice %8 {offsets = [0, 25], sizes = [16, 5], strides = [1, 1]} : vector<48x40xf32> to vector<16x5xf32>
    %30 = vector.extract_strided_slice %8 {offsets = [16, 25], sizes = [16, 5], strides = [1, 1]} : vector<48x40xf32> to vector<16x5xf32>
    %31 = vector.extract_strided_slice %8 {offsets = [32, 25], sizes = [16, 5], strides = [1, 1]} : vector<48x40xf32> to vector<16x5xf32>
    %32 = tpu.concatenate %29, %30, %31 in 1 : vector<16x5xf32>, vector<16x5xf32>, vector<16x5xf32> -> vector<16x15xf32>
    %33 = vector.extract_strided_slice %8 {offsets = [0, 30], sizes = [16, 5], strides = [1, 1]} : vector<48x40xf32> to vector<16x5xf32>
    %34 = vector.extract_strided_slice %8 {offsets = [16, 30], sizes = [16, 5], strides = [1, 1]} : vector<48x40xf32> to vector<16x5xf32>
    %35 = vector.extract_strided_slice %8 {offsets = [32, 30], sizes = [16, 5], strides = [1, 1]} : vector<48x40xf32> to vector<16x5xf32>
    %36 = tpu.concatenate %33, %34, %35 in 1 : vector<16x5xf32>, vector<16x5xf32>, vector<16x5xf32> -> vector<16x15xf32>
    %37 = vector.extract_strided_slice %8 {offsets = [0, 35], sizes = [16, 5], strides = [1, 1]} : vector<48x40xf32> to vector<16x5xf32>
    %38 = vector.extract_strided_slice %8 {offsets = [16, 35], sizes = [16, 5], strides = [1, 1]} : vector<48x40xf32> to vector<16x5xf32>
    %39 = vector.extract_strided_slice %8 {offsets = [32, 35], sizes = [16, 5], strides = [1, 1]} : vector<48x40xf32> to vector<16x5xf32>
    %40 = tpu.concatenate %37, %38, %39 in 1 : vector<16x5xf32>, vector<16x5xf32>, vector<16x5xf32> -> vector<16x15xf32>
    %41 = tpu.concatenate %12, %16, %20, %24, %28, %32, %36, %40 in 0 : vector<16x15xf32>, vector<16x15xf32>, vector<16x15xf32>, vector<16x15xf32>, vector<16x15xf32>, vector<16x15xf32>, vector<16x15xf32>, vector<16x15xf32> -> vector<128x15xf32>
    %c0_14 = arith.constant 0 : index
    %c0_15 = arith.constant 0 : index
    %42 = vector.load %arg3[%c0_14, %c0_15] : memref<15x32xf32, #tpu.memory_space<vmem>>, vector<15x32xf32>
    %cst_16 = arith.constant dense<0.000000e+00> : vector<128x32xf32>
    %43 = tpu.matmul %41, %42, %cst_16 {dimension_numbers = #tpu.dot_dimension_numbers<[1], [0], [0], [1], [0, 0, 1, 1], [], []>} : vector<128x15xf32>, vector<15x32xf32>, vector<128x32xf32> -> vector<128x32xf32>
    %44 = vector.shape_cast %43 : vector<128x32xf32> to vector<8x16x32xf32>
    %c1_17 = arith.constant 1 : index
    %c1_18 = arith.constant 1 : index
    %c0_19 = arith.constant 0 : index
    %45 = vector.load %arg9[%c1_17, %c1_18, %c0_19] : memref<10x18x32xf32, #tpu.memory_space<vmem>>, vector<8x16x32xf32>
    tpu.vector_store %arg9[%c1_17, %c1_18, %c0_19], %44 {strides = array<i32>} : memref<10x18x32xf32, #tpu.memory_space<vmem>>, vector<8x16x32xf32>,
    %cst_20 = arith.constant 0.000000e+00 : f32
    %46 = vector.broadcast %cst_20 : f32 to vector<128x32xf32>
    %c0_21 = arith.constant 0 : index
    %c0_22 = arith.constant 0 : index
    %c0_23 = arith.constant 0 : index
    %47 = vector.load %arg9[%c0_21, %c0_22, %c0_23] : memref<10x18x32xf32, #tpu.memory_space<vmem>>, vector<8x16x32xf32>
    %48 = vector.shape_cast %47 : vector<8x16x32xf32> to vector<128x32xf32>
    %49 = arith.truncf %48 : vector<128x32xf32> to vector<128x32xbf16>
    %c0_24 = arith.constant 0 : index
    %c0_25 = arith.constant 0 : index
    %50 = vector.load %arg4[%c0_24, %c0_25] : memref<288x32xbf16, #tpu.memory_space<vmem>>, vector<32x32xbf16>
    %cst_26 = arith.constant dense<0.000000e+00> : vector<128x32xf32>
    %51 = tpu.matmul %49, %50, %cst_26 {dimension_numbers = #tpu.dot_dimension_numbers<[1], [0], [0], [1], [0, 0, 1, 1], [], []>} : vector<128x32xbf16>, vector<32x32xbf16>, vector<128x32xf32> -> vector<128x32xf32>
    %52 = arith.addf %46, %51 : vector<128x32xf32>
    %c0_27 = arith.constant 0 : index
    %c1_28 = arith.constant 1 : index
    %c0_29 = arith.constant 0 : index
    %53 = vector.load %arg9[%c0_27, %c1_28, %c0_29] : memref<10x18x32xf32, #tpu.memory_space<vmem>>, vector<8x16x32xf32>
    %54 = vector.shape_cast %53 : vector<8x16x32xf32> to vector<128x32xf32>
    %55 = arith.truncf %54 : vector<128x32xf32> to vector<128x32xbf16>
    %c32 = arith.constant 32 : index
    %c0_30 = arith.constant 0 : index
    %56 = vector.load %arg4[%c32, %c0_30] : memref<288x32xbf16, #tpu.memory_space<vmem>>, vector<32x32xbf16>
    %cst_31 = arith.constant dense<0.000000e+00> : vector<128x32xf32>
    %57 = tpu.matmul %55, %56, %cst_31 {dimension_numbers = #tpu.dot_dimension_numbers<[1], [0], [0], [1], [0, 0, 1, 1], [], []>} : vector<128x32xbf16>, vector<32x32xbf16>, vector<128x32xf32> -> vector<128x32xf32>
    %58 = arith.addf %52, %57 : vector<128x32xf32>
    %c0_32 = arith.constant 0 : index
    %c2 = arith.constant 2 : index
    %c0_33 = arith.constant 0 : index
    %59 = vector.load %arg9[%c0_32, %c2, %c0_33] : memref<10x18x32xf32, #tpu.memory_space<vmem>>, vector<8x16x32xf32>
    %60 = vector.shape_cast %59 : vector<8x16x32xf32> to vector<128x32xf32>
    %61 = arith.truncf %60 : vector<128x32xf32> to vector<128x32xbf16>
    %c64 = arith.constant 64 : index
    %c0_34 = arith.constant 0 : index
    %62 = vector.load %arg4[%c64, %c0_34] : memref<288x32xbf16, #tpu.memory_space<vmem>>, vector<32x32xbf16>
    %cst_35 = arith.constant dense<0.000000e+00> : vector<128x32xf32>
    %63 = tpu.matmul %61, %62, %cst_35 {dimension_numbers = #tpu.dot_dimension_numbers<[1], [0], [0], [1], [0, 0, 1, 1], [], []>} : vector<128x32xbf16>, vector<32x32xbf16>, vector<128x32xf32> -> vector<128x32xf32>
    %64 = arith.addf %58, %63 : vector<128x32xf32>
    %c1_36 = arith.constant 1 : index
    %c0_37 = arith.constant 0 : index
    %c0_38 = arith.constant 0 : index
    %65 = vector.load %arg9[%c1_36, %c0_37, %c0_38] : memref<10x18x32xf32, #tpu.memory_space<vmem>>, vector<8x16x32xf32>
    %66 = vector.shape_cast %65 : vector<8x16x32xf32> to vector<128x32xf32>
    %67 = arith.truncf %66 : vector<128x32xf32> to vector<128x32xbf16>
    %c96 = arith.constant 96 : index
    %c0_39 = arith.constant 0 : index
    %68 = vector.load %arg4[%c96, %c0_39] : memref<288x32xbf16, #tpu.memory_space<vmem>>, vector<32x32xbf16>
    %cst_40 = arith.constant dense<0.000000e+00> : vector<128x32xf32>
    %69 = tpu.matmul %67, %68, %cst_40 {dimension_numbers = #tpu.dot_dimension_numbers<[1], [0], [0], [1], [0, 0, 1, 1], [], []>} : vector<128x32xbf16>, vector<32x32xbf16>, vector<128x32xf32> -> vector<128x32xf32>
    %70 = arith.addf %64, %69 : vector<128x32xf32>
    %c1_41 = arith.constant 1 : index
    %c1_42 = arith.constant 1 : index
    %c0_43 = arith.constant 0 : index
    %71 = vector.load %arg9[%c1_41, %c1_42, %c0_43] : memref<10x18x32xf32, #tpu.memory_space<vmem>>, vector<8x16x32xf32>
    %72 = vector.shape_cast %71 : vector<8x16x32xf32> to vector<128x32xf32>
    %73 = arith.truncf %72 : vector<128x32xf32> to vector<128x32xbf16>
    %c128 = arith.constant 128 : index
    %c0_44 = arith.constant 0 : index
    %74 = vector.load %arg4[%c128, %c0_44] : memref<288x32xbf16, #tpu.memory_space<vmem>>, vector<32x32xbf16>
    %cst_45 = arith.constant dense<0.000000e+00> : vector<128x32xf32>
    %75 = tpu.matmul %73, %74, %cst_45 {dimension_numbers = #tpu.dot_dimension_numbers<[1], [0], [0], [1], [0, 0, 1, 1], [], []>} : vector<128x32xbf16>, vector<32x32xbf16>, vector<128x32xf32> -> vector<128x32xf32>
    %76 = arith.addf %70, %75 : vector<128x32xf32>
    %c1_46 = arith.constant 1 : index
    %c2_47 = arith.constant 2 : index
    %c0_48 = arith.constant 0 : index
    %77 = vector.load %arg9[%c1_46, %c2_47, %c0_48] : memref<10x18x32xf32, #tpu.memory_space<vmem>>, vector<8x16x32xf32>
    %78 = vector.shape_cast %77 : vector<8x16x32xf32> to vector<128x32xf32>
    %79 = arith.truncf %78 : vector<128x32xf32> to vector<128x32xbf16>
    %c160 = arith.constant 160 : index
    %c0_49 = arith.constant 0 : index
    %80 = vector.load %arg4[%c160, %c0_49] : memref<288x32xbf16, #tpu.memory_space<vmem>>, vector<32x32xbf16>
    %cst_50 = arith.constant dense<0.000000e+00> : vector<128x32xf32>
    %81 = tpu.matmul %79, %80, %cst_50 {dimension_numbers = #tpu.dot_dimension_numbers<[1], [0], [0], [1], [0, 0, 1, 1], [], []>} : vector<128x32xbf16>, vector<32x32xbf16>, vector<128x32xf32> -> vector<128x32xf32>
    %82 = arith.addf %76, %81 : vector<128x32xf32>
    %c2_51 = arith.constant 2 : index
    %c0_52 = arith.constant 0 : index
    %c0_53 = arith.constant 0 : index
    %83 = vector.load %arg9[%c2_51, %c0_52, %c0_53] : memref<10x18x32xf32, #tpu.memory_space<vmem>>, vector<8x16x32xf32>
    %84 = vector.shape_cast %83 : vector<8x16x32xf32> to vector<128x32xf32>
    %85 = arith.truncf %84 : vector<128x32xf32> to vector<128x32xbf16>
    %c192 = arith.constant 192 : index
    %c0_54 = arith.constant 0 : index
    %86 = vector.load %arg4[%c192, %c0_54] : memref<288x32xbf16, #tpu.memory_space<vmem>>, vector<32x32xbf16>
    %cst_55 = arith.constant dense<0.000000e+00> : vector<128x32xf32>
    %87 = tpu.matmul %85, %86, %cst_55 {dimension_numbers = #tpu.dot_dimension_numbers<[1], [0], [0], [1], [0, 0, 1, 1], [], []>} : vector<128x32xbf16>, vector<32x32xbf16>, vector<128x32xf32> -> vector<128x32xf32>
    %88 = arith.addf %82, %87 : vector<128x32xf32>
    %c2_56 = arith.constant 2 : index
    %c1_57 = arith.constant 1 : index
    %c0_58 = arith.constant 0 : index
    %89 = vector.load %arg9[%c2_56, %c1_57, %c0_58] : memref<10x18x32xf32, #tpu.memory_space<vmem>>, vector<8x16x32xf32>
    %90 = vector.shape_cast %89 : vector<8x16x32xf32> to vector<128x32xf32>
    %91 = arith.truncf %90 : vector<128x32xf32> to vector<128x32xbf16>
    %c224 = arith.constant 224 : index
    %c0_59 = arith.constant 0 : index
    %92 = vector.load %arg4[%c224, %c0_59] : memref<288x32xbf16, #tpu.memory_space<vmem>>, vector<32x32xbf16>
    %cst_60 = arith.constant dense<0.000000e+00> : vector<128x32xf32>
    %93 = tpu.matmul %91, %92, %cst_60 {dimension_numbers = #tpu.dot_dimension_numbers<[1], [0], [0], [1], [0, 0, 1, 1], [], []>} : vector<128x32xbf16>, vector<32x32xbf16>, vector<128x32xf32> -> vector<128x32xf32>
    %94 = arith.addf %88, %93 : vector<128x32xf32>
    %c2_61 = arith.constant 2 : index
    %c2_62 = arith.constant 2 : index
    %c0_63 = arith.constant 0 : index
    %95 = vector.load %arg9[%c2_61, %c2_62, %c0_63] : memref<10x18x32xf32, #tpu.memory_space<vmem>>, vector<8x16x32xf32>
    %96 = vector.shape_cast %95 : vector<8x16x32xf32> to vector<128x32xf32>
    %97 = arith.truncf %96 : vector<128x32xf32> to vector<128x32xbf16>
    %c256 = arith.constant 256 : index
    %c0_64 = arith.constant 0 : index
    %98 = vector.load %arg4[%c256, %c0_64] : memref<288x32xbf16, #tpu.memory_space<vmem>>, vector<32x32xbf16>
    %cst_65 = arith.constant dense<0.000000e+00> : vector<128x32xf32>
    %99 = tpu.matmul %97, %98, %cst_65 {dimension_numbers = #tpu.dot_dimension_numbers<[1], [0], [0], [1], [0, 0, 1, 1], [], []>} : vector<128x32xbf16>, vector<32x32xbf16>, vector<128x32xf32> -> vector<128x32xf32>
    %100 = arith.addf %94, %99 : vector<128x32xf32>
    %c0_66 = arith.constant 0 : index
    %c0_67 = arith.constant 0 : index
    %101 = vector.load %arg5[%c0_66, %c0_67] : memref<1x32xf32, #tpu.memory_space<vmem>>, vector<1x32xf32>
    %102 = vector.broadcast %101 : vector<1x32xf32> to vector<128x32xf32>
    %103 = arith.addf %100, %102 : vector<128x32xf32>
    %cst_68 = arith.constant 0.000000e+00 : f32
    %104 = vector.broadcast %cst_68 : f32 to vector<128x32xf32>
    %105 = arith.cmpf ogt, %103, %104 : vector<128x32xf32>
    %cst_69 = arith.constant 0.00999999977 : f32
    %106 = vector.broadcast %cst_69 : f32 to vector<128x32xf32>
    %107 = arith.mulf %106, %103 : vector<128x32xf32>
    %108 = arith.select %105, %103, %107 : vector<128x32xi1>, vector<128x32xf32>
    %109 = vector.shape_cast %108 : vector<128x32xf32> to vector<8x16x32xf32>
    %c1_70 = arith.constant 1 : index
    %c1_71 = arith.constant 1 : index
    %c0_72 = arith.constant 0 : index
    %110 = vector.load %arg9[%c1_70, %c1_71, %c0_72] : memref<10x18x32xf32, #tpu.memory_space<vmem>>, vector<8x16x32xf32>
    tpu.vector_store %arg9[%c1_70, %c1_71, %c0_72], %109 {strides = array<i32>} : memref<10x18x32xf32, #tpu.memory_space<vmem>>, vector<8x16x32xf32>,
    %cst_73 = arith.constant 0.000000e+00 : f32
    %111 = vector.broadcast %cst_73 : f32 to vector<128x32xf32>
    %c0_74 = arith.constant 0 : index
    %c0_75 = arith.constant 0 : index
    %c0_76 = arith.constant 0 : index
    %112 = vector.load %arg9[%c0_74, %c0_75, %c0_76] : memref<10x18x32xf32, #tpu.memory_space<vmem>>, vector<8x16x32xf32>
    %113 = vector.shape_cast %112 : vector<8x16x32xf32> to vector<128x32xf32>
    %114 = arith.truncf %113 : vector<128x32xf32> to vector<128x32xbf16>
    %c0_77 = arith.constant 0 : index
    %c0_78 = arith.constant 0 : index
    %115 = vector.load %arg6[%c0_77, %c0_78] : memref<288x32xbf16, #tpu.memory_space<vmem>>, vector<32x32xbf16>
    %cst_79 = arith.constant dense<0.000000e+00> : vector<128x32xf32>
    %116 = tpu.matmul %114, %115, %cst_79 {dimension_numbers = #tpu.dot_dimension_numbers<[1], [0], [0], [1], [0, 0, 1, 1], [], []>} : vector<128x32xbf16>, vector<32x32xbf16>, vector<128x32xf32> -> vector<128x32xf32>
    %117 = arith.addf %111, %116 : vector<128x32xf32>
    %c0_80 = arith.constant 0 : index
    %c1_81 = arith.constant 1 : index
    %c0_82 = arith.constant 0 : index
    %118 = vector.load %arg9[%c0_80, %c1_81, %c0_82] : memref<10x18x32xf32, #tpu.memory_space<vmem>>, vector<8x16x32xf32>
    %119 = vector.shape_cast %118 : vector<8x16x32xf32> to vector<128x32xf32>
    %120 = arith.truncf %119 : vector<128x32xf32> to vector<128x32xbf16>
    %c32_83 = arith.constant 32 : index
    %c0_84 = arith.constant 0 : index
    %121 = vector.load %arg6[%c32_83, %c0_84] : memref<288x32xbf16, #tpu.memory_space<vmem>>, vector<32x32xbf16>
    %cst_85 = arith.constant dense<0.000000e+00> : vector<128x32xf32>
    %122 = tpu.matmul %120, %121, %cst_85 {dimension_numbers = #tpu.dot_dimension_numbers<[1], [0], [0], [1], [0, 0, 1, 1], [], []>} : vector<128x32xbf16>, vector<32x32xbf16>, vector<128x32xf32> -> vector<128x32xf32>
    %123 = arith.addf %117, %122 : vector<128x32xf32>
    %c0_86 = arith.constant 0 : index
    %c2_87 = arith.constant 2 : index
    %c0_88 = arith.constant 0 : index
    %124 = vector.load %arg9[%c0_86, %c2_87, %c0_88] : memref<10x18x32xf32, #tpu.memory_space<vmem>>, vector<8x16x32xf32>
    %125 = vector.shape_cast %124 : vector<8x16x32xf32> to vector<128x32xf32>
    %126 = arith.truncf %125 : vector<128x32xf32> to vector<128x32xbf16>
    %c64_89 = arith.constant 64 : index
    %c0_90 = arith.constant 0 : index
    %127 = vector.load %arg6[%c64_89, %c0_90] : memref<288x32xbf16, #tpu.memory_space<vmem>>, vector<32x32xbf16>
    %cst_91 = arith.constant dense<0.000000e+00> : vector<128x32xf32>
    %128 = tpu.matmul %126, %127, %cst_91 {dimension_numbers = #tpu.dot_dimension_numbers<[1], [0], [0], [1], [0, 0, 1, 1], [], []>} : vector<128x32xbf16>, vector<32x32xbf16>, vector<128x32xf32> -> vector<128x32xf32>
    %129 = arith.addf %123, %128 : vector<128x32xf32>
    %c1_92 = arith.constant 1 : index
    %c0_93 = arith.constant 0 : index
    %c0_94 = arith.constant 0 : index
    %130 = vector.load %arg9[%c1_92, %c0_93, %c0_94] : memref<10x18x32xf32, #tpu.memory_space<vmem>>, vector<8x16x32xf32>
    %131 = vector.shape_cast %130 : vector<8x16x32xf32> to vector<128x32xf32>
    %132 = arith.truncf %131 : vector<128x32xf32> to vector<128x32xbf16>
    %c96_95 = arith.constant 96 : index
    %c0_96 = arith.constant 0 : index
    %133 = vector.load %arg6[%c96_95, %c0_96] : memref<288x32xbf16, #tpu.memory_space<vmem>>, vector<32x32xbf16>
    %cst_97 = arith.constant dense<0.000000e+00> : vector<128x32xf32>
    %134 = tpu.matmul %132, %133, %cst_97 {dimension_numbers = #tpu.dot_dimension_numbers<[1], [0], [0], [1], [0, 0, 1, 1], [], []>} : vector<128x32xbf16>, vector<32x32xbf16>, vector<128x32xf32> -> vector<128x32xf32>
    %135 = arith.addf %129, %134 : vector<128x32xf32>
    %c1_98 = arith.constant 1 : index
    %c1_99 = arith.constant 1 : index
    %c0_100 = arith.constant 0 : index
    %136 = vector.load %arg9[%c1_98, %c1_99, %c0_100] : memref<10x18x32xf32, #tpu.memory_space<vmem>>, vector<8x16x32xf32>
    %137 = vector.shape_cast %136 : vector<8x16x32xf32> to vector<128x32xf32>
    %138 = arith.truncf %137 : vector<128x32xf32> to vector<128x32xbf16>
    %c128_101 = arith.constant 128 : index
    %c0_102 = arith.constant 0 : index
    %139 = vector.load %arg6[%c128_101, %c0_102] : memref<288x32xbf16, #tpu.memory_space<vmem>>, vector<32x32xbf16>
    %cst_103 = arith.constant dense<0.000000e+00> : vector<128x32xf32>
    %140 = tpu.matmul %138, %139, %cst_103 {dimension_numbers = #tpu.dot_dimension_numbers<[1], [0], [0], [1], [0, 0, 1, 1], [], []>} : vector<128x32xbf16>, vector<32x32xbf16>, vector<128x32xf32> -> vector<128x32xf32>
    %141 = arith.addf %135, %140 : vector<128x32xf32>
    %c1_104 = arith.constant 1 : index
    %c2_105 = arith.constant 2 : index
    %c0_106 = arith.constant 0 : index
    %142 = vector.load %arg9[%c1_104, %c2_105, %c0_106] : memref<10x18x32xf32, #tpu.memory_space<vmem>>, vector<8x16x32xf32>
    %143 = vector.shape_cast %142 : vector<8x16x32xf32> to vector<128x32xf32>
    %144 = arith.truncf %143 : vector<128x32xf32> to vector<128x32xbf16>
    %c160_107 = arith.constant 160 : index
    %c0_108 = arith.constant 0 : index
    %145 = vector.load %arg6[%c160_107, %c0_108] : memref<288x32xbf16, #tpu.memory_space<vmem>>, vector<32x32xbf16>
    %cst_109 = arith.constant dense<0.000000e+00> : vector<128x32xf32>
    %146 = tpu.matmul %144, %145, %cst_109 {dimension_numbers = #tpu.dot_dimension_numbers<[1], [0], [0], [1], [0, 0, 1, 1], [], []>} : vector<128x32xbf16>, vector<32x32xbf16>, vector<128x32xf32> -> vector<128x32xf32>
    %147 = arith.addf %141, %146 : vector<128x32xf32>
    %c2_110 = arith.constant 2 : index
    %c0_111 = arith.constant 0 : index
    %c0_112 = arith.constant 0 : index
    %148 = vector.load %arg9[%c2_110, %c0_111, %c0_112] : memref<10x18x32xf32, #tpu.memory_space<vmem>>, vector<8x16x32xf32>
    %149 = vector.shape_cast %148 : vector<8x16x32xf32> to vector<128x32xf32>
    %150 = arith.truncf %149 : vector<128x32xf32> to vector<128x32xbf16>
    %c192_113 = arith.constant 192 : index
    %c0_114 = arith.constant 0 : index
    %151 = vector.load %arg6[%c192_113, %c0_114] : memref<288x32xbf16, #tpu.memory_space<vmem>>, vector<32x32xbf16>
    %cst_115 = arith.constant dense<0.000000e+00> : vector<128x32xf32>
    %152 = tpu.matmul %150, %151, %cst_115 {dimension_numbers = #tpu.dot_dimension_numbers<[1], [0], [0], [1], [0, 0, 1, 1], [], []>} : vector<128x32xbf16>, vector<32x32xbf16>, vector<128x32xf32> -> vector<128x32xf32>
    %153 = arith.addf %147, %152 : vector<128x32xf32>
    %c2_116 = arith.constant 2 : index
    %c1_117 = arith.constant 1 : index
    %c0_118 = arith.constant 0 : index
    %154 = vector.load %arg9[%c2_116, %c1_117, %c0_118] : memref<10x18x32xf32, #tpu.memory_space<vmem>>, vector<8x16x32xf32>
    %155 = vector.shape_cast %154 : vector<8x16x32xf32> to vector<128x32xf32>
    %156 = arith.truncf %155 : vector<128x32xf32> to vector<128x32xbf16>
    %c224_119 = arith.constant 224 : index
    %c0_120 = arith.constant 0 : index
    %157 = vector.load %arg6[%c224_119, %c0_120] : memref<288x32xbf16, #tpu.memory_space<vmem>>, vector<32x32xbf16>
    %cst_121 = arith.constant dense<0.000000e+00> : vector<128x32xf32>
    %158 = tpu.matmul %156, %157, %cst_121 {dimension_numbers = #tpu.dot_dimension_numbers<[1], [0], [0], [1], [0, 0, 1, 1], [], []>} : vector<128x32xbf16>, vector<32x32xbf16>, vector<128x32xf32> -> vector<128x32xf32>
    %159 = arith.addf %153, %158 : vector<128x32xf32>
    %c2_122 = arith.constant 2 : index
    %c2_123 = arith.constant 2 : index
    %c0_124 = arith.constant 0 : index
    %160 = vector.load %arg9[%c2_122, %c2_123, %c0_124] : memref<10x18x32xf32, #tpu.memory_space<vmem>>, vector<8x16x32xf32>
    %161 = vector.shape_cast %160 : vector<8x16x32xf32> to vector<128x32xf32>
    %162 = arith.truncf %161 : vector<128x32xf32> to vector<128x32xbf16>
    %c256_125 = arith.constant 256 : index
    %c0_126 = arith.constant 0 : index
    %163 = vector.load %arg6[%c256_125, %c0_126] : memref<288x32xbf16, #tpu.memory_space<vmem>>, vector<32x32xbf16>
    %cst_127 = arith.constant dense<0.000000e+00> : vector<128x32xf32>
    %164 = tpu.matmul %162, %163, %cst_127 {dimension_numbers = #tpu.dot_dimension_numbers<[1], [0], [0], [1], [0, 0, 1, 1], [], []>} : vector<128x32xbf16>, vector<32x32xbf16>, vector<128x32xf32> -> vector<128x32xf32>
    %165 = arith.addf %159, %164 : vector<128x32xf32>
    %c0_128 = arith.constant 0 : index
    %c0_129 = arith.constant 0 : index
    %166 = vector.load %arg7[%c0_128, %c0_129] : memref<1x32xf32, #tpu.memory_space<vmem>>, vector<1x32xf32>
    %167 = vector.broadcast %166 : vector<1x32xf32> to vector<128x32xf32>
    %168 = arith.addf %165, %167 : vector<128x32xf32>
    %cst_130 = arith.constant 0.000000e+00 : f32
    %169 = vector.broadcast %cst_130 : f32 to vector<128x32xf32>
    %170 = arith.cmpf ogt, %168, %169 : vector<128x32xf32>
    %cst_131 = arith.constant 0.00999999977 : f32
    %171 = vector.broadcast %cst_131 : f32 to vector<128x32xf32>
    %172 = arith.mulf %171, %168 : vector<128x32xf32>
    %173 = arith.select %170, %168, %172 : vector<128x32xi1>, vector<128x32xf32>
    %c0_132 = arith.constant 0 : index
    %c0_133 = arith.constant 0 : index
    %174 = vector.load %arg8[%c0_132, %c0_133] : memref<128x32xf32, #tpu.memory_space<vmem>>, vector<128x32xf32>
    tpu.vector_store %arg8[%c0_132, %c0_133], %173 {strides = array<i32>} : memref<128x32xf32, #tpu.memory_space<vmem>>, vector<128x32xf32>,
    return
  }
  func.func @transform_0(%arg0: i32) -> (i32, i32) {
    %c0_i32 = arith.constant 0 : i32
    %c0_i32_0 = arith.constant 0 : i32
    %c0_i32_1 = arith.constant 0 : i32
    return %c0_i32, %c0_i32_0 : i32, i32
  }
  func.func @transform_1(%arg0: i32) -> (i32, i32) {
    %c0_i32 = arith.constant 0 : i32
    %c0_i32_0 = arith.constant 0 : i32
    %c0_i32_1 = arith.constant 0 : i32
    return %c0_i32, %c0_i32_0 : i32, i32
  }
  func.func @transform_2(%arg0: i32) -> (i32, i32) {
    %c0_i32 = arith.constant 0 : i32
    %c0_i32_0 = arith.constant 0 : i32
    %c0_i32_1 = arith.constant 0 : i32
    return %c0_i32, %c0_i32_0 : i32, i32
  }
  func.func @transform_3(%arg0: i32) -> (i32, i32) {
    %c0_i32 = arith.constant 0 : i32
    %c0_i32_0 = arith.constant 0 : i32
    %c0_i32_1 = arith.constant 0 : i32
    return %c0_i32, %c0_i32_0 : i32, i32
  }
  func.func @transform_4(%arg0: i32) -> (i32, i32) {
    %c0_i32 = arith.constant 0 : i32
    %c0_i32_0 = arith.constant 0 : i32
    %c0_i32_1 = arith.constant 0 : i32
    return %c0_i32, %c0_i32_0 : i32, i32
  }
  func.func @transform_5(%arg0: i32) -> (i32, i32) {
    %c0_i32 = arith.constant 0 : i32
    %c0_i32_0 = arith.constant 0 : i32
    %c0_i32_1 = arith.constant 0 : i32
    return %c0_i32, %c0_i32_0 : i32, i32
  }
  func.func @transform_6(%arg0: i32) -> (i32, i32) {
    %c0_i32 = arith.constant 0 : i32
    %c0_i32_0 = arith.constant 0 : i32
    %c0_i32_1 = arith.constant 0 : i32
    return %c0_i32, %c0_i32_0 : i32, i32
  }
  func.func @transform_7(%arg0: i32) -> (i32, i32) {
    %c0_i32 = arith.constant 0 : i32
    %c0_i32_0 = arith.constant 0 : i32
    %c0_i32_1 = arith.constant 0 : i32
    return %c0_i32, %c0_i32_0 : i32, i32
  }
}

</mosaic_0001>

<llo_original>
// kernel: nohit_forward.1
$region0: #{nohit_forward.1}
  #allocation0 [shape = 'u32[]', space=smem, size = 0x4, offset = 0x4, fixed_abs, tag = 'smem constant byte address 0x4 - core index']
  #allocation1 [shape = 'u32[72,128]{1,0:T(1,128)}', space=vmem, size = 0x9000, scoped, tag = 'internal scratch']
  #allocation2 [shape = 'f32[10,18,32]{2,1,0:T(8,128)}', space=vmem, size = 0x1e000, scoped, tag = 'scratch operand']
  %s0 = inlined_call_operand.vmem [shape: f32[48,4], index: 0, kind: input, shape index: {}]
  %s1 = inlined_call_operand.vmem [shape: f32[4,40], index: 1, kind: input, shape index: {}]
  %s2 = inlined_call_operand.vmem [shape: f32[15,32], index: 2, kind: input, shape index: {}]
  %s3 = inlined_call_operand.vmem [shape: bf16[288,32], index: 3, kind: input, shape index: {}]
  %s4 = inlined_call_operand.vmem [shape: f32[1,32], index: 4, kind: input, shape index: {}]
  %s5 = inlined_call_operand.vmem [shape: bf16[288,32], index: 5, kind: input, shape index: {}]
  %s6 = inlined_call_operand.vmem [shape: f32[1,32], index: 6, kind: input, shape index: {}]
  %s7 = inlined_call_operand.hbm [shape: f32[128,32], index: 7, kind: output, shape index: {}]
  %s8 = sld [smem:[#allocation0]]
  $region38: #{nohit_forward.1} parent=0
    _
  %s10 = ssub.s32 1, %s8
  %s11 = scalar_select 0, %s10, %s8
  $region1: #{nohit_forward.1} parent=0
    #allocation3 [shape = 'u8[65536]{0}', space=vmem, size = 0x10000, scoped, tag = 'output window, operand 0, single buffered']
    #allocation4 [shape = 's32[1]{0}', space=sflag, size = 0x4, scoped, tag = 'scoped memory for nohit_forward.1']
    %12 = vsyncpa [#allocation4], 0
    // Predicated region
    $region2: #{nohit_forward.1} parent=1 // pred_check
      _
    $region3: #{nohit_forward.1} parent=1 // pred_check_branch
      %14 = sbr.rel (0) target = $region5
    $region4: #{nohit_forward.1} parent=1 // pred_region
      _
    $region5: #{nohit_forward.1} parent=1 // pred_fallthru
      _
    // Predicated region
    $region6: #{nohit_forward.1} parent=1 // pred_check
      _
    $region7: #{nohit_forward.1} parent=1 // pred_check_branch
      %16 = sbr.rel (0) target = $region9
    $region8: #{nohit_forward.1} parent=1 // pred_region
      _
    $region9: #{nohit_forward.1} parent=1 // pred_fallthru
      _
    // Predicated region
    $region10: #{nohit_forward.1} parent=1 // pred_check
      _
    $region11: #{nohit_forward.1} parent=1 // pred_check_branch
      %18 = sbr.rel (0) target = $region13
    $region12: #{nohit_forward.1} parent=1 // pred_region
      _
    $region13: #{nohit_forward.1} parent=1 // pred_fallthru
      _
    // Predicated region
    $region14: #{nohit_forward.1} parent=1 // pred_check
      _
    $region15: #{nohit_forward.1} parent=1 // pred_check_branch
      %20 = sbr.rel (0) target = $region17
    $region16: #{nohit_forward.1} parent=1 // pred_region
      _
    $region17: #{nohit_forward.1} parent=1 // pred_fallthru
      _
    // Predicated region
    $region18: #{nohit_forward.1} parent=1 // pred_check
      _
    $region19: #{nohit_forward.1} parent=1 // pred_check_branch
      %22 = sbr.rel (0) target = $region21
    $region20: #{nohit_forward.1} parent=1 // pred_region
      _
    $region21: #{nohit_forward.1} parent=1 // pred_fallthru
      _
    // Predicated region
    $region22: #{nohit_forward.1} parent=1 // pred_check
      _
    $region23: #{nohit_forward.1} parent=1 // pred_check_branch
      %24 = sbr.rel (0) target = $region25
    $region24: #{nohit_forward.1} parent=1 // pred_region
      _
    $region25: #{nohit_forward.1} parent=1 // pred_fallthru
      _
    // Predicated region
    $region26: #{nohit_forward.1} parent=1 // pred_check
      _
    $region27: #{nohit_forward.1} parent=1 // pred_check_branch
      %26 = sbr.rel (0) target = $region29
    $region28: #{nohit_forward.1} parent=1 // pred_region
      _
    $region29: #{nohit_forward.1} parent=1 // pred_fallthru
      _
    %vm28 = vcmask 261120
    %29 = vst.msk [vmem:[#allocation2] sm:$0xff] %vm28, 0.0
    %30 = vst.msk [vmem:[#allocation2 + $0x8] sm:$0xff] %vm28, 0.0
    %vm31 = vcmask 254976
    %32 = vst.msk [vmem:[#allocation2 + $0x10] sm:$0x3] %vm31, 0.0
    %s33 = scalar_lea.vmem [#allocation2], 216
    %34 = vst.msk [vmem:[%s33] sm:$0xff] %vm28, 0.0
    %35 = vst.msk [vmem:[%s33 + $0x8] sm:$0xff] %vm28, 0.0
    %36 = vst.msk [vmem:[%s33 + $0x10] sm:$0x3] %vm31, 0.0
    %s37 = scalar_lea.vmem [#allocation2], 24
    %vm38 = vcmask 253952
    %39 = vst.msk [vmem:[%s37] sm:$0x1] %vm38, 0.0
    %40 = vst.msk [vmem:[%s37 + $0x18] sm:$0x1] %vm38, 0.0
    %41 = vst.msk [vmem:[%s37 + $0x30] sm:$0x1] %vm38, 0.0
    %42 = vst.msk [vmem:[%s37 + $0x48] sm:$0x1] %vm38, 0.0
    %43 = vst.msk [vmem:[%s37 + $0x60] sm:$0x1] %vm38, 0.0
    %44 = vst.msk [vmem:[%s37 + $0x78] sm:$0x1] %vm38, 0.0
    %45 = vst.msk [vmem:[%s37 + $0x90] sm:$0x1] %vm38, 0.0
    %46 = vst.msk [vmem:[%s37 + $0xa8] sm:$0x1] %vm38, 0.0
    %47 = vst.msk [vmem:[%s37 + $0x11] sm:$0x1] %vm38, 0.0
    %48 = vst.msk [vmem:[%s37 + $0x29] sm:$0x1] %vm38, 0.0
    %49 = vst.msk [vmem:[%s37 + $0x41] sm:$0x1] %vm38, 0.0
    %50 = vst.msk [vmem:[%s37 + $0x59] sm:$0x1] %vm38, 0.0
    %51 = vst.msk [vmem:[%s37 + $0x71] sm:$0x1] %vm38, 0.0
    %52 = vst.msk [vmem:[%s37 + $0x89] sm:$0x1] %vm38, 0.0
    %53 = vst.msk [vmem:[%s37 + $0xa1] sm:$0x1] %vm38, 0.0
    %54 = vst.msk [vmem:[%s37 + $0xb9] sm:$0x1] %vm38, 0.0
    %v55 = vld [vmem:[%s0] sm:$0xff]
    %v56 = vld [vmem:[%s0 + $0x8] sm:$0xff]
    %v57 = vld [vmem:[%s0 + $0x10] sm:$0xff]
    %v58 = vld [vmem:[%s0 + $0x18] sm:$0xff]
    %v59 = vld [vmem:[%s0 + $0x20] sm:$0xff]
    %v60 = vld [vmem:[%s0 + $0x28] sm:$0xff]
    %v61 = vld [vmem:[%s1] sm:$0xf]
    %vm62 = vcmask 31744
    %v64 = vsel %vm62, %v55, 0
    %v67 = vsel %vm62, %v56, 0
    %v70 = vsel %vm62, %v57, 0
    %v73 = vsel %vm62, %v58, 0
    %v76 = vsel %vm62, %v59, 0
    %v79 = vsel %vm62, %v60, 0
    %vm81 = vcmask 1043456
    %v83 = vsel %vm81, %v61, 0
    %85 = vmatpush.msra.mxu0 0.0
    %86 = vmatpush.msra.mxu0 0.0
    %87 = vmatpush.msra.mxu0 0.0
    %88 = vmatpush.msra.mxu0 0.0
    %89 = vmatpush.msra.mxu0 0.0
    %90 = vmatpush.msra.mxu0 0.0
    %91 = vmatpush.msra.mxu0 0.0
    %92 = vmatpush.msra.mxu0 0.0
    %93 = vmatpush.msra.mxu0 0.0
    %94 = vmatpush.msra.mxu0 0.0
    %95 = vmatpush.msra.mxu0 0.0
    %96 = vmatpush.msra.mxu0 0.0
    %97 = vmatpush.msra.mxu0 0.0
    %98 = vmatpush.msra.mxu0 0.0
    %99 = vmatpush.msra.mxu0 0.0
    %100 = vmatpush.msra.mxu0 %v83
    %101 = vmatmul.f32.gmra.mxu0 %v64
    %v102 = vpop.f32.mrf.mxu0
    %v103 = vadd.f32 0.0, %v102
    %104 = vmatmul.f32.gmra.mxu0 %v67
    %v105 = vpop.f32.mrf.mxu0
    %v106 = vadd.f32 0.0, %v105
    %107 = vmatmul.f32.gmra.mxu0 %v70
    %v108 = vpop.f32.mrf.mxu0
    %v109 = vadd.f32 0.0, %v108
    %110 = vmatmul.f32.gmra.mxu0 %v73
    %v111 = vpop.f32.mrf.mxu0
    %v112 = vadd.f32 0.0, %v111
    %113 = vmatmul.f32.gmra.mxu0 %v76
    %v114 = vpop.f32.mrf.mxu0
    %v115 = vadd.f32 0.0, %v114
    %116 = vmatmul.f32.gmra.mxu0 %v79
    %v117 = vpop.f32.mrf.mxu0
    %v118 = vadd.f32 0.0, %v117
    %119 = vdwg.mxu0
    %122 = vrot.lane.b32.xlu0 %v109, 5
    %v123 = vpop.permute.xlu0 %122
    %124 = vrot.lane.b32.xlu0 %v112, 5
    %v125 = vpop.permute.xlu0 %124
    %130 = vrot.lane.b32.xlu0 %v115, 10
    %v131 = vpop.permute.xlu0 %130
    %132 = vrot.lane.b32.xlu0 %v118, 10
    %v133 = vpop.permute.xlu0 %132
    %vm136 = vcmask 39936
    %v137 = vsel %vm136, %v103, %v123
    %v138 = vsel %vm136, %v106, %v125
    %vm139 = vcmask 80896
    %v140 = vsel %vm139, %v137, %v131
    %v141 = vsel %vm139, %v138, %v133
    %144 = vrot.lane.b32.xlu0 %v103, 123
    %v145 = vpop.permute.xlu0 %144
    %146 = vrot.lane.b32.xlu0 %v106, 123
    %v147 = vpop.permute.xlu0 %146
    %150 = vrot.lane.b32.xlu0 %v115, 5
    %v151 = vpop.permute.xlu0 %150
    %152 = vrot.lane.b32.xlu0 %v118, 5
    %v153 = vpop.permute.xlu0 %152
    %v156 = vsel %vm136, %v145, %v109
    %v157 = vsel %vm136, %v147, %v112
    %v158 = vsel %vm139, %v156, %v151
    %v159 = vsel %vm139, %v157, %v153
    %160 = vrot.lane.b32.xlu0 %v103, 118
    %v161 = vpop.permute.xlu0 %160
    %162 = vrot.lane.b32.xlu0 %v106, 118
    %v163 = vpop.permute.xlu0 %162
    %166 = vrot.lane.b32.xlu0 %v109, 123
    %v167 = vpop.permute.xlu0 %166
    %168 = vrot.lane.b32.xlu0 %v112, 123
    %v169 = vpop.permute.xlu0 %168
    %v172 = vsel %vm136, %v161, %v167
    %v173 = vsel %vm136, %v163, %v169
    %v174 = vsel %vm139, %v172, %v115
    %v175 = vsel %vm139, %v173, %v118
    %176 = vrot.lane.b32.xlu0 %v103, 113
    %v177 = vpop.permute.xlu0 %176
    %178 = vrot.lane.b32.xlu0 %v106, 113
    %v179 = vpop.permute.xlu0 %178
    %182 = vrot.lane.b32.xlu0 %v109, 118
    %v183 = vpop.permute.xlu0 %182
    %184 = vrot.lane.b32.xlu0 %v112, 118
    %v185 = vpop.permute.xlu0 %184
    %188 = vrot.lane.b32.xlu0 %v115, 123
    %v189 = vpop.permute.xlu0 %188
    %190 = vrot.lane.b32.xlu0 %v118, 123
    %v191 = vpop.permute.xlu0 %190
    %v194 = vsel %vm136, %v177, %v183
    %v195 = vsel %vm136, %v179, %v185
    %v196 = vsel %vm139, %v194, %v189
    %v197 = vsel %vm139, %v195, %v191
    %198 = vrot.lane.b32.xlu0 %v103, 108
    %v199 = vpop.permute.xlu0 %198
    %200 = vrot.lane.b32.xlu0 %v106, 108
    %v201 = vpop.permute.xlu0 %200
    %204 = vrot.lane.b32.xlu0 %v109, 113
    %v205 = vpop.permute.xlu0 %204
    %206 = vrot.lane.b32.xlu0 %v112, 113
    %v207 = vpop.permute.xlu0 %206
    %210 = vrot.lane.b32.xlu0 %v115, 118
    %v211 = vpop.permute.xlu0 %210
    %212 = vrot.lane.b32.xlu0 %v118, 118
    %v213 = vpop.permute.xlu0 %212
    %v216 = vsel %vm136, %v199, %v205
    %v217 = vsel %vm136, %v201, %v207
    %v218 = vsel %vm139, %v216, %v211
    %v219 = vsel %vm139, %v217, %v213
    %220 = vrot.lane.b32.xlu0 %v103, 103
    %v221 = vpop.permute.xlu0 %220
    %222 = vrot.lane.b32.xlu0 %v106, 103
    %v223 = vpop.permute.xlu0 %222
    %226 = vrot.lane.b32.xlu0 %v109, 108
    %v227 = vpop.permute.xlu0 %226
    %228 = vrot.lane.b32.xlu0 %v112, 108
    %v229 = vpop.permute.xlu0 %228
    %232 = vrot.lane.b32.xlu0 %v115, 113
    %v233 = vpop.permute.xlu0 %232
    %234 = vrot.lane.b32.xlu0 %v118, 113
    %v235 = vpop.permute.xlu0 %234
    %v238 = vsel %vm136, %v221, %v227
    %v239 = vsel %vm136, %v223, %v229
    %v240 = vsel %vm139, %v238, %v233
    %v241 = vsel %vm139, %v239, %v235
    %242 = vrot.lane.b32.xlu0 %v103, 98
    %v243 = vpop.permute.xlu0 %242
    %244 = vrot.lane.b32.xlu0 %v106, 98
    %v245 = vpop.permute.xlu0 %244
    %248 = vrot.lane.b32.xlu0 %v109, 103
    %v249 = vpop.permute.xlu0 %248
    %250 = vrot.lane.b32.xlu0 %v112, 103
    %v251 = vpop.permute.xlu0 %250
    %254 = vrot.lane.b32.xlu0 %v115, 108
    %v255 = vpop.permute.xlu0 %254
    %256 = vrot.lane.b32.xlu0 %v118, 108
    %v257 = vpop.permute.xlu0 %256
    %v260 = vsel %vm136, %v243, %v249
    %v261 = vsel %vm136, %v245, %v251
    %v262 = vsel %vm139, %v260, %v255
    %v263 = vsel %vm139, %v261, %v257
    %264 = vrot.lane.b32.xlu0 %v103, 93
    %v265 = vpop.permute.xlu0 %264
    %266 = vrot.lane.b32.xlu0 %v106, 93
    %v267 = vpop.permute.xlu0 %266
    %270 = vrot.lane.b32.xlu0 %v109, 98
    %v271 = vpop.permute.xlu0 %270
    %272 = vrot.lane.b32.xlu0 %v112, 98
    %v273 = vpop.permute.xlu0 %272
    %276 = vrot.lane.b32.xlu0 %v115, 103
    %v277 = vpop.permute.xlu0 %276
    %278 = vrot.lane.b32.xlu0 %v118, 103
    %v279 = vpop.permute.xlu0 %278
    %v282 = vsel %vm136, %v265, %v271
    %v283 = vsel %vm136, %v267, %v273
    %v284 = vsel %vm139, %v282, %v277
    %v285 = vsel %vm139, %v283, %v279
    %v286 = vld [vmem:[%s2] sm:$0xff]
    %v287 = vld [vmem:[%s2 + $0x8] sm:$0x7f]
    %vm288 = vcmask 121856
    %v290 = vsel %vm288, %v140, 0
    %v293 = vsel %vm288, %v141, 0
    %v296 = vsel %vm288, %v158, 0
    %v299 = vsel %vm288, %v159, 0
    %v302 = vsel %vm288, %v174, 0
    %v305 = vsel %vm288, %v175, 0
    %v308 = vsel %vm288, %v196, 0
    %v311 = vsel %vm288, %v197, 0
    %v314 = vsel %vm288, %v218, 0
    %v317 = vsel %vm288, %v219, 0
    %v320 = vsel %vm288, %v240, 0
    %v323 = vsel %vm288, %v241, 0
    %v326 = vsel %vm288, %v262, 0
    %v329 = vsel %vm288, %v263, 0
    %v332 = vsel %vm288, %v284, 0
    %v335 = vsel %vm288, %v285, 0
    %vm337 = vcmask 1046528
    %v339 = vsel %vm337, %v287, 0
    %341 = vmatpush.msra.mxu0 0.0
    %342 = vmatpush.msra.mxu0 0.0
    %343 = vmatpush.msra.mxu0 0.0
    %344 = vmatpush.msra.mxu0 0.0
    %345 = vmatpush.msra.mxu0 0.0
    %346 = vmatpush.msra.mxu0 0.0
    %347 = vmatpush.msra.mxu0 0.0
    %348 = vmatpush.msra.mxu0 0.0
    %349 = vmatpush.msra.mxu0 0.0
    %350 = vmatpush.msra.mxu0 0.0
    %351 = vmatpush.msra.mxu0 0.0
    %352 = vmatpush.msra.mxu0 0.0
    %353 = vmatpush.msra.mxu0 0.0
    %354 = vmatpush.msra.mxu0 0.0
    %355 = vmatpush.msra.mxu0 %v339
    %356 = vmatpush.msra.mxu0 %v286
    %357 = vmatmul.f32.gmra.mxu0 %v290
    %v358 = vpop.f32.mrf.mxu0
    %v359 = vadd.f32 0.0, %v358
    %360 = vmatmul.f32.gmra.mxu0 %v293
    %v361 = vpop.f32.mrf.mxu0
    %v362 = vadd.f32 0.0, %v361
    %363 = vmatmul.f32.gmra.mxu0 %v296
    %v364 = vpop.f32.mrf.mxu0
    %v365 = vadd.f32 0.0, %v364
    %366 = vmatmul.f32.gmra.mxu0 %v299
    %v367 = vpop.f32.mrf.mxu0
    %v368 = vadd.f32 0.0, %v367
    %369 = vmatmul.f32.gmra.mxu0 %v302
    %v370 = vpop.f32.mrf.mxu0
    %v371 = vadd.f32 0.0, %v370
    %372 = vmatmul.f32.gmra.mxu0 %v305
    %v373 = vpop.f32.mrf.mxu0
    %v374 = vadd.f32 0.0, %v373
    %375 = vmatmul.f32.gmra.mxu0 %v308
    %v376 = vpop.f32.mrf.mxu0
    %v377 = vadd.f32 0.0, %v376
    %378 = vmatmul.f32.gmra.mxu0 %v311
    %v379 = vpop.f32.mrf.mxu0
    %v380 = vadd.f32 0.0, %v379
    %381 = vmatmul.f32.gmra.mxu0 %v314
    %v382 = vpop.f32.mrf.mxu0
    %v383 = vadd.f32 0.0, %v382
    %384 = vmatmul.f32.gmra.mxu0 %v317
    %v385 = vpop.f32.mrf.mxu0
    %v386 = vadd.f32 0.0, %v385
    %387 = vmatmul.f32.gmra.mxu0 %v320
    %v388 = vpop.f32.mrf.mxu0
    %v389 = vadd.f32 0.0, %v388
    %390 = vmatmul.f32.gmra.mxu0 %v323
    %v391 = vpop.f32.mrf.mxu0
    %v392 = vadd.f32 0.0, %v391
    %393 = vmatmul.f32.gmra.mxu0 %v326
    %v394 = vpop.f32.mrf.mxu0
    %v395 = vadd.f32 0.0, %v394
    %396 = vmatmul.f32.gmra.mxu0 %v329
    %v397 = vpop.f32.mrf.mxu0
    %v398 = vadd.f32 0.0, %v397
    %399 = vmatmul.f32.gmra.mxu0 %v332
    %v400 = vpop.f32.mrf.mxu0
    %v401 = vadd.f32 0.0, %v400
    %402 = vmatmul.f32.gmra.mxu0 %v335
    %v403 = vpop.f32.mrf.mxu0
    %v404 = vadd.f32 0.0, %v403
    %405 = vdwg.mxu0
    %406 = vst.msk [vmem:[%s37 + $0x1] sm:$0xff] %vm28, %v359
    %407 = vst.msk [vmem:[%s37 + $0x9] sm:$0xff] %vm28, %v362
    %408 = vst.msk [vmem:[%s37 + $0x19] sm:$0xff] %vm28, %v365
    %409 = vst.msk [vmem:[%s37 + $0x21] sm:$0xff] %vm28, %v368
    %410 = vst.msk [vmem:[%s37 + $0x31] sm:$0xff] %vm28, %v371
    %411 = vst.msk [vmem:[%s37 + $0x39] sm:$0xff] %vm28, %v374
    %412 = vst.msk [vmem:[%s37 + $0x49] sm:$0xff] %vm28, %v377
    %413 = vst.msk [vmem:[%s37 + $0x51] sm:$0xff] %vm28, %v380
    %414 = vst.msk [vmem:[%s37 + $0x61] sm:$0xff] %vm28, %v383
    %415 = vst.msk [vmem:[%s37 + $0x69] sm:$0xff] %vm28, %v386
    %416 = vst.msk [vmem:[%s37 + $0x79] sm:$0xff] %vm28, %v389
    %417 = vst.msk [vmem:[%s37 + $0x81] sm:$0xff] %vm28, %v392
    %418 = vst.msk [vmem:[%s37 + $0x91] sm:$0xff] %vm28, %v395
    %419 = vst.msk [vmem:[%s37 + $0x99] sm:$0xff] %vm28, %v398
    %420 = vst.msk [vmem:[%s37 + $0xa9] sm:$0xff] %vm28, %v401
    %421 = vst.msk [vmem:[%s37 + $0xb1] sm:$0xff] %vm28, %v404
    %v422 = vld [vmem:[#allocation2] sm:$0xff]
    %v423 = vld [vmem:[#allocation2 + $0x8] sm:$0xff]
    %v424 = vld [vmem:[#allocation2 + $0x18] sm:$0xff]
    %v425 = vld [vmem:[#allocation2 + $0x20] sm:$0xff]
    %v426 = vld [vmem:[#allocation2 + $0x30] sm:$0xff]
    %v427 = vld [vmem:[#allocation2 + $0x38] sm:$0xff]
    %v428 = vld [vmem:[#allocation2 + $0x48] sm:$0xff]
    %v429 = vld [vmem:[#allocation2 + $0x50] sm:$0xff]
    %v430 = vld [vmem:[#allocation2 + $0x60] sm:$0xff]
    %v431 = vld [vmem:[#allocation2 + $0x68] sm:$0xff]
    %v432 = vld [vmem:[#allocation2 + $0x78] sm:$0xff]
    %v433 = vld [vmem:[#allocation2 + $0x80] sm:$0xff]
    %v434 = vld [vmem:[#allocation2 + $0x90] sm:$0xff]
    %v435 = vld [vmem:[#allocation2 + $0x98] sm:$0xff]
    %v436 = vld [vmem:[#allocation2 + $0xa8] sm:$0xff]
    %v437 = vld [vmem:[#allocation2 + $0xb0] sm:$0xff]
    %v438 = vpack.c.bf16 %v423, %v422
    %v439 = vpack.c.bf16 %v425, %v424
    %v440 = vpack.c.bf16 %v427, %v426
    %v441 = vpack.c.bf16 %v429, %v428
    %v442 = vpack.c.bf16 %v431, %v430
    %v443 = vpack.c.bf16 %v433, %v432
    %v444 = vpack.c.bf16 %v435, %v434
    %v445 = vpack.c.bf16 %v437, %v436
    %v446 = vld [vmem:[%s3] sm:$0xf]
    %v447 = vld [vmem:[%s3 + $0x4] sm:$0xf]
    %v448 = vld [vmem:[%s3 + $0x8] sm:$0xf]
    %v449 = vld [vmem:[%s3 + $0xc] sm:$0xf]
    %v450 = vld [vmem:[#allocation2 + $0x1] sm:$0xff]
    %v451 = vld [vmem:[#allocation2 + $0x9] sm:$0xff]
    %v452 = vld [vmem:[#allocation2 + $0x19] sm:$0xff]
    %v453 = vld [vmem:[#allocation2 + $0x21] sm:$0xff]
    %v454 = vld [vmem:[#allocation2 + $0x31] sm:$0xff]
    %v455 = vld [vmem:[#allocation2 + $0x39] sm:$0xff]
    %v456 = vld [vmem:[#allocation2 + $0x49] sm:$0xff]
    %v457 = vld [vmem:[#allocation2 + $0x51] sm:$0xff]
    %v458 = vld [vmem:[#allocation2 + $0x61] sm:$0xff]
    %v459 = vld [vmem:[#allocation2 + $0x69] sm:$0xff]
    %v460 = vld [vmem:[#allocation2 + $0x79] sm:$0xff]
    %v461 = vld [vmem:[#allocation2 + $0x81] sm:$0xff]
    %v462 = vld [vmem:[#allocation2 + $0x91] sm:$0xff]
    %v463 = vld [vmem:[#allocation2 + $0x99] sm:$0xff]
    %v464 = vld [vmem:[#allocation2 + $0xa9] sm:$0xff]
    %v465 = vld [vmem:[#allocation2 + $0xb1] sm:$0xff]
    %v466 = vpack.c.bf16 %v451, %v450
    %v467 = vpack.c.bf16 %v453, %v452
    %v468 = vpack.c.bf16 %v455, %v454
    %v469 = vpack.c.bf16 %v457, %v456
    %v470 = vpack.c.bf16 %v459, %v458
    %v471 = vpack.c.bf16 %v461, %v460
    %v472 = vpack.c.bf16 %v463, %v462
    %v473 = vpack.c.bf16 %v465, %v464
    %v474 = vld [vmem:[%s3 + $0x10] sm:$0xf]
    %v475 = vld [vmem:[%s3 + $0x14] sm:$0xf]
    %v476 = vld [vmem:[%s3 + $0x18] sm:$0xf]
    %v477 = vld [vmem:[%s3 + $0x1c] sm:$0xf]
    %v482 = vunpack.c.l.b16 %v474
    %v483 = vunpack.c.l.b16 %v475
    %v484 = vunpack.c.l.b16 %v476
    %v485 = vunpack.c.l.b16 %v477
    %v486 = vpack.c.b16 %v483, %v482
    %v487 = vpack.c.b16 %v485, %v484
    %v491 = vsel %vm28, %v466, 0
    %v494 = vsel %vm28, %v467, 0
    %v497 = vsel %vm28, %v468, 0
    %v500 = vsel %vm28, %v469, 0
    %v503 = vsel %vm28, %v470, 0
    %v506 = vsel %vm28, %v471, 0
    %v509 = vsel %vm28, %v472, 0
    %v512 = vsel %vm28, %v473, 0
    %514 = vmatpush.bf16.msra.mxu0 0
    %515 = vmatpush.bf16.msra.mxu0 0
    %516 = vmatpush.bf16.msra.mxu0 0
    %517 = vmatpush.bf16.msra.mxu0 0
    %518 = vmatpush.bf16.msra.mxu0 0
    %519 = vmatpush.bf16.msra.mxu0 0
    %520 = vmatpush.bf16.msra.mxu0 %v487
    %521 = vmatpush.bf16.msra.mxu0 %v486
    %522 = vmatmul.bf16.gmra.mxu0 %v491
    %v523 = vpop.f32.mrf.mxu0
    %v524 = vadd.f32 0.0, %v523
    %v525 = vpop.f32.mrf.mxu0
    %v526 = vadd.f32 0.0, %v525
    %527 = vmatmul.bf16.gmra.mxu0 %v494
    %v528 = vpop.f32.mrf.mxu0
    %v529 = vadd.f32 0.0, %v528
    %v530 = vpop.f32.mrf.mxu0
    %v531 = vadd.f32 0.0, %v530
    %532 = vmatmul.bf16.gmra.mxu0 %v497
    %v533 = vpop.f32.mrf.mxu0
    %v534 = vadd.f32 0.0, %v533
    %v535 = vpop.f32.mrf.mxu0
    %v536 = vadd.f32 0.0, %v535
    %537 = vmatmul.bf16.gmra.mxu0 %v500
    %v538 = vpop.f32.mrf.mxu0
    %v539 = vadd.f32 0.0, %v538
    %v540 = vpop.f32.mrf.mxu0
    %v541 = vadd.f32 0.0, %v540
    %542 = vmatmul.bf16.gmra.mxu0 %v503
    %v543 = vpop.f32.mrf.mxu0
    %v544 = vadd.f32 0.0, %v543
    %v545 = vpop.f32.mrf.mxu0
    %v546 = vadd.f32 0.0, %v545
    %547 = vmatmul.bf16.gmra.mxu0 %v506
    %v548 = vpop.f32.mrf.mxu0
    %v549 = vadd.f32 0.0, %v548
    %v550 = vpop.f32.mrf.mxu0
    %v551 = vadd.f32 0.0, %v550
    %552 = vmatmul.bf16.gmra.mxu0 %v509
    %v553 = vpop.f32.mrf.mxu0
    %v554 = vadd.f32 0.0, %v553
    %v555 = vpop.f32.mrf.mxu0
    %v556 = vadd.f32 0.0, %v555
    %557 = vmatmul.bf16.gmra.mxu0 %v512
    %v558 = vpop.f32.mrf.mxu0
    %v559 = vadd.f32 0.0, %v558
    %v560 = vpop.f32.mrf.mxu0
    %v561 = vadd.f32 0.0, %v560
    %562 = vdwg.mxu0
    %v567 = vunpack.c.l.b16 %v446
    %v568 = vunpack.c.l.b16 %v447
    %v569 = vunpack.c.l.b16 %v448
    %v570 = vunpack.c.l.b16 %v449
    %v571 = vpack.c.b16 %v568, %v567
    %v572 = vpack.c.b16 %v570, %v569
    %v576 = vsel %vm28, %v438, 0
    %v579 = vsel %vm28, %v439, 0
    %v582 = vsel %vm28, %v440, 0
    %v585 = vsel %vm28, %v441, 0
    %v588 = vsel %vm28, %v442, 0
    %v591 = vsel %vm28, %v443, 0
    %v594 = vsel %vm28, %v444, 0
    %v597 = vsel %vm28, %v445, 0
    %599 = vmatpush.bf16.msra.mxu0 0
    %600 = vmatpush.bf16.msra.mxu0 0
    %601 = vmatpush.bf16.msra.mxu0 0
    %602 = vmatpush.bf16.msra.mxu0 0
    %603 = vmatpush.bf16.msra.mxu0 0
    %604 = vmatpush.bf16.msra.mxu0 0
    %605 = vmatpush.bf16.msra.mxu0 %v572
    %606 = vmatpush.bf16.msra.mxu0 %v571
    %607 = vmatmul.bf16.gmra.mxu0 %v576
    %v608 = vpop.f32.mrf.mxu0
    %v609 = vadd.f32 %v524, %v608
    %v610 = vpop.f32.mrf.mxu0
    %v611 = vadd.f32 %v526, %v610
    %612 = vmatmul.bf16.gmra.mxu0 %v579
    %v613 = vpop.f32.mrf.mxu0
    %v614 = vadd.f32 %v529, %v613
    %v615 = vpop.f32.mrf.mxu0
    %v616 = vadd.f32 %v531, %v615
    %617 = vmatmul.bf16.gmra.mxu0 %v582
    %v618 = vpop.f32.mrf.mxu0
    %v619 = vadd.f32 %v534, %v618
    %v620 = vpop.f32.mrf.mxu0
    %v621 = vadd.f32 %v536, %v620
    %622 = vmatmul.bf16.gmra.mxu0 %v585
    %v623 = vpop.f32.mrf.mxu0
    %v624 = vadd.f32 %v539, %v623
    %v625 = vpop.f32.mrf.mxu0
    %v626 = vadd.f32 %v541, %v625
    %627 = vmatmul.bf16.gmra.mxu0 %v588
    %v628 = vpop.f32.mrf.mxu0
    %v629 = vadd.f32 %v544, %v628
    %v630 = vpop.f32.mrf.mxu0
    %v631 = vadd.f32 %v546, %v630
    %632 = vmatmul.bf16.gmra.mxu0 %v591
    %v633 = vpop.f32.mrf.mxu0
    %v634 = vadd.f32 %v549, %v633
    %v635 = vpop.f32.mrf.mxu0
    %v636 = vadd.f32 %v551, %v635
    %637 = vmatmul.bf16.gmra.mxu0 %v594
    %v638 = vpop.f32.mrf.mxu0
    %v639 = vadd.f32 %v554, %v638
    %v640 = vpop.f32.mrf.mxu0
    %v641 = vadd.f32 %v556, %v640
    %642 = vmatmul.bf16.gmra.mxu0 %v597
    %v643 = vpop.f32.mrf.mxu0
    %v644 = vadd.f32 %v559, %v643
    %v645 = vpop.f32.mrf.mxu0
    %v646 = vadd.f32 %v561, %v645
    %647 = vdwg.mxu0
    %v648 = vld [vmem:[#allocation2 + $0x2] sm:$0xff]
    %v649 = vld [vmem:[#allocation2 + $0xa] sm:$0xff]
    %v650 = vld [vmem:[#allocation2 + $0x1a] sm:$0xff]
    %v651 = vld [vmem:[#allocation2 + $0x22] sm:$0xff]
    %v652 = vld [vmem:[#allocation2 + $0x32] sm:$0xff]
    %v653 = vld [vmem:[#allocation2 + $0x3a] sm:$0xff]
    %v654 = vld [vmem:[#allocation2 + $0x4a] sm:$0xff]
    %v655 = vld [vmem:[#allocation2 + $0x52] sm:$0xff]
    %v656 = vld [vmem:[#allocation2 + $0x62] sm:$0xff]
    %v657 = vld [vmem:[#allocation2 + $0x6a] sm:$0xff]
    %v658 = vld [vmem:[#allocation2 + $0x7a] sm:$0xff]
    %v659 = vld [vmem:[#allocation2 + $0x82] sm:$0xff]
    %v660 = vld [vmem:[#allocation2 + $0x92] sm:$0xff]
    %v661 = vld [vmem:[#allocation2 + $0x9a] sm:$0xff]
    %v662 = vld [vmem:[#allocation2 + $0xaa] sm:$0xff]
    %v663 = vld [vmem:[#allocation2 + $0xb2] sm:$0xff]
    %v664 = vpack.c.bf16 %v649, %v648
    %v665 = vpack.c.bf16 %v651, %v650
    %v666 = vpack.c.bf16 %v653, %v652
    %v667 = vpack.c.bf16 %v655, %v654
    %v668 = vpack.c.bf16 %v657, %v656
    %v669 = vpack.c.bf16 %v659, %v658
    %v670 = vpack.c.bf16 %v661, %v660
    %v671 = vpack.c.bf16 %v663, %v662
    %v672 = vld [vmem:[%s3 + $0x20] sm:$0xf]
    %v673 = vld [vmem:[%s3 + $0x24] sm:$0xf]
    %v674 = vld [vmem:[%s3 + $0x28] sm:$0xf]
    %v675 = vld [vmem:[%s3 + $0x2c] sm:$0xf]
    %v680 = vunpack.c.l.b16 %v672
    %v681 = vunpack.c.l.b16 %v673
    %v682 = vunpack.c.l.b16 %v674
    %v683 = vunpack.c.l.b16 %v675
    %v684 = vpack.c.b16 %v681, %v680
    %v685 = vpack.c.b16 %v683, %v682
    %v689 = vsel %vm28, %v664, 0
    %v692 = vsel %vm28, %v665, 0
    %v695 = vsel %vm28, %v666, 0
    %v698 = vsel %vm28, %v667, 0
    %v701 = vsel %vm28, %v668, 0
    %v704 = vsel %vm28, %v669, 0
    %v707 = vsel %vm28, %v670, 0
    %v710 = vsel %vm28, %v671, 0
    %712 = vmatpush.bf16.msra.mxu0 0
    %713 = vmatpush.bf16.msra.mxu0 0
    %714 = vmatpush.bf16.msra.mxu0 0
    %715 = vmatpush.bf16.msra.mxu0 0
    %716 = vmatpush.bf16.msra.mxu0 0
    %717 = vmatpush.bf16.msra.mxu0 0
    %718 = vmatpush.bf16.msra.mxu0 %v685
    %719 = vmatpush.bf16.msra.mxu0 %v684
    %720 = vmatmul.bf16.gmra.mxu0 %v689
    %v721 = vpop.f32.mrf.mxu0
    %v722 = vadd.f32 0.0, %v721
    %v723 = vpop.f32.mrf.mxu0
    %v724 = vadd.f32 0.0, %v723
    %725 = vmatmul.bf16.gmra.mxu0 %v692
    %v726 = vpop.f32.mrf.mxu0
    %v727 = vadd.f32 0.0, %v726
    %v728 = vpop.f32.mrf.mxu0
    %v729 = vadd.f32 0.0, %v728
    %730 = vmatmul.bf16.gmra.mxu0 %v695
    %v731 = vpop.f32.mrf.mxu0
    %v732 = vadd.f32 0.0, %v731
    %v733 = vpop.f32.mrf.mxu0
    %v734 = vadd.f32 0.0, %v733
    %735 = vmatmul.bf16.gmra.mxu0 %v698
    %v736 = vpop.f32.mrf.mxu0
    %v737 = vadd.f32 0.0, %v736
    %v738 = vpop.f32.mrf.mxu0
    %v739 = vadd.f32 0.0, %v738
    %740 = vmatmul.bf16.gmra.mxu0 %v701
    %v741 = vpop.f32.mrf.mxu0
    %v742 = vadd.f32 0.0, %v741
    %v743 = vpop.f32.mrf.mxu0
    %v744 = vadd.f32 0.0, %v743
    %745 = vmatmul.bf16.gmra.mxu0 %v704
    %v746 = vpop.f32.mrf.mxu0
    %v747 = vadd.f32 0.0, %v746
    %v748 = vpop.f32.mrf.mxu0
    %v749 = vadd.f32 0.0, %v748
    %750 = vmatmul.bf16.gmra.mxu0 %v707
    %v751 = vpop.f32.mrf.mxu0
    %v752 = vadd.f32 0.0, %v751
    %v753 = vpop.f32.mrf.mxu0
    %v754 = vadd.f32 0.0, %v753
    %755 = vmatmul.bf16.gmra.mxu0 %v710
    %v756 = vpop.f32.mrf.mxu0
    %v757 = vadd.f32 0.0, %v756
    %v758 = vpop.f32.mrf.mxu0
    %v759 = vadd.f32 0.0, %v758
    %760 = vdwg.mxu0
    %v761 = vadd.f32 %v609, %v722
    %v762 = vadd.f32 %v611, %v724
    %v763 = vadd.f32 %v614, %v727
    %v764 = vadd.f32 %v616, %v729
    %v765 = vadd.f32 %v619, %v732
    %v766 = vadd.f32 %v621, %v734
    %v767 = vadd.f32 %v624, %v737
    %v768 = vadd.f32 %v626, %v739
    %v769 = vadd.f32 %v629, %v742
    %v770 = vadd.f32 %v631, %v744
    %v771 = vadd.f32 %v634, %v747
    %v772 = vadd.f32 %v636, %v749
    %v773 = vadd.f32 %v639, %v752
    %v774 = vadd.f32 %v641, %v754
    %v775 = vadd.f32 %v644, %v757
    %v776 = vadd.f32 %v646, %v759
    %v777 = vld [vmem:[%s37] sm:$0xff]
    %v778 = vld [vmem:[%s37 + $0x8] sm:$0xff]
    %v779 = vld [vmem:[%s37 + $0x18] sm:$0xff]
    %v780 = vld [vmem:[%s37 + $0x20] sm:$0xff]
    %v781 = vld [vmem:[%s37 + $0x30] sm:$0xff]
    %v782 = vld [vmem:[%s37 + $0x38] sm:$0xff]
    %v783 = vld [vmem:[%s37 + $0x48] sm:$0xff]
    %v784 = vld [vmem:[%s37 + $0x50] sm:$0xff]
    %v785 = vld [vmem:[%s37 + $0x60] sm:$0xff]
    %v786 = vld [vmem:[%s37 + $0x68] sm:$0xff]
    %v787 = vld [vmem:[%s37 + $0x78] sm:$0xff]
    %v788 = vld [vmem:[%s37 + $0x80] sm:$0xff]
    %v789 = vld [vmem:[%s37 + $0x90] sm:$0xff]
    %v790 = vld [vmem:[%s37 + $0x98] sm:$0xff]
    %v791 = vld [vmem:[%s37 + $0xa8] sm:$0xff]
    %v792 = vld [vmem:[%s37 + $0xb0] sm:$0xff]
    %v793 = vpack.c.bf16 %v778, %v777
    %v794 = vpack.c.bf16 %v780, %v779
    %v795 = vpack.c.bf16 %v782, %v781
    %v796 = vpack.c.bf16 %v784, %v783
    %v797 = vpack.c.bf16 %v786, %v785
    %v798 = vpack.c.bf16 %v788, %v787
    %v799 = vpack.c.bf16 %v790, %v789
    %v800 = vpack.c.bf16 %v792, %v791
    %v801 = vld [vmem:[%s3 + $0x30] sm:$0xf]
    %v802 = vld [vmem:[%s3 + $0x34] sm:$0xf]
    %v803 = vld [vmem:[%s3 + $0x38] sm:$0xf]
    %v804 = vld [vmem:[%s3 + $0x3c] sm:$0xf]
    %v809 = vunpack.c.l.b16 %v801
    %v810 = vunpack.c.l.b16 %v802
    %v811 = vunpack.c.l.b16 %v803
    %v812 = vunpack.c.l.b16 %v804
    %v813 = vpack.c.b16 %v810, %v809
    %v814 = vpack.c.b16 %v812, %v811
    %v818 = vsel %vm28, %v793, 0
    %v821 = vsel %vm28, %v794, 0
    %v824 = vsel %vm28, %v795, 0
    %v827 = vsel %vm28, %v796, 0
    %v830 = vsel %vm28, %v797, 0
    %v833 = vsel %vm28, %v798, 0
    %v836 = vsel %vm28, %v799, 0
    %v839 = vsel %vm28, %v800, 0
    %841 = vmatpush.bf16.msra.mxu0 0
    %842 = vmatpush.bf16.msra.mxu0 0
    %843 = vmatpush.bf16.msra.mxu0 0
    %844 = vmatpush.bf16.msra.mxu0 0
    %845 = vmatpush.bf16.msra.mxu0 0
    %846 = vmatpush.bf16.msra.mxu0 0
    %847 = vmatpush.bf16.msra.mxu0 %v814
    %848 = vmatpush.bf16.msra.mxu0 %v813
    %849 = vmatmul.bf16.gmra.mxu0 %v818
    %v850 = vpop.f32.mrf.mxu0
    %v851 = vadd.f32 0.0, %v850
    %v852 = vpop.f32.mrf.mxu0
    %v853 = vadd.f32 0.0, %v852
    %854 = vmatmul.bf16.gmra.mxu0 %v821
    %v855 = vpop.f32.mrf.mxu0
    %v856 = vadd.f32 0.0, %v855
    %v857 = vpop.f32.mrf.mxu0
    %v858 = vadd.f32 0.0, %v857
    %859 = vmatmul.bf16.gmra.mxu0 %v824
    %v860 = vpop.f32.mrf.mxu0
    %v861 = vadd.f32 0.0, %v860
    %v862 = vpop.f32.mrf.mxu0
    %v863 = vadd.f32 0.0, %v862
    %864 = vmatmul.bf16.gmra.mxu0 %v827
    %v865 = vpop.f32.mrf.mxu0
    %v866 = vadd.f32 0.0, %v865
    %v867 = vpop.f32.mrf.mxu0
    %v868 = vadd.f32 0.0, %v867
    %869 = vmatmul.bf16.gmra.mxu0 %v830
    %v870 = vpop.f32.mrf.mxu0
    %v871 = vadd.f32 0.0, %v870
    %v872 = vpop.f32.mrf.mxu0
    %v873 = vadd.f32 0.0, %v872
    %874 = vmatmul.bf16.gmra.mxu0 %v833
    %v875 = vpop.f32.mrf.mxu0
    %v876 = vadd.f32 0.0, %v875
    %v877 = vpop.f32.mrf.mxu0
    %v878 = vadd.f32 0.0, %v877
    %879 = vmatmul.bf16.gmra.mxu0 %v836
    %v880 = vpop.f32.mrf.mxu0
    %v881 = vadd.f32 0.0, %v880
    %v882 = vpop.f32.mrf.mxu0
    %v883 = vadd.f32 0.0, %v882
    %884 = vmatmul.bf16.gmra.mxu0 %v839
    %v885 = vpop.f32.mrf.mxu0
    %v886 = vadd.f32 0.0, %v885
    %v887 = vpop.f32.mrf.mxu0
    %v888 = vadd.f32 0.0, %v887
    %889 = vdwg.mxu0
    %v890 = vadd.f32 %v761, %v851
    %v891 = vadd.f32 %v762, %v853
    %v892 = vadd.f32 %v763, %v856
    %v893 = vadd.f32 %v764, %v858
    %v894 = vadd.f32 %v765, %v861
    %v895 = vadd.f32 %v766, %v863
    %v896 = vadd.f32 %v767, %v866
    %v897 = vadd.f32 %v768, %v868
    %v898 = vadd.f32 %v769, %v871
    %v899 = vadd.f32 %v770, %v873
    %v900 = vadd.f32 %v771, %v876
    %v901 = vadd.f32 %v772, %v878
    %v902 = vadd.f32 %v773, %v881
    %v903 = vadd.f32 %v774, %v883
    %v904 = vadd.f32 %v775, %v886
    %v905 = vadd.f32 %v776, %v888
    %v906 = vld [vmem:[%s37 + $0x1] sm:$0xff]
    %v907 = vld [vmem:[%s37 + $0x9] sm:$0xff]
    %v908 = vld [vmem:[%s37 + $0x19] sm:$0xff]
    %v909 = vld [vmem:[%s37 + $0x21] sm:$0xff]
    %v910 = vld [vmem:[%s37 + $0x31] sm:$0xff]
    %v911 = vld [vmem:[%s37 + $0x39] sm:$0xff]
    %v912 = vld [vmem:[%s37 + $0x49] sm:$0xff]
    %v913 = vld [vmem:[%s37 + $0x51] sm:$0xff]
    %v914 = vld [vmem:[%s37 + $0x61] sm:$0xff]
    %v915 = vld [vmem:[%s37 + $0x69] sm:$0xff]
    %v916 = vld [vmem:[%s37 + $0x79] sm:$0xff]
    %v917 = vld [vmem:[%s37 + $0x81] sm:$0xff]
    %v918 = vld [vmem:[%s37 + $0x91] sm:$0xff]
    %v919 = vld [vmem:[%s37 + $0x99] sm:$0xff]
    %v920 = vld [vmem:[%s37 + $0xa9] sm:$0xff]
    %v921 = vld [vmem:[%s37 + $0xb1] sm:$0xff]
    %v922 = vpack.c.bf16 %v907, %v906
    %v923 = vpack.c.bf16 %v909, %v908
    %v924 = vpack.c.bf16 %v911, %v910
    %v925 = vpack.c.bf16 %v913, %v912
    %v926 = vpack.c.bf16 %v915, %v914
    %v927 = vpack.c.bf16 %v917, %v916
    %v928 = vpack.c.bf16 %v919, %v918
    %v929 = vpack.c.bf16 %v921, %v920
    %v930 = vld [vmem:[%s3 + $0x40] sm:$0xf]
    %v931 = vld [vmem:[%s3 + $0x44] sm:$0xf]
    %v932 = vld [vmem:[%s3 + $0x48] sm:$0xf]
    %v933 = vld [vmem:[%s3 + $0x4c] sm:$0xf]
    %v938 = vunpack.c.l.b16 %v930
    %v939 = vunpack.c.l.b16 %v931
    %v940 = vunpack.c.l.b16 %v932
    %v941 = vunpack.c.l.b16 %v933
    %v942 = vpack.c.b16 %v939, %v938
    %v943 = vpack.c.b16 %v941, %v940
    %v947 = vsel %vm28, %v922, 0
    %v950 = vsel %vm28, %v923, 0
    %v953 = vsel %vm28, %v924, 0
    %v956 = vsel %vm28, %v925, 0
    %v959 = vsel %vm28, %v926, 0
    %v962 = vsel %vm28, %v927, 0
    %v965 = vsel %vm28, %v928, 0
    %v968 = vsel %vm28, %v929, 0
    %970 = vmatpush.bf16.msra.mxu0 0
    %971 = vmatpush.bf16.msra.mxu0 0
    %972 = vmatpush.bf16.msra.mxu0 0
    %973 = vmatpush.bf16.msra.mxu0 0
    %974 = vmatpush.bf16.msra.mxu0 0
    %975 = vmatpush.bf16.msra.mxu0 0
    %976 = vmatpush.bf16.msra.mxu0 %v943
    %977 = vmatpush.bf16.msra.mxu0 %v942
    %978 = vmatmul.bf16.gmra.mxu0 %v947
    %v979 = vpop.f32.mrf.mxu0
    %v980 = vadd.f32 0.0, %v979
    %v981 = vpop.f32.mrf.mxu0
    %v982 = vadd.f32 0.0, %v981
    %983 = vmatmul.bf16.gmra.mxu0 %v950
    %v984 = vpop.f32.mrf.mxu0
    %v985 = vadd.f32 0.0, %v984
    %v986 = vpop.f32.mrf.mxu0
    %v987 = vadd.f32 0.0, %v986
    %988 = vmatmul.bf16.gmra.mxu0 %v953
    %v989 = vpop.f32.mrf.mxu0
    %v990 = vadd.f32 0.0, %v989
    %v991 = vpop.f32.mrf.mxu0
    %v992 = vadd.f32 0.0, %v991
    %993 = vmatmul.bf16.gmra.mxu0 %v956
    %v994 = vpop.f32.mrf.mxu0
    %v995 = vadd.f32 0.0, %v994
    %v996 = vpop.f32.mrf.mxu0
    %v997 = vadd.f32 0.0, %v996
    %998 = vmatmul.bf16.gmra.mxu0 %v959
    %v999 = vpop.f32.mrf.mxu0
    %v1000 = vadd.f32 0.0, %v999
    %v1001 = vpop.f32.mrf.mxu0
    %v1002 = vadd.f32 0.0, %v1001
    %1003 = vmatmul.bf16.gmra.mxu0 %v962
    %v1004 = vpop.f32.mrf.mxu0
    %v1005 = vadd.f32 0.0, %v1004
    %v1006 = vpop.f32.mrf.mxu0
    %v1007 = vadd.f32 0.0, %v1006
    %1008 = vmatmul.bf16.gmra.mxu0 %v965
    %v1009 = vpop.f32.mrf.mxu0
    %v1010 = vadd.f32 0.0, %v1009
    %v1011 = vpop.f32.mrf.mxu0
    %v1012 = vadd.f32 0.0, %v1011
    %1013 = vmatmul.bf16.gmra.mxu0 %v968
    %v1014 = vpop.f32.mrf.mxu0
    %v1015 = vadd.f32 0.0, %v1014
    %v1016 = vpop.f32.mrf.mxu0
    %v1017 = vadd.f32 0.0, %v1016
    %1018 = vdwg.mxu0
    %v1019 = vadd.f32 %v890, %v980
    %v1020 = vadd.f32 %v891, %v982
    %v1021 = vadd.f32 %v892, %v985
    %v1022 = vadd.f32 %v893, %v987
    %v1023 = vadd.f32 %v894, %v990
    %v1024 = vadd.f32 %v895, %v992
    %v1025 = vadd.f32 %v896, %v995
    %v1026 = vadd.f32 %v897, %v997
    %v1027 = vadd.f32 %v898, %v1000
    %v1028 = vadd.f32 %v899, %v1002
    %v1029 = vadd.f32 %v900, %v1005
    %v1030 = vadd.f32 %v901, %v1007
    %v1031 = vadd.f32 %v902, %v1010
    %v1032 = vadd.f32 %v903, %v1012
    %v1033 = vadd.f32 %v904, %v1015
    %v1034 = vadd.f32 %v905, %v1017
    %v1035 = vld [vmem:[%s37 + $0x2] sm:$0xff]
    %v1036 = vld [vmem:[%s37 + $0xa] sm:$0xff]
    %v1037 = vld [vmem:[%s37 + $0x1a] sm:$0xff]
    %v1038 = vld [vmem:[%s37 + $0x22] sm:$0xff]
    %v1039 = vld [vmem:[%s37 + $0x32] sm:$0xff]
    %v1040 = vld [vmem:[%s37 + $0x3a] sm:$0xff]
    %v1041 = vld [vmem:[%s37 + $0x4a] sm:$0xff]
    %v1042 = vld [vmem:[%s37 + $0x52] sm:$0xff]
    %v1043 = vld [vmem:[%s37 + $0x62] sm:$0xff]
    %v1044 = vld [vmem:[%s37 + $0x6a] sm:$0xff]
    %v1045 = vld [vmem:[%s37 + $0x7a] sm:$0xff]
    %v1046 = vld [vmem:[%s37 + $0x82] sm:$0xff]
    %v1047 = vld [vmem:[%s37 + $0x92] sm:$0xff]
    %v1048 = vld [vmem:[%s37 + $0x9a] sm:$0xff]
    %v1049 = vld [vmem:[%s37 + $0xaa] sm:$0xff]
    %v1050 = vld [vmem:[%s37 + $0xb2] sm:$0xff]
    %v1051 = vpack.c.bf16 %v1036, %v1035
    %v1052 = vpack.c.bf16 %v1038, %v1037
    %v1053 = vpack.c.bf16 %v1040, %v1039
    %v1054 = vpack.c.bf16 %v1042, %v1041
    %v1055 = vpack.c.bf16 %v1044, %v1043
    %v1056 = vpack.c.bf16 %v1046, %v1045
    %v1057 = vpack.c.bf16 %v1048, %v1047
    %v1058 = vpack.c.bf16 %v1050, %v1049
    %v1059 = vld [vmem:[%s3 + $0x50] sm:$0xf]
    %v1060 = vld [vmem:[%s3 + $0x54] sm:$0xf]
    %v1061 = vld [vmem:[%s3 + $0x58] sm:$0xf]
    %v1062 = vld [vmem:[%s3 + $0x5c] sm:$0xf]
    %v1067 = vunpack.c.l.b16 %v1059
    %v1068 = vunpack.c.l.b16 %v1060
    %v1069 = vunpack.c.l.b16 %v1061
    %v1070 = vunpack.c.l.b16 %v1062
    %v1071 = vpack.c.b16 %v1068, %v1067
    %v1072 = vpack.c.b16 %v1070, %v1069
    %v1076 = vsel %vm28, %v1051, 0
    %v1079 = vsel %vm28, %v1052, 0
    %v1082 = vsel %vm28, %v1053, 0
    %v1085 = vsel %vm28, %v1054, 0
    %v1088 = vsel %vm28, %v1055, 0
    %v1091 = vsel %vm28, %v1056, 0
    %v1094 = vsel %vm28, %v1057, 0
    %v1097 = vsel %vm28, %v1058, 0
    %1099 = vmatpush.bf16.msra.mxu0 0
    %1100 = vmatpush.bf16.msra.mxu0 0
    %1101 = vmatpush.bf16.msra.mxu0 0
    %1102 = vmatpush.bf16.msra.mxu0 0
    %1103 = vmatpush.bf16.msra.mxu0 0
    %1104 = vmatpush.bf16.msra.mxu0 0
    %1105 = vmatpush.bf16.msra.mxu0 %v1072
    %1106 = vmatpush.bf16.msra.mxu0 %v1071
    %1107 = vmatmul.bf16.gmra.mxu0 %v1076
    %v1108 = vpop.f32.mrf.mxu0
    %v1109 = vadd.f32 0.0, %v1108
    %v1110 = vpop.f32.mrf.mxu0
    %v1111 = vadd.f32 0.0, %v1110
    %1112 = vmatmul.bf16.gmra.mxu0 %v1079
    %v1113 = vpop.f32.mrf.mxu0
    %v1114 = vadd.f32 0.0, %v1113
    %v1115 = vpop.f32.mrf.mxu0
    %v1116 = vadd.f32 0.0, %v1115
    %1117 = vmatmul.bf16.gmra.mxu0 %v1082
    %v1118 = vpop.f32.mrf.mxu0
    %v1119 = vadd.f32 0.0, %v1118
    %v1120 = vpop.f32.mrf.mxu0
    %v1121 = vadd.f32 0.0, %v1120
    %1122 = vmatmul.bf16.gmra.mxu0 %v1085
    %v1123 = vpop.f32.mrf.mxu0
    %v1124 = vadd.f32 0.0, %v1123
    %v1125 = vpop.f32.mrf.mxu0
    %v1126 = vadd.f32 0.0, %v1125
    %1127 = vmatmul.bf16.gmra.mxu0 %v1088
    %v1128 = vpop.f32.mrf.mxu0
    %v1129 = vadd.f32 0.0, %v1128
    %v1130 = vpop.f32.mrf.mxu0
    %v1131 = vadd.f32 0.0, %v1130
    %1132 = vmatmul.bf16.gmra.mxu0 %v1091
    %v1133 = vpop.f32.mrf.mxu0
    %v1134 = vadd.f32 0.0, %v1133
    %v1135 = vpop.f32.mrf.mxu0
    %v1136 = vadd.f32 0.0, %v1135
    %1137 = vmatmul.bf16.gmra.mxu0 %v1094
    %v1138 = vpop.f32.mrf.mxu0
    %v1139 = vadd.f32 0.0, %v1138
    %v1140 = vpop.f32.mrf.mxu0
    %v1141 = vadd.f32 0.0, %v1140
    %1142 = vmatmul.bf16.gmra.mxu0 %v1097
    %v1143 = vpop.f32.mrf.mxu0
    %v1144 = vadd.f32 0.0, %v1143
    %v1145 = vpop.f32.mrf.mxu0
    %v1146 = vadd.f32 0.0, %v1145
    %1147 = vdwg.mxu0
    %v1148 = vadd.f32 %v1019, %v1109
    %v1149 = vadd.f32 %v1020, %v1111
    %v1150 = vadd.f32 %v1021, %v1114
    %v1151 = vadd.f32 %v1022, %v1116
    %v1152 = vadd.f32 %v1023, %v1119
    %v1153 = vadd.f32 %v1024, %v1121
    %v1154 = vadd.f32 %v1025, %v1124
    %v1155 = vadd.f32 %v1026, %v1126
    %v1156 = vadd.f32 %v1027, %v1129
    %v1157 = vadd.f32 %v1028, %v1131
    %v1158 = vadd.f32 %v1029, %v1134
    %v1159 = vadd.f32 %v1030, %v1136
    %v1160 = vadd.f32 %v1031, %v1139
    %v1161 = vadd.f32 %v1032, %v1141
    %v1162 = vadd.f32 %v1033, %v1144
    %v1163 = vadd.f32 %v1034, %v1146
    %s1164 = scalar_lea.vmem [#allocation2], 48
    %v1165 = vld [vmem:[%s1164] sm:$0xff]
    %v1166 = vld [vmem:[%s1164 + $0x8] sm:$0xff]
    %v1167 = vld [vmem:[%s1164 + $0x18] sm:$0xff]
    %v1168 = vld [vmem:[%s1164 + $0x20] sm:$0xff]
    %v1169 = vld [vmem:[%s1164 + $0x30] sm:$0xff]
    %v1170 = vld [vmem:[%s1164 + $0x38] sm:$0xff]
    %v1171 = vld [vmem:[%s1164 + $0x48] sm:$0xff]
    %v1172 = vld [vmem:[%s1164 + $0x50] sm:$0xff]
    %v1173 = vld [vmem:[%s1164 + $0x60] sm:$0xff]
    %v1174 = vld [vmem:[%s1164 + $0x68] sm:$0xff]
    %v1175 = vld [vmem:[%s1164 + $0x78] sm:$0xff]
    %v1176 = vld [vmem:[%s1164 + $0x80] sm:$0xff]
    %v1177 = vld [vmem:[%s1164 + $0x90] sm:$0xff]
    %v1178 = vld [vmem:[%s1164 + $0x98] sm:$0xff]
    %v1179 = vld [vmem:[%s1164 + $0xa8] sm:$0xff]
    %v1180 = vld [vmem:[%s1164 + $0xb0] sm:$0xff]
    %v1181 = vpack.c.bf16 %v1166, %v1165
    %v1182 = vpack.c.bf16 %v1168, %v1167
    %v1183 = vpack.c.bf16 %v1170, %v1169
    %v1184 = vpack.c.bf16 %v1172, %v1171
    %v1185 = vpack.c.bf16 %v1174, %v1173
    %v1186 = vpack.c.bf16 %v1176, %v1175
    %v1187 = vpack.c.bf16 %v1178, %v1177
    %v1188 = vpack.c.bf16 %v1180, %v1179
    %v1189 = vld [vmem:[%s3 + $0x60] sm:$0xf]
    %v1190 = vld [vmem:[%s3 + $0x64] sm:$0xf]
    %v1191 = vld [vmem:[%s3 + $0x68] sm:$0xf]
    %v1192 = vld [vmem:[%s3 + $0x6c] sm:$0xf]
    %v1197 = vunpack.c.l.b16 %v1189
    %v1198 = vunpack.c.l.b16 %v1190
    %v1199 = vunpack.c.l.b16 %v1191
    %v1200 = vunpack.c.l.b16 %v1192
    %v1201 = vpack.c.b16 %v1198, %v1197
    %v1202 = vpack.c.b16 %v1200, %v1199
    %v1206 = vsel %vm28, %v1181, 0
    %v1209 = vsel %vm28, %v1182, 0
    %v1212 = vsel %vm28, %v1183, 0
    %v1215 = vsel %vm28, %v1184, 0
    %v1218 = vsel %vm28, %v1185, 0
    %v1221 = vsel %vm28, %v1186, 0
    %v1224 = vsel %vm28, %v1187, 0
    %v1227 = vsel %vm28, %v1188, 0
    %1229 = vmatpush.bf16.msra.mxu0 0
    %1230 = vmatpush.bf16.msra.mxu0 0
    %1231 = vmatpush.bf16.msra.mxu0 0
    %1232 = vmatpush.bf16.msra.mxu0 0
    %1233 = vmatpush.bf16.msra.mxu0 0
    %1234 = vmatpush.bf16.msra.mxu0 0
    %1235 = vmatpush.bf16.msra.mxu0 %v1202
    %1236 = vmatpush.bf16.msra.mxu0 %v1201
    %1237 = vmatmul.bf16.gmra.mxu0 %v1206
    %v1238 = vpop.f32.mrf.mxu0
    %v1239 = vadd.f32 0.0, %v1238
    %v1240 = vpop.f32.mrf.mxu0
    %v1241 = vadd.f32 0.0, %v1240
    %1242 = vmatmul.bf16.gmra.mxu0 %v1209
    %v1243 = vpop.f32.mrf.mxu0
    %v1244 = vadd.f32 0.0, %v1243
    %v1245 = vpop.f32.mrf.mxu0
    %v1246 = vadd.f32 0.0, %v1245
    %1247 = vmatmul.bf16.gmra.mxu0 %v1212
    %v1248 = vpop.f32.mrf.mxu0
    %v1249 = vadd.f32 0.0, %v1248
    %v1250 = vpop.f32.mrf.mxu0
    %v1251 = vadd.f32 0.0, %v1250
    %1252 = vmatmul.bf16.gmra.mxu0 %v1215
    %v1253 = vpop.f32.mrf.mxu0
    %v1254 = vadd.f32 0.0, %v1253
    %v1255 = vpop.f32.mrf.mxu0
    %v1256 = vadd.f32 0.0, %v1255
    %1257 = vmatmul.bf16.gmra.mxu0 %v1218
    %v1258 = vpop.f32.mrf.mxu0
    %v1259 = vadd.f32 0.0, %v1258
    %v1260 = vpop.f32.mrf.mxu0
    %v1261 = vadd.f32 0.0, %v1260
    %1262 = vmatmul.bf16.gmra.mxu0 %v1221
    %v1263 = vpop.f32.mrf.mxu0
    %v1264 = vadd.f32 0.0, %v1263
    %v1265 = vpop.f32.mrf.mxu0
    %v1266 = vadd.f32 0.0, %v1265
    %1267 = vmatmul.bf16.gmra.mxu0 %v1224
    %v1268 = vpop.f32.mrf.mxu0
    %v1269 = vadd.f32 0.0, %v1268
    %v1270 = vpop.f32.mrf.mxu0
    %v1271 = vadd.f32 0.0, %v1270
    %1272 = vmatmul.bf16.gmra.mxu0 %v1227
    %v1273 = vpop.f32.mrf.mxu0
    %v1274 = vadd.f32 0.0, %v1273
    %v1275 = vpop.f32.mrf.mxu0
    %v1276 = vadd.f32 0.0, %v1275
    %1277 = vdwg.mxu0
    %v1278 = vadd.f32 %v1148, %v1239
    %v1279 = vadd.f32 %v1149, %v1241
    %v1280 = vadd.f32 %v1150, %v1244
    %v1281 = vadd.f32 %v1151, %v1246
    %v1282 = vadd.f32 %v1152, %v1249
    %v1283 = vadd.f32 %v1153, %v1251
    %v1284 = vadd.f32 %v1154, %v1254
    %v1285 = vadd.f32 %v1155, %v1256
    %v1286 = vadd.f32 %v1156, %v1259
    %v1287 = vadd.f32 %v1157, %v1261
    %v1288 = vadd.f32 %v1158, %v1264
    %v1289 = vadd.f32 %v1159, %v1266
    %v1290 = vadd.f32 %v1160, %v1269
    %v1291 = vadd.f32 %v1161, %v1271
    %v1292 = vadd.f32 %v1162, %v1274
    %v1293 = vadd.f32 %v1163, %v1276
    %v1294 = vld [vmem:[%s1164 + $0x1] sm:$0xff]
    %v1295 = vld [vmem:[%s1164 + $0x9] sm:$0xff]
    %v1296 = vld [vmem:[%s1164 + $0x19] sm:$0xff]
    %v1297 = vld [vmem:[%s1164 + $0x21] sm:$0xff]
    %v1298 = vld [vmem:[%s1164 + $0x31] sm:$0xff]
    %v1299 = vld [vmem:[%s1164 + $0x39] sm:$0xff]
    %v1300 = vld [vmem:[%s1164 + $0x49] sm:$0xff]
    %v1301 = vld [vmem:[%s1164 + $0x51] sm:$0xff]
    %v1302 = vld [vmem:[%s1164 + $0x61] sm:$0xff]
    %v1303 = vld [vmem:[%s1164 + $0x69] sm:$0xff]
    %v1304 = vld [vmem:[%s1164 + $0x79] sm:$0xff]
    %v1305 = vld [vmem:[%s1164 + $0x81] sm:$0xff]
    %v1306 = vld [vmem:[%s1164 + $0x91] sm:$0xff]
    %v1307 = vld [vmem:[%s1164 + $0x99] sm:$0xff]
    %v1308 = vld [vmem:[%s1164 + $0xa9] sm:$0xff]
    %v1309 = vld [vmem:[%s1164 + $0xb1] sm:$0xff]
    %v1310 = vpack.c.bf16 %v1295, %v1294
    %v1311 = vpack.c.bf16 %v1297, %v1296
    %v1312 = vpack.c.bf16 %v1299, %v1298
    %v1313 = vpack.c.bf16 %v1301, %v1300
    %v1314 = vpack.c.bf16 %v1303, %v1302
    %v1315 = vpack.c.bf16 %v1305, %v1304
    %v1316 = vpack.c.bf16 %v1307, %v1306
    %v1317 = vpack.c.bf16 %v1309, %v1308
    %v1318 = vld [vmem:[%s3 + $0x70] sm:$0xf]
    %v1319 = vld [vmem:[%s3 + $0x74] sm:$0xf]
    %v1320 = vld [vmem:[%s3 + $0x78] sm:$0xf]
    %v1321 = vld [vmem:[%s3 + $0x7c] sm:$0xf]
    %v1326 = vunpack.c.l.b16 %v1318
    %v1327 = vunpack.c.l.b16 %v1319
    %v1328 = vunpack.c.l.b16 %v1320
    %v1329 = vunpack.c.l.b16 %v1321
    %v1330 = vpack.c.b16 %v1327, %v1326
    %v1331 = vpack.c.b16 %v1329, %v1328
    %v1335 = vsel %vm28, %v1310, 0
    %v1338 = vsel %vm28, %v1311, 0
    %v1341 = vsel %vm28, %v1312, 0
    %v1344 = vsel %vm28, %v1313, 0
    %v1347 = vsel %vm28, %v1314, 0
    %v1350 = vsel %vm28, %v1315, 0
    %v1353 = vsel %vm28, %v1316, 0
    %v1356 = vsel %vm28, %v1317, 0
    %1358 = vmatpush.bf16.msra.mxu0 0
    %1359 = vmatpush.bf16.msra.mxu0 0
    %1360 = vmatpush.bf16.msra.mxu0 0
    %1361 = vmatpush.bf16.msra.mxu0 0
    %1362 = vmatpush.bf16.msra.mxu0 0
    %1363 = vmatpush.bf16.msra.mxu0 0
    %1364 = vmatpush.bf16.msra.mxu0 %v1331
    %1365 = vmatpush.bf16.msra.mxu0 %v1330
    %1366 = vmatmul.bf16.gmra.mxu0 %v1335
    %v1367 = vpop.f32.mrf.mxu0
    %v1368 = vadd.f32 0.0, %v1367
    %v1369 = vpop.f32.mrf.mxu0
    %v1370 = vadd.f32 0.0, %v1369
    %1371 = vmatmul.bf16.gmra.mxu0 %v1338
    %v1372 = vpop.f32.mrf.mxu0
    %v1373 = vadd.f32 0.0, %v1372
    %v1374 = vpop.f32.mrf.mxu0
    %v1375 = vadd.f32 0.0, %v1374
    %1376 = vmatmul.bf16.gmra.mxu0 %v1341
    %v1377 = vpop.f32.mrf.mxu0
    %v1378 = vadd.f32 0.0, %v1377
    %v1379 = vpop.f32.mrf.mxu0
    %v1380 = vadd.f32 0.0, %v1379
    %1381 = vmatmul.bf16.gmra.mxu0 %v1344
    %v1382 = vpop.f32.mrf.mxu0
    %v1383 = vadd.f32 0.0, %v1382
    %v1384 = vpop.f32.mrf.mxu0
    %v1385 = vadd.f32 0.0, %v1384
    %1386 = vmatmul.bf16.gmra.mxu0 %v1347
    %v1387 = vpop.f32.mrf.mxu0
    %v1388 = vadd.f32 0.0, %v1387
    %v1389 = vpop.f32.mrf.mxu0
    %v1390 = vadd.f32 0.0, %v1389
    %1391 = vmatmul.bf16.gmra.mxu0 %v1350
    %v1392 = vpop.f32.mrf.mxu0
    %v1393 = vadd.f32 0.0, %v1392
    %v1394 = vpop.f32.mrf.mxu0
    %v1395 = vadd.f32 0.0, %v1394
    %1396 = vmatmul.bf16.gmra.mxu0 %v1353
    %v1397 = vpop.f32.mrf.mxu0
    %v1398 = vadd.f32 0.0, %v1397
    %v1399 = vpop.f32.mrf.mxu0
    %v1400 = vadd.f32 0.0, %v1399
    %1401 = vmatmul.bf16.gmra.mxu0 %v1356
    %v1402 = vpop.f32.mrf.mxu0
    %v1403 = vadd.f32 0.0, %v1402
    %v1404 = vpop.f32.mrf.mxu0
    %v1405 = vadd.f32 0.0, %v1404
    %1406 = vdwg.mxu0
    %v1407 = vadd.f32 %v1278, %v1368
    %v1408 = vadd.f32 %v1279, %v1370
    %v1409 = vadd.f32 %v1280, %v1373
    %v1410 = vadd.f32 %v1281, %v1375
    %v1411 = vadd.f32 %v1282, %v1378
    %v1412 = vadd.f32 %v1283, %v1380
    %v1413 = vadd.f32 %v1284, %v1383
    %v1414 = vadd.f32 %v1285, %v1385
    %v1415 = vadd.f32 %v1286, %v1388
    %v1416 = vadd.f32 %v1287, %v1390
    %v1417 = vadd.f32 %v1288, %v1393
    %v1418 = vadd.f32 %v1289, %v1395
    %v1419 = vadd.f32 %v1290, %v1398
    %v1420 = vadd.f32 %v1291, %v1400
    %v1421 = vadd.f32 %v1292, %v1403
    %v1422 = vadd.f32 %v1293, %v1405
    %v1423 = vld [vmem:[%s1164 + $0x2] sm:$0xff]
    %v1424 = vld [vmem:[%s1164 + $0xa] sm:$0xff]
    %v1425 = vld [vmem:[%s1164 + $0x1a] sm:$0xff]
    %v1426 = vld [vmem:[%s1164 + $0x22] sm:$0xff]
    %v1427 = vld [vmem:[%s1164 + $0x32] sm:$0xff]
    %v1428 = vld [vmem:[%s1164 + $0x3a] sm:$0xff]
    %v1429 = vld [vmem:[%s1164 + $0x4a] sm:$0xff]
    %v1430 = vld [vmem:[%s1164 + $0x52] sm:$0xff]
    %v1431 = vld [vmem:[%s1164 + $0x62] sm:$0xff]
    %v1432 = vld [vmem:[%s1164 + $0x6a] sm:$0xff]
    %v1433 = vld [vmem:[%s1164 + $0x7a] sm:$0xff]
    %v1434 = vld [vmem:[%s1164 + $0x82] sm:$0xff]
    %v1435 = vld [vmem:[%s1164 + $0x92] sm:$0xff]
    %v1436 = vld [vmem:[%s1164 + $0x9a] sm:$0xff]
    %v1437 = vld [vmem:[%s1164 + $0xaa] sm:$0xff]
    %v1438 = vld [vmem:[%s1164 + $0xb2] sm:$0xff]
    %v1439 = vpack.c.bf16 %v1424, %v1423
    %v1440 = vpack.c.bf16 %v1426, %v1425
    %v1441 = vpack.c.bf16 %v1428, %v1427
    %v1442 = vpack.c.bf16 %v1430, %v1429
    %v1443 = vpack.c.bf16 %v1432, %v1431
    %v1444 = vpack.c.bf16 %v1434, %v1433
    %v1445 = vpack.c.bf16 %v1436, %v1435
    %v1446 = vpack.c.bf16 %v1438, %v1437
    %v1447 = vld [vmem:[%s3 + $0x80] sm:$0xf]
    %v1448 = vld [vmem:[%s3 + $0x84] sm:$0xf]
    %v1449 = vld [vmem:[%s3 + $0x88] sm:$0xf]
    %v1450 = vld [vmem:[%s3 + $0x8c] sm:$0xf]
    %v1455 = vunpack.c.l.b16 %v1447
    %v1456 = vunpack.c.l.b16 %v1448
    %v1457 = vunpack.c.l.b16 %v1449
    %v1458 = vunpack.c.l.b16 %v1450
    %v1459 = vpack.c.b16 %v1456, %v1455
    %v1460 = vpack.c.b16 %v1458, %v1457
    %v1464 = vsel %vm28, %v1439, 0
    %v1467 = vsel %vm28, %v1440, 0
    %v1470 = vsel %vm28, %v1441, 0
    %v1473 = vsel %vm28, %v1442, 0
    %v1476 = vsel %vm28, %v1443, 0
    %v1479 = vsel %vm28, %v1444, 0
    %v1482 = vsel %vm28, %v1445, 0
    %v1485 = vsel %vm28, %v1446, 0
    %1487 = vmatpush.bf16.msra.mxu0 0
    %1488 = vmatpush.bf16.msra.mxu0 0
    %1489 = vmatpush.bf16.msra.mxu0 0
    %1490 = vmatpush.bf16.msra.mxu0 0
    %1491 = vmatpush.bf16.msra.mxu0 0
    %1492 = vmatpush.bf16.msra.mxu0 0
    %1493 = vmatpush.bf16.msra.mxu0 %v1460
    %1494 = vmatpush.bf16.msra.mxu0 %v1459
    %1495 = vmatmul.bf16.gmra.mxu0 %v1464
    %v1496 = vpop.f32.mrf.mxu0
    %v1497 = vadd.f32 0.0, %v1496
    %v1498 = vpop.f32.mrf.mxu0
    %v1499 = vadd.f32 0.0, %v1498
    %1500 = vmatmul.bf16.gmra.mxu0 %v1467
    %v1501 = vpop.f32.mrf.mxu0
    %v1502 = vadd.f32 0.0, %v1501
    %v1503 = vpop.f32.mrf.mxu0
    %v1504 = vadd.f32 0.0, %v1503
    %1505 = vmatmul.bf16.gmra.mxu0 %v1470
    %v1506 = vpop.f32.mrf.mxu0
    %v1507 = vadd.f32 0.0, %v1506
    %v1508 = vpop.f32.mrf.mxu0
    %v1509 = vadd.f32 0.0, %v1508
    %1510 = vmatmul.bf16.gmra.mxu0 %v1473
    %v1511 = vpop.f32.mrf.mxu0
    %v1512 = vadd.f32 0.0, %v1511
    %v1513 = vpop.f32.mrf.mxu0
    %v1514 = vadd.f32 0.0, %v1513
    %1515 = vmatmul.bf16.gmra.mxu0 %v1476
    %v1516 = vpop.f32.mrf.mxu0
    %v1517 = vadd.f32 0.0, %v1516
    %v1518 = vpop.f32.mrf.mxu0
    %v1519 = vadd.f32 0.0, %v1518
    %1520 = vmatmul.bf16.gmra.mxu0 %v1479
    %v1521 = vpop.f32.mrf.mxu0
    %v1522 = vadd.f32 0.0, %v1521
    %v1523 = vpop.f32.mrf.mxu0
    %v1524 = vadd.f32 0.0, %v1523
    %1525 = vmatmul.bf16.gmra.mxu0 %v1482
    %v1526 = vpop.f32.mrf.mxu0
    %v1527 = vadd.f32 0.0, %v1526
    %v1528 = vpop.f32.mrf.mxu0
    %v1529 = vadd.f32 0.0, %v1528
    %1530 = vmatmul.bf16.gmra.mxu0 %v1485
    %v1531 = vpop.f32.mrf.mxu0
    %v1532 = vadd.f32 0.0, %v1531
    %v1533 = vpop.f32.mrf.mxu0
    %v1534 = vadd.f32 0.0, %v1533
    %1535 = vdwg.mxu0
    %v1536 = vadd.f32 %v1407, %v1497
    %v1537 = vadd.f32 %v1408, %v1499
    %v1538 = vadd.f32 %v1409, %v1502
    %v1539 = vadd.f32 %v1410, %v1504
    %v1540 = vadd.f32 %v1411, %v1507
    %v1541 = vadd.f32 %v1412, %v1509
    %v1542 = vadd.f32 %v1413, %v1512
    %v1543 = vadd.f32 %v1414, %v1514
    %v1544 = vadd.f32 %v1415, %v1517
    %v1545 = vadd.f32 %v1416, %v1519
    %v1546 = vadd.f32 %v1417, %v1522
    %v1547 = vadd.f32 %v1418, %v1524
    %v1548 = vadd.f32 %v1419, %v1527
    %v1549 = vadd.f32 %v1420, %v1529
    %v1550 = vadd.f32 %v1421, %v1532
    %v1551 = vadd.f32 %v1422, %v1534
    %v1552 = vld [vmem:[%s4] sm:$0x1]
    %v1554 = vperm.slane %v1552, 0
    %v1556 = vadd.f32 %v1536, %v1554
    %v1557 = vadd.f32 %v1537, %v1554
    %v1558 = vadd.f32 %v1538, %v1554
    %v1559 = vadd.f32 %v1539, %v1554
    %v1560 = vadd.f32 %v1540, %v1554
    %v1561 = vadd.f32 %v1541, %v1554
    %v1562 = vadd.f32 %v1542, %v1554
    %v1563 = vadd.f32 %v1543, %v1554
    %v1564 = vadd.f32 %v1544, %v1554
    %v1565 = vadd.f32 %v1545, %v1554
    %v1566 = vadd.f32 %v1546, %v1554
    %v1567 = vadd.f32 %v1547, %v1554
    %v1568 = vadd.f32 %v1548, %v1554
    %v1569 = vadd.f32 %v1549, %v1554
    %v1570 = vadd.f32 %v1550, %v1554
    %v1571 = vadd.f32 %v1551, %v1554
    %vm1572 = vcmp.gt.f32.partialorder %v1556, 0.0
    %vm1573 = vcmp.gt.f32.partialorder %v1557, 0.0
    %vm1574 = vcmp.gt.f32.partialorder %v1558, 0.0
    %vm1575 = vcmp.gt.f32.partialorder %v1559, 0.0
    %vm1576 = vcmp.gt.f32.partialorder %v1560, 0.0
    %vm1577 = vcmp.gt.f32.partialorder %v1561, 0.0
    %vm1578 = vcmp.gt.f32.partialorder %v1562, 0.0
    %vm1579 = vcmp.gt.f32.partialorder %v1563, 0.0
    %vm1580 = vcmp.gt.f32.partialorder %v1564, 0.0
    %vm1581 = vcmp.gt.f32.partialorder %v1565, 0.0
    %vm1582 = vcmp.gt.f32.partialorder %v1566, 0.0
    %vm1583 = vcmp.gt.f32.partialorder %v1567, 0.0
    %vm1584 = vcmp.gt.f32.partialorder %v1568, 0.0
    %vm1585 = vcmp.gt.f32.partialorder %v1569, 0.0
    %vm1586 = vcmp.gt.f32.partialorder %v1570, 0.0
    %vm1587 = vcmp.gt.f32.partialorder %v1571, 0.0
    %v1588 = vmul.f32 %v1556, 0.01
    %v1589 = vmul.f32 %v1557, 0.01
    %v1590 = vmul.f32 %v1558, 0.01
    %v1591 = vmul.f32 %v1559, 0.01
    %v1592 = vmul.f32 %v1560, 0.01
    %v1593 = vmul.f32 %v1561, 0.01
    %v1594 = vmul.f32 %v1562, 0.01
    %v1595 = vmul.f32 %v1563, 0.01
    %v1596 = vmul.f32 %v1564, 0.01
    %v1597 = vmul.f32 %v1565, 0.01
    %v1598 = vmul.f32 %v1566, 0.01
    %v1599 = vmul.f32 %v1567, 0.01
    %v1600 = vmul.f32 %v1568, 0.01
    %v1601 = vmul.f32 %v1569, 0.01
    %v1602 = vmul.f32 %v1570, 0.01
    %v1603 = vmul.f32 %v1571, 0.01
    %v1604 = vsel %vm1572, %v1556, %v1588
    %v1605 = vsel %vm1573, %v1557, %v1589
    %v1606 = vsel %vm1574, %v1558, %v1590
    %v1607 = vsel %vm1575, %v1559, %v1591
    %v1608 = vsel %vm1576, %v1560, %v1592
    %v1609 = vsel %vm1577, %v1561, %v1593
    %v1610 = vsel %vm1578, %v1562, %v1594
    %v1611 = vsel %vm1579, %v1563, %v1595
    %v1612 = vsel %vm1580, %v1564, %v1596
    %v1613 = vsel %vm1581, %v1565, %v1597
    %v1614 = vsel %vm1582, %v1566, %v1598
    %v1615 = vsel %vm1583, %v1567, %v1599
    %v1616 = vsel %vm1584, %v1568, %v1600
    %v1617 = vsel %vm1585, %v1569, %v1601
    %v1618 = vsel %vm1586, %v1570, %v1602
    %v1619 = vsel %vm1587, %v1571, %v1603
    %1620 = vst.msk [vmem:[%s37 + $0x1] sm:$0xff] %vm28, %v1604
    %1621 = vst.msk [vmem:[%s37 + $0x9] sm:$0xff] %vm28, %v1605
    %1622 = vst.msk [vmem:[%s37 + $0x19] sm:$0xff] %vm28, %v1606
    %1623 = vst.msk [vmem:[%s37 + $0x21] sm:$0xff] %vm28, %v1607
    %1624 = vst.msk [vmem:[%s37 + $0x31] sm:$0xff] %vm28, %v1608
    %1625 = vst.msk [vmem:[%s37 + $0x39] sm:$0xff] %vm28, %v1609
    %1626 = vst.msk [vmem:[%s37 + $0x49] sm:$0xff] %vm28, %v1610
    %1627 = vst.msk [vmem:[%s37 + $0x51] sm:$0xff] %vm28, %v1611
    %1628 = vst.msk [vmem:[%s37 + $0x61] sm:$0xff] %vm28, %v1612
    %1629 = vst.msk [vmem:[%s37 + $0x69] sm:$0xff] %vm28, %v1613
    %1630 = vst.msk [vmem:[%s37 + $0x79] sm:$0xff] %vm28, %v1614
    %1631 = vst.msk [vmem:[%s37 + $0x81] sm:$0xff] %vm28, %v1615
    %1632 = vst.msk [vmem:[%s37 + $0x91] sm:$0xff] %vm28, %v1616
    %1633 = vst.msk [vmem:[%s37 + $0x99] sm:$0xff] %vm28, %v1617
    %1634 = vst.msk [vmem:[%s37 + $0xa9] sm:$0xff] %vm28, %v1618
    %1635 = vst.msk [vmem:[%s37 + $0xb1] sm:$0xff] %vm28, %v1619
    %v1636 = vld [vmem:[#allocation2] sm:$0xff]
    %v1637 = vld [vmem:[#allocation2 + $0x8] sm:$0xff]
    %v1638 = vld [vmem:[#allocation2 + $0x18] sm:$0xff]
    %v1639 = vld [vmem:[#allocation2 + $0x20] sm:$0xff]
    %v1640 = vld [vmem:[#allocation2 + $0x30] sm:$0xff]
    %v1641 = vld [vmem:[#allocation2 + $0x38] sm:$0xff]
    %v1642 = vld [vmem:[#allocation2 + $0x48] sm:$0xff]
    %v1643 = vld [vmem:[#allocation2 + $0x50] sm:$0xff]
    %v1644 = vld [vmem:[#allocation2 + $0x60] sm:$0xff]
    %v1645 = vld [vmem:[#allocation2 + $0x68] sm:$0xff]
    %v1646 = vld [vmem:[#allocation2 + $0x78] sm:$0xff]
    %v1647 = vld [vmem:[#allocation2 + $0x80] sm:$0xff]
    %v1648 = vld [vmem:[#allocation2 + $0x90] sm:$0xff]
    %v1649 = vld [vmem:[#allocation2 + $0x98] sm:$0xff]
    %v1650 = vld [vmem:[#allocation2 + $0xa8] sm:$0xff]
    %v1651 = vld [vmem:[#allocation2 + $0xb0] sm:$0xff]
    %v1652 = vpack.c.bf16 %v1637, %v1636
    %v1653 = vpack.c.bf16 %v1639, %v1638
    %v1654 = vpack.c.bf16 %v1641, %v1640
    %v1655 = vpack.c.bf16 %v1643, %v1642
    %v1656 = vpack.c.bf16 %v1645, %v1644
    %v1657 = vpack.c.bf16 %v1647, %v1646
    %v1658 = vpack.c.bf16 %v1649, %v1648
    %v1659 = vpack.c.bf16 %v1651, %v1650
    %v1660 = vld [vmem:[%s5] sm:$0xf]
    %v1661 = vld [vmem:[%s5 + $0x4] sm:$0xf]
    %v1662 = vld [vmem:[%s5 + $0x8] sm:$0xf]
    %v1663 = vld [vmem:[%s5 + $0xc] sm:$0xf]
    %v1664 = vld [vmem:[#allocation2 + $0x1] sm:$0xff]
    %v1665 = vld [vmem:[#allocation2 + $0x9] sm:$0xff]
    %v1666 = vld [vmem:[#allocation2 + $0x19] sm:$0xff]
    %v1667 = vld [vmem:[#allocation2 + $0x21] sm:$0xff]
    %v1668 = vld [vmem:[#allocation2 + $0x31] sm:$0xff]
    %v1669 = vld [vmem:[#allocation2 + $0x39] sm:$0xff]
    %v1670 = vld [vmem:[#allocation2 + $0x49] sm:$0xff]
    %v1671 = vld [vmem:[#allocation2 + $0x51] sm:$0xff]
    %v1672 = vld [vmem:[#allocation2 + $0x61] sm:$0xff]
    %v1673 = vld [vmem:[#allocation2 + $0x69] sm:$0xff]
    %v1674 = vld [vmem:[#allocation2 + $0x79] sm:$0xff]
    %v1675 = vld [vmem:[#allocation2 + $0x81] sm:$0xff]
    %v1676 = vld [vmem:[#allocation2 + $0x91] sm:$0xff]
    %v1677 = vld [vmem:[#allocation2 + $0x99] sm:$0xff]
    %v1678 = vld [vmem:[#allocation2 + $0xa9] sm:$0xff]
    %v1679 = vld [vmem:[#allocation2 + $0xb1] sm:$0xff]
    %v1680 = vpack.c.bf16 %v1665, %v1664
    %v1681 = vpack.c.bf16 %v1667, %v1666
    %v1682 = vpack.c.bf16 %v1669, %v1668
    %v1683 = vpack.c.bf16 %v1671, %v1670
    %v1684 = vpack.c.bf16 %v1673, %v1672
    %v1685 = vpack.c.bf16 %v1675, %v1674
    %v1686 = vpack.c.bf16 %v1677, %v1676
    %v1687 = vpack.c.bf16 %v1679, %v1678
    %v1688 = vld [vmem:[%s5 + $0x10] sm:$0xf]
    %v1689 = vld [vmem:[%s5 + $0x14] sm:$0xf]
    %v1690 = vld [vmem:[%s5 + $0x18] sm:$0xf]
    %v1691 = vld [vmem:[%s5 + $0x1c] sm:$0xf]
    %v1696 = vunpack.c.l.b16 %v1688
    %v1697 = vunpack.c.l.b16 %v1689
    %v1698 = vunpack.c.l.b16 %v1690
    %v1699 = vunpack.c.l.b16 %v1691
    %v1700 = vpack.c.b16 %v1697, %v1696
    %v1701 = vpack.c.b16 %v1699, %v1698
    %v1705 = vsel %vm28, %v1680, 0
    %v1708 = vsel %vm28, %v1681, 0
    %v1711 = vsel %vm28, %v1682, 0
    %v1714 = vsel %vm28, %v1683, 0
    %v1717 = vsel %vm28, %v1684, 0
    %v1720 = vsel %vm28, %v1685, 0
    %v1723 = vsel %vm28, %v1686, 0
    %v1726 = vsel %vm28, %v1687, 0
    %1728 = vmatpush.bf16.msra.mxu0 0
    %1729 = vmatpush.bf16.msra.mxu0 0
    %1730 = vmatpush.bf16.msra.mxu0 0
    %1731 = vmatpush.bf16.msra.mxu0 0
    %1732 = vmatpush.bf16.msra.mxu0 0
    %1733 = vmatpush.bf16.msra.mxu0 0
    %1734 = vmatpush.bf16.msra.mxu0 %v1701
    %1735 = vmatpush.bf16.msra.mxu0 %v1700
    %1736 = vmatmul.bf16.gmra.mxu0 %v1705
    %v1737 = vpop.f32.mrf.mxu0
    %v1738 = vadd.f32 0.0, %v1737
    %v1739 = vpop.f32.mrf.mxu0
    %v1740 = vadd.f32 0.0, %v1739
    %1741 = vmatmul.bf16.gmra.mxu0 %v1708
    %v1742 = vpop.f32.mrf.mxu0
    %v1743 = vadd.f32 0.0, %v1742
    %v1744 = vpop.f32.mrf.mxu0
    %v1745 = vadd.f32 0.0, %v1744
    %1746 = vmatmul.bf16.gmra.mxu0 %v1711
    %v1747 = vpop.f32.mrf.mxu0
    %v1748 = vadd.f32 0.0, %v1747
    %v1749 = vpop.f32.mrf.mxu0
    %v1750 = vadd.f32 0.0, %v1749
    %1751 = vmatmul.bf16.gmra.mxu0 %v1714
    %v1752 = vpop.f32.mrf.mxu0
    %v1753 = vadd.f32 0.0, %v1752
    %v1754 = vpop.f32.mrf.mxu0
    %v1755 = vadd.f32 0.0, %v1754
    %1756 = vmatmul.bf16.gmra.mxu0 %v1717
    %v1757 = vpop.f32.mrf.mxu0
    %v1758 = vadd.f32 0.0, %v1757
    %v1759 = vpop.f32.mrf.mxu0
    %v1760 = vadd.f32 0.0, %v1759
    %1761 = vmatmul.bf16.gmra.mxu0 %v1720
    %v1762 = vpop.f32.mrf.mxu0
    %v1763 = vadd.f32 0.0, %v1762
    %v1764 = vpop.f32.mrf.mxu0
    %v1765 = vadd.f32 0.0, %v1764
    %1766 = vmatmul.bf16.gmra.mxu0 %v1723
    %v1767 = vpop.f32.mrf.mxu0
    %v1768 = vadd.f32 0.0, %v1767
    %v1769 = vpop.f32.mrf.mxu0
    %v1770 = vadd.f32 0.0, %v1769
    %1771 = vmatmul.bf16.gmra.mxu0 %v1726
    %v1772 = vpop.f32.mrf.mxu0
    %v1773 = vadd.f32 0.0, %v1772
    %v1774 = vpop.f32.mrf.mxu0
    %v1775 = vadd.f32 0.0, %v1774
    %1776 = vdwg.mxu0
    %v1781 = vunpack.c.l.b16 %v1660
    %v1782 = vunpack.c.l.b16 %v1661
    %v1783 = vunpack.c.l.b16 %v1662
    %v1784 = vunpack.c.l.b16 %v1663
    %v1785 = vpack.c.b16 %v1782, %v1781
    %v1786 = vpack.c.b16 %v1784, %v1783
    %v1790 = vsel %vm28, %v1652, 0
    %v1793 = vsel %vm28, %v1653, 0
    %v1796 = vsel %vm28, %v1654, 0
    %v1799 = vsel %vm28, %v1655, 0
    %v1802 = vsel %vm28, %v1656, 0
    %v1805 = vsel %vm28, %v1657, 0
    %v1808 = vsel %vm28, %v1658, 0
    %v1811 = vsel %vm28, %v1659, 0
    %1813 = vmatpush.bf16.msra.mxu0 0
    %1814 = vmatpush.bf16.msra.mxu0 0
    %1815 = vmatpush.bf16.msra.mxu0 0
    %1816 = vmatpush.bf16.msra.mxu0 0
    %1817 = vmatpush.bf16.msra.mxu0 0
    %1818 = vmatpush.bf16.msra.mxu0 0
    %1819 = vmatpush.bf16.msra.mxu0 %v1786
    %1820 = vmatpush.bf16.msra.mxu0 %v1785
    %1821 = vmatmul.bf16.gmra.mxu0 %v1790
    %v1822 = vpop.f32.mrf.mxu0
    %v1823 = vadd.f32 %v1738, %v1822
    %v1824 = vpop.f32.mrf.mxu0
    %v1825 = vadd.f32 %v1740, %v1824
    %1826 = vmatmul.bf16.gmra.mxu0 %v1793
    %v1827 = vpop.f32.mrf.mxu0
    %v1828 = vadd.f32 %v1743, %v1827
    %v1829 = vpop.f32.mrf.mxu0
    %v1830 = vadd.f32 %v1745, %v1829
    %1831 = vmatmul.bf16.gmra.mxu0 %v1796
    %v1832 = vpop.f32.mrf.mxu0
    %v1833 = vadd.f32 %v1748, %v1832
    %v1834 = vpop.f32.mrf.mxu0
    %v1835 = vadd.f32 %v1750, %v1834
    %1836 = vmatmul.bf16.gmra.mxu0 %v1799
    %v1837 = vpop.f32.mrf.mxu0
    %v1838 = vadd.f32 %v1753, %v1837
    %v1839 = vpop.f32.mrf.mxu0
    %v1840 = vadd.f32 %v1755, %v1839
    %1841 = vmatmul.bf16.gmra.mxu0 %v1802
    %v1842 = vpop.f32.mrf.mxu0
    %v1843 = vadd.f32 %v1758, %v1842
    %v1844 = vpop.f32.mrf.mxu0
    %v1845 = vadd.f32 %v1760, %v1844
    %1846 = vmatmul.bf16.gmra.mxu0 %v1805
    %v1847 = vpop.f32.mrf.mxu0
    %v1848 = vadd.f32 %v1763, %v1847
    %v1849 = vpop.f32.mrf.mxu0
    %v1850 = vadd.f32 %v1765, %v1849
    %1851 = vmatmul.bf16.gmra.mxu0 %v1808
    %v1852 = vpop.f32.mrf.mxu0
    %v1853 = vadd.f32 %v1768, %v1852
    %v1854 = vpop.f32.mrf.mxu0
    %v1855 = vadd.f32 %v1770, %v1854
    %1856 = vmatmul.bf16.gmra.mxu0 %v1811
    %v1857 = vpop.f32.mrf.mxu0
    %v1858 = vadd.f32 %v1773, %v1857
    %v1859 = vpop.f32.mrf.mxu0
    %v1860 = vadd.f32 %v1775, %v1859
    %1861 = vdwg.mxu0
    %v1862 = vld [vmem:[#allocation2 + $0x2] sm:$0xff]
    %v1863 = vld [vmem:[#allocation2 + $0xa] sm:$0xff]
    %v1864 = vld [vmem:[#allocation2 + $0x1a] sm:$0xff]
    %v1865 = vld [vmem:[#allocation2 + $0x22] sm:$0xff]
    %v1866 = vld [vmem:[#allocation2 + $0x32] sm:$0xff]
    %v1867 = vld [vmem:[#allocation2 + $0x3a] sm:$0xff]
    %v1868 = vld [vmem:[#allocation2 + $0x4a] sm:$0xff]
    %v1869 = vld [vmem:[#allocation2 + $0x52] sm:$0xff]
    %v1870 = vld [vmem:[#allocation2 + $0x62] sm:$0xff]
    %v1871 = vld [vmem:[#allocation2 + $0x6a] sm:$0xff]
    %v1872 = vld [vmem:[#allocation2 + $0x7a] sm:$0xff]
    %v1873 = vld [vmem:[#allocation2 + $0x82] sm:$0xff]
    %v1874 = vld [vmem:[#allocation2 + $0x92] sm:$0xff]
    %v1875 = vld [vmem:[#allocation2 + $0x9a] sm:$0xff]
    %v1876 = vld [vmem:[#allocation2 + $0xaa] sm:$0xff]
    %v1877 = vld [vmem:[#allocation2 + $0xb2] sm:$0xff]
    %v1878 = vpack.c.bf16 %v1863, %v1862
    %v1879 = vpack.c.bf16 %v1865, %v1864
    %v1880 = vpack.c.bf16 %v1867, %v1866
    %v1881 = vpack.c.bf16 %v1869, %v1868
    %v1882 = vpack.c.bf16 %v1871, %v1870
    %v1883 = vpack.c.bf16 %v1873, %v1872
    %v1884 = vpack.c.bf16 %v1875, %v1874
    %v1885 = vpack.c.bf16 %v1877, %v1876
    %v1886 = vld [vmem:[%s5 + $0x20] sm:$0xf]
    %v1887 = vld [vmem:[%s5 + $0x24] sm:$0xf]
    %v1888 = vld [vmem:[%s5 + $0x28] sm:$0xf]
    %v1889 = vld [vmem:[%s5 + $0x2c] sm:$0xf]
    %v1894 = vunpack.c.l.b16 %v1886
    %v1895 = vunpack.c.l.b16 %v1887
    %v1896 = vunpack.c.l.b16 %v1888
    %v1897 = vunpack.c.l.b16 %v1889
    %v1898 = vpack.c.b16 %v1895, %v1894
    %v1899 = vpack.c.b16 %v1897, %v1896
    %v1903 = vsel %vm28, %v1878, 0
    %v1906 = vsel %vm28, %v1879, 0
    %v1909 = vsel %vm28, %v1880, 0
    %v1912 = vsel %vm28, %v1881, 0
    %v1915 = vsel %vm28, %v1882, 0
    %v1918 = vsel %vm28, %v1883, 0
    %v1921 = vsel %vm28, %v1884, 0
    %v1924 = vsel %vm28, %v1885, 0
    %1926 = vmatpush.bf16.msra.mxu0 0
    %1927 = vmatpush.bf16.msra.mxu0 0
    %1928 = vmatpush.bf16.msra.mxu0 0
    %1929 = vmatpush.bf16.msra.mxu0 0
    %1930 = vmatpush.bf16.msra.mxu0 0
    %1931 = vmatpush.bf16.msra.mxu0 0
    %1932 = vmatpush.bf16.msra.mxu0 %v1899
    %1933 = vmatpush.bf16.msra.mxu0 %v1898
    %1934 = vmatmul.bf16.gmra.mxu0 %v1903
    %v1935 = vpop.f32.mrf.mxu0
    %v1936 = vadd.f32 0.0, %v1935
    %v1937 = vpop.f32.mrf.mxu0
    %v1938 = vadd.f32 0.0, %v1937
    %1939 = vmatmul.bf16.gmra.mxu0 %v1906
    %v1940 = vpop.f32.mrf.mxu0
    %v1941 = vadd.f32 0.0, %v1940
    %v1942 = vpop.f32.mrf.mxu0
    %v1943 = vadd.f32 0.0, %v1942
    %1944 = vmatmul.bf16.gmra.mxu0 %v1909
    %v1945 = vpop.f32.mrf.mxu0
    %v1946 = vadd.f32 0.0, %v1945
    %v1947 = vpop.f32.mrf.mxu0
    %v1948 = vadd.f32 0.0, %v1947
    %1949 = vmatmul.bf16.gmra.mxu0 %v1912
    %v1950 = vpop.f32.mrf.mxu0
    %v1951 = vadd.f32 0.0, %v1950
    %v1952 = vpop.f32.mrf.mxu0
    %v1953 = vadd.f32 0.0, %v1952
    %1954 = vmatmul.bf16.gmra.mxu0 %v1915
    %v1955 = vpop.f32.mrf.mxu0
    %v1956 = vadd.f32 0.0, %v1955
    %v1957 = vpop.f32.mrf.mxu0
    %v1958 = vadd.f32 0.0, %v1957
    %1959 = vmatmul.bf16.gmra.mxu0 %v1918
    %v1960 = vpop.f32.mrf.mxu0
    %v1961 = vadd.f32 0.0, %v1960
    %v1962 = vpop.f32.mrf.mxu0
    %v1963 = vadd.f32 0.0, %v1962
    %1964 = vmatmul.bf16.gmra.mxu0 %v1921
    %v1965 = vpop.f32.mrf.mxu0
    %v1966 = vadd.f32 0.0, %v1965
    %v1967 = vpop.f32.mrf.mxu0
    %v1968 = vadd.f32 0.0, %v1967
    %1969 = vmatmul.bf16.gmra.mxu0 %v1924
    %v1970 = vpop.f32.mrf.mxu0
    %v1971 = vadd.f32 0.0, %v1970
    %v1972 = vpop.f32.mrf.mxu0
    %v1973 = vadd.f32 0.0, %v1972
    %1974 = vdwg.mxu0
    %v1975 = vadd.f32 %v1823, %v1936
    %v1976 = vadd.f32 %v1825, %v1938
    %v1977 = vadd.f32 %v1828, %v1941
    %v1978 = vadd.f32 %v1830, %v1943
    %v1979 = vadd.f32 %v1833, %v1946
    %v1980 = vadd.f32 %v1835, %v1948
    %v1981 = vadd.f32 %v1838, %v1951
    %v1982 = vadd.f32 %v1840, %v1953
    %v1983 = vadd.f32 %v1843, %v1956
    %v1984 = vadd.f32 %v1845, %v1958
    %v1985 = vadd.f32 %v1848, %v1961
    %v1986 = vadd.f32 %v1850, %v1963
    %v1987 = vadd.f32 %v1853, %v1966
    %v1988 = vadd.f32 %v1855, %v1968
    %v1989 = vadd.f32 %v1858, %v1971
    %v1990 = vadd.f32 %v1860, %v1973
    %v1991 = vld [vmem:[%s37] sm:$0xff]
    %v1992 = vld [vmem:[%s37 + $0x8] sm:$0xff]
    %v1993 = vld [vmem:[%s37 + $0x18] sm:$0xff]
    %v1994 = vld [vmem:[%s37 + $0x20] sm:$0xff]
    %v1995 = vld [vmem:[%s37 + $0x30] sm:$0xff]
    %v1996 = vld [vmem:[%s37 + $0x38] sm:$0xff]
    %v1997 = vld [vmem:[%s37 + $0x48] sm:$0xff]
    %v1998 = vld [vmem:[%s37 + $0x50] sm:$0xff]
    %v1999 = vld [vmem:[%s37 + $0x60] sm:$0xff]
    %v2000 = vld [vmem:[%s37 + $0x68] sm:$0xff]
    %v2001 = vld [vmem:[%s37 + $0x78] sm:$0xff]
    %v2002 = vld [vmem:[%s37 + $0x80] sm:$0xff]
    %v2003 = vld [vmem:[%s37 + $0x90] sm:$0xff]
    %v2004 = vld [vmem:[%s37 + $0x98] sm:$0xff]
    %v2005 = vld [vmem:[%s37 + $0xa8] sm:$0xff]
    %v2006 = vld [vmem:[%s37 + $0xb0] sm:$0xff]
    %v2007 = vpack.c.bf16 %v1992, %v1991
    %v2008 = vpack.c.bf16 %v1994, %v1993
    %v2009 = vpack.c.bf16 %v1996, %v1995
    %v2010 = vpack.c.bf16 %v1998, %v1997
    %v2011 = vpack.c.bf16 %v2000, %v1999
    %v2012 = vpack.c.bf16 %v2002, %v2001
    %v2013 = vpack.c.bf16 %v2004, %v2003
    %v2014 = vpack.c.bf16 %v2006, %v2005
    %v2015 = vld [vmem:[%s5 + $0x30] sm:$0xf]
    %v2016 = vld [vmem:[%s5 + $0x34] sm:$0xf]
    %v2017 = vld [vmem:[%s5 + $0x38] sm:$0xf]
    %v2018 = vld [vmem:[%s5 + $0x3c] sm:$0xf]
    %v2023 = vunpack.c.l.b16 %v2015
    %v2024 = vunpack.c.l.b16 %v2016
    %v2025 = vunpack.c.l.b16 %v2017
    %v2026 = vunpack.c.l.b16 %v2018
    %v2027 = vpack.c.b16 %v2024, %v2023
    %v2028 = vpack.c.b16 %v2026, %v2025
    %v2032 = vsel %vm28, %v2007, 0
    %v2035 = vsel %vm28, %v2008, 0
    %v2038 = vsel %vm28, %v2009, 0
    %v2041 = vsel %vm28, %v2010, 0
    %v2044 = vsel %vm28, %v2011, 0
    %v2047 = vsel %vm28, %v2012, 0
    %v2050 = vsel %vm28, %v2013, 0
    %v2053 = vsel %vm28, %v2014, 0
    %2055 = vmatpush.bf16.msra.mxu0 0
    %2056 = vmatpush.bf16.msra.mxu0 0
    %2057 = vmatpush.bf16.msra.mxu0 0
    %2058 = vmatpush.bf16.msra.mxu0 0
    %2059 = vmatpush.bf16.msra.mxu0 0
    %2060 = vmatpush.bf16.msra.mxu0 0
    %2061 = vmatpush.bf16.msra.mxu0 %v2028
    %2062 = vmatpush.bf16.msra.mxu0 %v2027
    %2063 = vmatmul.bf16.gmra.mxu0 %v2032
    %v2064 = vpop.f32.mrf.mxu0
    %v2065 = vadd.f32 0.0, %v2064
    %v2066 = vpop.f32.mrf.mxu0
    %v2067 = vadd.f32 0.0, %v2066
    %2068 = vmatmul.bf16.gmra.mxu0 %v2035
    %v2069 = vpop.f32.mrf.mxu0
    %v2070 = vadd.f32 0.0, %v2069
    %v2071 = vpop.f32.mrf.mxu0
    %v2072 = vadd.f32 0.0, %v2071
    %2073 = vmatmul.bf16.gmra.mxu0 %v2038
    %v2074 = vpop.f32.mrf.mxu0
    %v2075 = vadd.f32 0.0, %v2074
    %v2076 = vpop.f32.mrf.mxu0
    %v2077 = vadd.f32 0.0, %v2076
    %2078 = vmatmul.bf16.gmra.mxu0 %v2041
    %v2079 = vpop.f32.mrf.mxu0
    %v2080 = vadd.f32 0.0, %v2079
    %v2081 = vpop.f32.mrf.mxu0
    %v2082 = vadd.f32 0.0, %v2081
    %2083 = vmatmul.bf16.gmra.mxu0 %v2044
    %v2084 = vpop.f32.mrf.mxu0
    %v2085 = vadd.f32 0.0, %v2084
    %v2086 = vpop.f32.mrf.mxu0
    %v2087 = vadd.f32 0.0, %v2086
    %2088 = vmatmul.bf16.gmra.mxu0 %v2047
    %v2089 = vpop.f32.mrf.mxu0
    %v2090 = vadd.f32 0.0, %v2089
    %v2091 = vpop.f32.mrf.mxu0
    %v2092 = vadd.f32 0.0, %v2091
    %2093 = vmatmul.bf16.gmra.mxu0 %v2050
    %v2094 = vpop.f32.mrf.mxu0
    %v2095 = vadd.f32 0.0, %v2094
    %v2096 = vpop.f32.mrf.mxu0
    %v2097 = vadd.f32 0.0, %v2096
    %2098 = vmatmul.bf16.gmra.mxu0 %v2053
    %v2099 = vpop.f32.mrf.mxu0
    %v2100 = vadd.f32 0.0, %v2099
    %v2101 = vpop.f32.mrf.mxu0
    %v2102 = vadd.f32 0.0, %v2101
    %2103 = vdwg.mxu0
    %v2104 = vadd.f32 %v1975, %v2065
    %v2105 = vadd.f32 %v1976, %v2067
    %v2106 = vadd.f32 %v1977, %v2070
    %v2107 = vadd.f32 %v1978, %v2072
    %v2108 = vadd.f32 %v1979, %v2075
    %v2109 = vadd.f32 %v1980, %v2077
    %v2110 = vadd.f32 %v1981, %v2080
    %v2111 = vadd.f32 %v1982, %v2082
    %v2112 = vadd.f32 %v1983, %v2085
    %v2113 = vadd.f32 %v1984, %v2087
    %v2114 = vadd.f32 %v1985, %v2090
    %v2115 = vadd.f32 %v1986, %v2092
    %v2116 = vadd.f32 %v1987, %v2095
    %v2117 = vadd.f32 %v1988, %v2097
    %v2118 = vadd.f32 %v1989, %v2100
    %v2119 = vadd.f32 %v1990, %v2102
    %v2120 = vld [vmem:[%s37 + $0x1] sm:$0xff]
    %v2121 = vld [vmem:[%s37 + $0x9] sm:$0xff]
    %v2122 = vld [vmem:[%s37 + $0x19] sm:$0xff]
    %v2123 = vld [vmem:[%s37 + $0x21] sm:$0xff]
    %v2124 = vld [vmem:[%s37 + $0x31] sm:$0xff]
    %v2125 = vld [vmem:[%s37 + $0x39] sm:$0xff]
    %v2126 = vld [vmem:[%s37 + $0x49] sm:$0xff]
    %v2127 = vld [vmem:[%s37 + $0x51] sm:$0xff]
    %v2128 = vld [vmem:[%s37 + $0x61] sm:$0xff]
    %v2129 = vld [vmem:[%s37 + $0x69] sm:$0xff]
    %v2130 = vld [vmem:[%s37 + $0x79] sm:$0xff]
    %v2131 = vld [vmem:[%s37 + $0x81] sm:$0xff]
    %v2132 = vld [vmem:[%s37 + $0x91] sm:$0xff]
    %v2133 = vld [vmem:[%s37 + $0x99] sm:$0xff]
    %v2134 = vld [vmem:[%s37 + $0xa9] sm:$0xff]
    %v2135 = vld [vmem:[%s37 + $0xb1] sm:$0xff]
    %v2136 = vpack.c.bf16 %v2121, %v2120
    %v2137 = vpack.c.bf16 %v2123, %v2122
    %v2138 = vpack.c.bf16 %v2125, %v2124
    %v2139 = vpack.c.bf16 %v2127, %v2126
    %v2140 = vpack.c.bf16 %v2129, %v2128
    %v2141 = vpack.c.bf16 %v2131, %v2130
    %v2142 = vpack.c.bf16 %v2133, %v2132
    %v2143 = vpack.c.bf16 %v2135, %v2134
    %v2144 = vld [vmem:[%s5 + $0x40] sm:$0xf]
    %v2145 = vld [vmem:[%s5 + $0x44] sm:$0xf]
    %v2146 = vld [vmem:[%s5 + $0x48] sm:$0xf]
    %v2147 = vld [vmem:[%s5 + $0x4c] sm:$0xf]
    %v2152 = vunpack.c.l.b16 %v2144
    %v2153 = vunpack.c.l.b16 %v2145
    %v2154 = vunpack.c.l.b16 %v2146
    %v2155 = vunpack.c.l.b16 %v2147
    %v2156 = vpack.c.b16 %v2153, %v2152
    %v2157 = vpack.c.b16 %v2155, %v2154
    %v2161 = vsel %vm28, %v2136, 0
    %v2164 = vsel %vm28, %v2137, 0
    %v2167 = vsel %vm28, %v2138, 0
    %v2170 = vsel %vm28, %v2139, 0
    %v2173 = vsel %vm28, %v2140, 0
    %v2176 = vsel %vm28, %v2141, 0
    %v2179 = vsel %vm28, %v2142, 0
    %v2182 = vsel %vm28, %v2143, 0
    %2184 = vmatpush.bf16.msra.mxu0 0
    %2185 = vmatpush.bf16.msra.mxu0 0
    %2186 = vmatpush.bf16.msra.mxu0 0
    %2187 = vmatpush.bf16.msra.mxu0 0
    %2188 = vmatpush.bf16.msra.mxu0 0
    %2189 = vmatpush.bf16.msra.mxu0 0
    %2190 = vmatpush.bf16.msra.mxu0 %v2157
    %2191 = vmatpush.bf16.msra.mxu0 %v2156
    %2192 = vmatmul.bf16.gmra.mxu0 %v2161
    %v2193 = vpop.f32.mrf.mxu0
    %v2194 = vadd.f32 0.0, %v2193
    %v2195 = vpop.f32.mrf.mxu0
    %v2196 = vadd.f32 0.0, %v2195
    %2197 = vmatmul.bf16.gmra.mxu0 %v2164
    %v2198 = vpop.f32.mrf.mxu0
    %v2199 = vadd.f32 0.0, %v2198
    %v2200 = vpop.f32.mrf.mxu0
    %v2201 = vadd.f32 0.0, %v2200
    %2202 = vmatmul.bf16.gmra.mxu0 %v2167
    %v2203 = vpop.f32.mrf.mxu0
    %v2204 = vadd.f32 0.0, %v2203
    %v2205 = vpop.f32.mrf.mxu0
    %v2206 = vadd.f32 0.0, %v2205
    %2207 = vmatmul.bf16.gmra.mxu0 %v2170
    %v2208 = vpop.f32.mrf.mxu0
    %v2209 = vadd.f32 0.0, %v2208
    %v2210 = vpop.f32.mrf.mxu0
    %v2211 = vadd.f32 0.0, %v2210
    %2212 = vmatmul.bf16.gmra.mxu0 %v2173
    %v2213 = vpop.f32.mrf.mxu0
    %v2214 = vadd.f32 0.0, %v2213
    %v2215 = vpop.f32.mrf.mxu0
    %v2216 = vadd.f32 0.0, %v2215
    %2217 = vmatmul.bf16.gmra.mxu0 %v2176
    %v2218 = vpop.f32.mrf.mxu0
    %v2219 = vadd.f32 0.0, %v2218
    %v2220 = vpop.f32.mrf.mxu0
    %v2221 = vadd.f32 0.0, %v2220
    %2222 = vmatmul.bf16.gmra.mxu0 %v2179
    %v2223 = vpop.f32.mrf.mxu0
    %v2224 = vadd.f32 0.0, %v2223
    %v2225 = vpop.f32.mrf.mxu0
    %v2226 = vadd.f32 0.0, %v2225
    %2227 = vmatmul.bf16.gmra.mxu0 %v2182
    %v2228 = vpop.f32.mrf.mxu0
    %v2229 = vadd.f32 0.0, %v2228
    %v2230 = vpop.f32.mrf.mxu0
    %v2231 = vadd.f32 0.0, %v2230
    %2232 = vdwg.mxu0
    %v2233 = vadd.f32 %v2104, %v2194
    %v2234 = vadd.f32 %v2105, %v2196
    %v2235 = vadd.f32 %v2106, %v2199
    %v2236 = vadd.f32 %v2107, %v2201
    %v2237 = vadd.f32 %v2108, %v2204
    %v2238 = vadd.f32 %v2109, %v2206
    %v2239 = vadd.f32 %v2110, %v2209
    %v2240 = vadd.f32 %v2111, %v2211
    %v2241 = vadd.f32 %v2112, %v2214
    %v2242 = vadd.f32 %v2113, %v2216
    %v2243 = vadd.f32 %v2114, %v2219
    %v2244 = vadd.f32 %v2115, %v2221
    %v2245 = vadd.f32 %v2116, %v2224
    %v2246 = vadd.f32 %v2117, %v2226
    %v2247 = vadd.f32 %v2118, %v2229
    %v2248 = vadd.f32 %v2119, %v2231
    %v2249 = vld [vmem:[%s37 + $0x2] sm:$0xff]
    %v2250 = vld [vmem:[%s37 + $0xa] sm:$0xff]
    %v2251 = vld [vmem:[%s37 + $0x1a] sm:$0xff]
    %v2252 = vld [vmem:[%s37 + $0x22] sm:$0xff]
    %v2253 = vld [vmem:[%s37 + $0x32] sm:$0xff]
    %v2254 = vld [vmem:[%s37 + $0x3a] sm:$0xff]
    %v2255 = vld [vmem:[%s37 + $0x4a] sm:$0xff]
    %v2256 = vld [vmem:[%s37 + $0x52] sm:$0xff]
    %v2257 = vld [vmem:[%s37 + $0x62] sm:$0xff]
    %v2258 = vld [vmem:[%s37 + $0x6a] sm:$0xff]
    %v2259 = vld [vmem:[%s37 + $0x7a] sm:$0xff]
    %v2260 = vld [vmem:[%s37 + $0x82] sm:$0xff]
    %v2261 = vld [vmem:[%s37 + $0x92] sm:$0xff]
    %v2262 = vld [vmem:[%s37 + $0x9a] sm:$0xff]
    %v2263 = vld [vmem:[%s37 + $0xaa] sm:$0xff]
    %v2264 = vld [vmem:[%s37 + $0xb2] sm:$0xff]
    %v2265 = vpack.c.bf16 %v2250, %v2249
    %v2266 = vpack.c.bf16 %v2252, %v2251
    %v2267 = vpack.c.bf16 %v2254, %v2253
    %v2268 = vpack.c.bf16 %v2256, %v2255
    %v2269 = vpack.c.bf16 %v2258, %v2257
    %v2270 = vpack.c.bf16 %v2260, %v2259
    %v2271 = vpack.c.bf16 %v2262, %v2261
    %v2272 = vpack.c.bf16 %v2264, %v2263
    %v2273 = vld [vmem:[%s5 + $0x50] sm:$0xf]
    %v2274 = vld [vmem:[%s5 + $0x54] sm:$0xf]
    %v2275 = vld [vmem:[%s5 + $0x58] sm:$0xf]
    %v2276 = vld [vmem:[%s5 + $0x5c] sm:$0xf]
    %v2281 = vunpack.c.l.b16 %v2273
    %v2282 = vunpack.c.l.b16 %v2274
    %v2283 = vunpack.c.l.b16 %v2275
    %v2284 = vunpack.c.l.b16 %v2276
    %v2285 = vpack.c.b16 %v2282, %v2281
    %v2286 = vpack.c.b16 %v2284, %v2283
    %v2290 = vsel %vm28, %v2265, 0
    %v2293 = vsel %vm28, %v2266, 0
    %v2296 = vsel %vm28, %v2267, 0
    %v2299 = vsel %vm28, %v2268, 0
    %v2302 = vsel %vm28, %v2269, 0
    %v2305 = vsel %vm28, %v2270, 0
    %v2308 = vsel %vm28, %v2271, 0
    %v2311 = vsel %vm28, %v2272, 0
    %2313 = vmatpush.bf16.msra.mxu0 0
    %2314 = vmatpush.bf16.msra.mxu0 0
    %2315 = vmatpush.bf16.msra.mxu0 0
    %2316 = vmatpush.bf16.msra.mxu0 0
    %2317 = vmatpush.bf16.msra.mxu0 0
    %2318 = vmatpush.bf16.msra.mxu0 0
    %2319 = vmatpush.bf16.msra.mxu0 %v2286
    %2320 = vmatpush.bf16.msra.mxu0 %v2285
    %2321 = vmatmul.bf16.gmra.mxu0 %v2290
    %v2322 = vpop.f32.mrf.mxu0
    %v2323 = vadd.f32 0.0, %v2322
    %v2324 = vpop.f32.mrf.mxu0
    %v2325 = vadd.f32 0.0, %v2324
    %2326 = vmatmul.bf16.gmra.mxu0 %v2293
    %v2327 = vpop.f32.mrf.mxu0
    %v2328 = vadd.f32 0.0, %v2327
    %v2329 = vpop.f32.mrf.mxu0
    %v2330 = vadd.f32 0.0, %v2329
    %2331 = vmatmul.bf16.gmra.mxu0 %v2296
    %v2332 = vpop.f32.mrf.mxu0
    %v2333 = vadd.f32 0.0, %v2332
    %v2334 = vpop.f32.mrf.mxu0
    %v2335 = vadd.f32 0.0, %v2334
    %2336 = vmatmul.bf16.gmra.mxu0 %v2299
    %v2337 = vpop.f32.mrf.mxu0
    %v2338 = vadd.f32 0.0, %v2337
    %v2339 = vpop.f32.mrf.mxu0
    %v2340 = vadd.f32 0.0, %v2339
    %2341 = vmatmul.bf16.gmra.mxu0 %v2302
    %v2342 = vpop.f32.mrf.mxu0
    %v2343 = vadd.f32 0.0, %v2342
    %v2344 = vpop.f32.mrf.mxu0
    %v2345 = vadd.f32 0.0, %v2344
    %2346 = vmatmul.bf16.gmra.mxu0 %v2305
    %v2347 = vpop.f32.mrf.mxu0
    %v2348 = vadd.f32 0.0, %v2347
    %v2349 = vpop.f32.mrf.mxu0
    %v2350 = vadd.f32 0.0, %v2349
    %2351 = vmatmul.bf16.gmra.mxu0 %v2308
    %v2352 = vpop.f32.mrf.mxu0
    %v2353 = vadd.f32 0.0, %v2352
    %v2354 = vpop.f32.mrf.mxu0
    %v2355 = vadd.f32 0.0, %v2354
    %2356 = vmatmul.bf16.gmra.mxu0 %v2311
    %v2357 = vpop.f32.mrf.mxu0
    %v2358 = vadd.f32 0.0, %v2357
    %v2359 = vpop.f32.mrf.mxu0
    %v2360 = vadd.f32 0.0, %v2359
    %2361 = vdwg.mxu0
    %v2362 = vadd.f32 %v2233, %v2323
    %v2363 = vadd.f32 %v2234, %v2325
    %v2364 = vadd.f32 %v2235, %v2328
    %v2365 = vadd.f32 %v2236, %v2330
    %v2366 = vadd.f32 %v2237, %v2333
    %v2367 = vadd.f32 %v2238, %v2335
    %v2368 = vadd.f32 %v2239, %v2338
    %v2369 = vadd.f32 %v2240, %v2340
    %v2370 = vadd.f32 %v2241, %v2343
    %v2371 = vadd.f32 %v2242, %v2345
    %v2372 = vadd.f32 %v2243, %v2348
    %v2373 = vadd.f32 %v2244, %v2350
    %v2374 = vadd.f32 %v2245, %v2353
    %v2375 = vadd.f32 %v2246, %v2355
    %v2376 = vadd.f32 %v2247, %v2358
    %v2377 = vadd.f32 %v2248, %v2360
    %v2378 = vld [vmem:[%s1164] sm:$0xff]
    %v2379 = vld [vmem:[%s1164 + $0x8] sm:$0xff]
    %v2380 = vld [vmem:[%s1164 + $0x18] sm:$0xff]
    %v2381 = vld [vmem:[%s1164 + $0x20] sm:$0xff]
    %v2382 = vld [vmem:[%s1164 + $0x30] sm:$0xff]
    %v2383 = vld [vmem:[%s1164 + $0x38] sm:$0xff]
    %v2384 = vld [vmem:[%s1164 + $0x48] sm:$0xff]
    %v2385 = vld [vmem:[%s1164 + $0x50] sm:$0xff]
    %v2386 = vld [vmem:[%s1164 + $0x60] sm:$0xff]
    %v2387 = vld [vmem:[%s1164 + $0x68] sm:$0xff]
    %v2388 = vld [vmem:[%s1164 + $0x78] sm:$0xff]
    %v2389 = vld [vmem:[%s1164 + $0x80] sm:$0xff]
    %v2390 = vld [vmem:[%s1164 + $0x90] sm:$0xff]
    %v2391 = vld [vmem:[%s1164 + $0x98] sm:$0xff]
    %v2392 = vld [vmem:[%s1164 + $0xa8] sm:$0xff]
    %v2393 = vld [vmem:[%s1164 + $0xb0] sm:$0xff]
    %v2394 = vpack.c.bf16 %v2379, %v2378
    %v2395 = vpack.c.bf16 %v2381, %v2380
    %v2396 = vpack.c.bf16 %v2383, %v2382
    %v2397 = vpack.c.bf16 %v2385, %v2384
    %v2398 = vpack.c.bf16 %v2387, %v2386
    %v2399 = vpack.c.bf16 %v2389, %v2388
    %v2400 = vpack.c.bf16 %v2391, %v2390
    %v2401 = vpack.c.bf16 %v2393, %v2392
    %v2402 = vld [vmem:[%s5 + $0x60] sm:$0xf]
    %v2403 = vld [vmem:[%s5 + $0x64] sm:$0xf]
    %v2404 = vld [vmem:[%s5 + $0x68] sm:$0xf]
    %v2405 = vld [vmem:[%s5 + $0x6c] sm:$0xf]
    %v2410 = vunpack.c.l.b16 %v2402
    %v2411 = vunpack.c.l.b16 %v2403
    %v2412 = vunpack.c.l.b16 %v2404
    %v2413 = vunpack.c.l.b16 %v2405
    %v2414 = vpack.c.b16 %v2411, %v2410
    %v2415 = vpack.c.b16 %v2413, %v2412
    %v2419 = vsel %vm28, %v2394, 0
    %v2422 = vsel %vm28, %v2395, 0
    %v2425 = vsel %vm28, %v2396, 0
    %v2428 = vsel %vm28, %v2397, 0
    %v2431 = vsel %vm28, %v2398, 0
    %v2434 = vsel %vm28, %v2399, 0
    %v2437 = vsel %vm28, %v2400, 0
    %v2440 = vsel %vm28, %v2401, 0
    %2442 = vmatpush.bf16.msra.mxu0 0
    %2443 = vmatpush.bf16.msra.mxu0 0
    %2444 = vmatpush.bf16.msra.mxu0 0
    %2445 = vmatpush.bf16.msra.mxu0 0
    %2446 = vmatpush.bf16.msra.mxu0 0
    %2447 = vmatpush.bf16.msra.mxu0 0
    %2448 = vmatpush.bf16.msra.mxu0 %v2415
    %2449 = vmatpush.bf16.msra.mxu0 %v2414
    %2450 = vmatmul.bf16.gmra.mxu0 %v2419
    %v2451 = vpop.f32.mrf.mxu0
    %v2452 = vadd.f32 0.0, %v2451
    %v2453 = vpop.f32.mrf.mxu0
    %v2454 = vadd.f32 0.0, %v2453
    %2455 = vmatmul.bf16.gmra.mxu0 %v2422
    %v2456 = vpop.f32.mrf.mxu0
    %v2457 = vadd.f32 0.0, %v2456
    %v2458 = vpop.f32.mrf.mxu0
    %v2459 = vadd.f32 0.0, %v2458
    %2460 = vmatmul.bf16.gmra.mxu0 %v2425
    %v2461 = vpop.f32.mrf.mxu0
    %v2462 = vadd.f32 0.0, %v2461
    %v2463 = vpop.f32.mrf.mxu0
    %v2464 = vadd.f32 0.0, %v2463
    %2465 = vmatmul.bf16.gmra.mxu0 %v2428
    %v2466 = vpop.f32.mrf.mxu0
    %v2467 = vadd.f32 0.0, %v2466
    %v2468 = vpop.f32.mrf.mxu0
    %v2469 = vadd.f32 0.0, %v2468
    %2470 = vmatmul.bf16.gmra.mxu0 %v2431
    %v2471 = vpop.f32.mrf.mxu0
    %v2472 = vadd.f32 0.0, %v2471
    %v2473 = vpop.f32.mrf.mxu0
    %v2474 = vadd.f32 0.0, %v2473
    %2475 = vmatmul.bf16.gmra.mxu0 %v2434
    %v2476 = vpop.f32.mrf.mxu0
    %v2477 = vadd.f32 0.0, %v2476
    %v2478 = vpop.f32.mrf.mxu0
    %v2479 = vadd.f32 0.0, %v2478
    %2480 = vmatmul.bf16.gmra.mxu0 %v2437
    %v2481 = vpop.f32.mrf.mxu0
    %v2482 = vadd.f32 0.0, %v2481
    %v2483 = vpop.f32.mrf.mxu0
    %v2484 = vadd.f32 0.0, %v2483
    %2485 = vmatmul.bf16.gmra.mxu0 %v2440
    %v2486 = vpop.f32.mrf.mxu0
    %v2487 = vadd.f32 0.0, %v2486
    %v2488 = vpop.f32.mrf.mxu0
    %v2489 = vadd.f32 0.0, %v2488
    %2490 = vdwg.mxu0
    %v2491 = vadd.f32 %v2362, %v2452
    %v2492 = vadd.f32 %v2363, %v2454
    %v2493 = vadd.f32 %v2364, %v2457
    %v2494 = vadd.f32 %v2365, %v2459
    %v2495 = vadd.f32 %v2366, %v2462
    %v2496 = vadd.f32 %v2367, %v2464
    %v2497 = vadd.f32 %v2368, %v2467
    %v2498 = vadd.f32 %v2369, %v2469
    %v2499 = vadd.f32 %v2370, %v2472
    %v2500 = vadd.f32 %v2371, %v2474
    %v2501 = vadd.f32 %v2372, %v2477
    %v2502 = vadd.f32 %v2373, %v2479
    %v2503 = vadd.f32 %v2374, %v2482
    %v2504 = vadd.f32 %v2375, %v2484
    %v2505 = vadd.f32 %v2376, %v2487
    %v2506 = vadd.f32 %v2377, %v2489
    %v2507 = vld [vmem:[%s1164 + $0x1] sm:$0xff]
    %v2508 = vld [vmem:[%s1164 + $0x9] sm:$0xff]
    %v2509 = vld [vmem:[%s1164 + $0x19] sm:$0xff]
    %v2510 = vld [vmem:[%s1164 + $0x21] sm:$0xff]
    %v2511 = vld [vmem:[%s1164 + $0x31] sm:$0xff]
    %v2512 = vld [vmem:[%s1164 + $0x39] sm:$0xff]
    %v2513 = vld [vmem:[%s1164 + $0x49] sm:$0xff]
    %v2514 = vld [vmem:[%s1164 + $0x51] sm:$0xff]
    %v2515 = vld [vmem:[%s1164 + $0x61] sm:$0xff]
    %v2516 = vld [vmem:[%s1164 + $0x69] sm:$0xff]
    %v2517 = vld [vmem:[%s1164 + $0x79] sm:$0xff]
    %v2518 = vld [vmem:[%s1164 + $0x81] sm:$0xff]
    %v2519 = vld [vmem:[%s1164 + $0x91] sm:$0xff]
    %v2520 = vld [vmem:[%s1164 + $0x99] sm:$0xff]
    %v2521 = vld [vmem:[%s1164 + $0xa9] sm:$0xff]
    %v2522 = vld [vmem:[%s1164 + $0xb1] sm:$0xff]
    %v2523 = vpack.c.bf16 %v2508, %v2507
    %v2524 = vpack.c.bf16 %v2510, %v2509
    %v2525 = vpack.c.bf16 %v2512, %v2511
    %v2526 = vpack.c.bf16 %v2514, %v2513
    %v2527 = vpack.c.bf16 %v2516, %v2515
    %v2528 = vpack.c.bf16 %v2518, %v2517
    %v2529 = vpack.c.bf16 %v2520, %v2519
    %v2530 = vpack.c.bf16 %v2522, %v2521
    %v2531 = vld [vmem:[%s5 + $0x70] sm:$0xf]
    %v2532 = vld [vmem:[%s5 + $0x74] sm:$0xf]
    %v2533 = vld [vmem:[%s5 + $0x78] sm:$0xf]
    %v2534 = vld [vmem:[%s5 + $0x7c] sm:$0xf]
    %v2539 = vunpack.c.l.b16 %v2531
    %v2540 = vunpack.c.l.b16 %v2532
    %v2541 = vunpack.c.l.b16 %v2533
    %v2542 = vunpack.c.l.b16 %v2534
    %v2543 = vpack.c.b16 %v2540, %v2539
    %v2544 = vpack.c.b16 %v2542, %v2541
    %v2548 = vsel %vm28, %v2523, 0
    %v2551 = vsel %vm28, %v2524, 0
    %v2554 = vsel %vm28, %v2525, 0
    %v2557 = vsel %vm28, %v2526, 0
    %v2560 = vsel %vm28, %v2527, 0
    %v2563 = vsel %vm28, %v2528, 0
    %v2566 = vsel %vm28, %v2529, 0
    %v2569 = vsel %vm28, %v2530, 0
    %2571 = vmatpush.bf16.msra.mxu0 0
    %2572 = vmatpush.bf16.msra.mxu0 0
    %2573 = vmatpush.bf16.msra.mxu0 0
    %2574 = vmatpush.bf16.msra.mxu0 0
    %2575 = vmatpush.bf16.msra.mxu0 0
    %2576 = vmatpush.bf16.msra.mxu0 0
    %2577 = vmatpush.bf16.msra.mxu0 %v2544
    %2578 = vmatpush.bf16.msra.mxu0 %v2543
    %2579 = vmatmul.bf16.gmra.mxu0 %v2548
    %v2580 = vpop.f32.mrf.mxu0
    %v2581 = vadd.f32 0.0, %v2580
    %v2582 = vpop.f32.mrf.mxu0
    %v2583 = vadd.f32 0.0, %v2582
    %2584 = vmatmul.bf16.gmra.mxu0 %v2551
    %v2585 = vpop.f32.mrf.mxu0
    %v2586 = vadd.f32 0.0, %v2585
    %v2587 = vpop.f32.mrf.mxu0
    %v2588 = vadd.f32 0.0, %v2587
    %2589 = vmatmul.bf16.gmra.mxu0 %v2554
    %v2590 = vpop.f32.mrf.mxu0
    %v2591 = vadd.f32 0.0, %v2590
    %v2592 = vpop.f32.mrf.mxu0
    %v2593 = vadd.f32 0.0, %v2592
    %2594 = vmatmul.bf16.gmra.mxu0 %v2557
    %v2595 = vpop.f32.mrf.mxu0
    %v2596 = vadd.f32 0.0, %v2595
    %v2597 = vpop.f32.mrf.mxu0
    %v2598 = vadd.f32 0.0, %v2597
    %2599 = vmatmul.bf16.gmra.mxu0 %v2560
    %v2600 = vpop.f32.mrf.mxu0
    %v2601 = vadd.f32 0.0, %v2600
    %v2602 = vpop.f32.mrf.mxu0
    %v2603 = vadd.f32 0.0, %v2602
    %2604 = vmatmul.bf16.gmra.mxu0 %v2563
    %v2605 = vpop.f32.mrf.mxu0
    %v2606 = vadd.f32 0.0, %v2605
    %v2607 = vpop.f32.mrf.mxu0
    %v2608 = vadd.f32 0.0, %v2607
    %2609 = vmatmul.bf16.gmra.mxu0 %v2566
    %v2610 = vpop.f32.mrf.mxu0
    %v2611 = vadd.f32 0.0, %v2610
    %v2612 = vpop.f32.mrf.mxu0
    %v2613 = vadd.f32 0.0, %v2612
    %2614 = vmatmul.bf16.gmra.mxu0 %v2569
    %v2615 = vpop.f32.mrf.mxu0
    %v2616 = vadd.f32 0.0, %v2615
    %v2617 = vpop.f32.mrf.mxu0
    %v2618 = vadd.f32 0.0, %v2617
    %2619 = vdwg.mxu0
    %v2620 = vadd.f32 %v2491, %v2581
    %v2621 = vadd.f32 %v2492, %v2583
    %v2622 = vadd.f32 %v2493, %v2586
    %v2623 = vadd.f32 %v2494, %v2588
    %v2624 = vadd.f32 %v2495, %v2591
    %v2625 = vadd.f32 %v2496, %v2593
    %v2626 = vadd.f32 %v2497, %v2596
    %v2627 = vadd.f32 %v2498, %v2598
    %v2628 = vadd.f32 %v2499, %v2601
    %v2629 = vadd.f32 %v2500, %v2603
    %v2630 = vadd.f32 %v2501, %v2606
    %v2631 = vadd.f32 %v2502, %v2608
    %v2632 = vadd.f32 %v2503, %v2611
    %v2633 = vadd.f32 %v2504, %v2613
    %v2634 = vadd.f32 %v2505, %v2616
    %v2635 = vadd.f32 %v2506, %v2618
    %v2636 = vld [vmem:[%s1164 + $0x2] sm:$0xff]
    %v2637 = vld [vmem:[%s1164 + $0xa] sm:$0xff]
    %v2638 = vld [vmem:[%s1164 + $0x1a] sm:$0xff]
    %v2639 = vld [vmem:[%s1164 + $0x22] sm:$0xff]
    %v2640 = vld [vmem:[%s1164 + $0x32] sm:$0xff]
    %v2641 = vld [vmem:[%s1164 + $0x3a] sm:$0xff]
    %v2642 = vld [vmem:[%s1164 + $0x4a] sm:$0xff]
    %v2643 = vld [vmem:[%s1164 + $0x52] sm:$0xff]
    %v2644 = vld [vmem:[%s1164 + $0x62] sm:$0xff]
    %v2645 = vld [vmem:[%s1164 + $0x6a] sm:$0xff]
    %v2646 = vld [vmem:[%s1164 + $0x7a] sm:$0xff]
    %v2647 = vld [vmem:[%s1164 + $0x82] sm:$0xff]
    %v2648 = vld [vmem:[%s1164 + $0x92] sm:$0xff]
    %v2649 = vld [vmem:[%s1164 + $0x9a] sm:$0xff]
    %v2650 = vld [vmem:[%s1164 + $0xaa] sm:$0xff]
    %v2651 = vld [vmem:[%s1164 + $0xb2] sm:$0xff]
    %v2652 = vpack.c.bf16 %v2637, %v2636
    %v2653 = vpack.c.bf16 %v2639, %v2638
    %v2654 = vpack.c.bf16 %v2641, %v2640
    %v2655 = vpack.c.bf16 %v2643, %v2642
    %v2656 = vpack.c.bf16 %v2645, %v2644
    %v2657 = vpack.c.bf16 %v2647, %v2646
    %v2658 = vpack.c.bf16 %v2649, %v2648
    %v2659 = vpack.c.bf16 %v2651, %v2650
    %v2660 = vld [vmem:[%s5 + $0x80] sm:$0xf]
    %v2661 = vld [vmem:[%s5 + $0x84] sm:$0xf]
    %v2662 = vld [vmem:[%s5 + $0x88] sm:$0xf]
    %v2663 = vld [vmem:[%s5 + $0x8c] sm:$0xf]
    %v2668 = vunpack.c.l.b16 %v2660
    %v2669 = vunpack.c.l.b16 %v2661
    %v2670 = vunpack.c.l.b16 %v2662
    %v2671 = vunpack.c.l.b16 %v2663
    %v2672 = vpack.c.b16 %v2669, %v2668
    %v2673 = vpack.c.b16 %v2671, %v2670
    %v2677 = vsel %vm28, %v2652, 0
    %v2680 = vsel %vm28, %v2653, 0
    %v2683 = vsel %vm28, %v2654, 0
    %v2686 = vsel %vm28, %v2655, 0
    %v2689 = vsel %vm28, %v2656, 0
    %v2692 = vsel %vm28, %v2657, 0
    %v2695 = vsel %vm28, %v2658, 0
    %v2698 = vsel %vm28, %v2659, 0
    %2700 = vmatpush.bf16.msra.mxu0 0
    %2701 = vmatpush.bf16.msra.mxu0 0
    %2702 = vmatpush.bf16.msra.mxu0 0
    %2703 = vmatpush.bf16.msra.mxu0 0
    %2704 = vmatpush.bf16.msra.mxu0 0
    %2705 = vmatpush.bf16.msra.mxu0 0
    %2706 = vmatpush.bf16.msra.mxu0 %v2673
    %2707 = vmatpush.bf16.msra.mxu0 %v2672
    %2708 = vmatmul.bf16.gmra.mxu0 %v2677
    %v2709 = vpop.f32.mrf.mxu0
    %v2710 = vadd.f32 0.0, %v2709
    %v2711 = vpop.f32.mrf.mxu0
    %v2712 = vadd.f32 0.0, %v2711
    %2713 = vmatmul.bf16.gmra.mxu0 %v2680
    %v2714 = vpop.f32.mrf.mxu0
    %v2715 = vadd.f32 0.0, %v2714
    %v2716 = vpop.f32.mrf.mxu0
    %v2717 = vadd.f32 0.0, %v2716
    %2718 = vmatmul.bf16.gmra.mxu0 %v2683
    %v2719 = vpop.f32.mrf.mxu0
    %v2720 = vadd.f32 0.0, %v2719
    %v2721 = vpop.f32.mrf.mxu0
    %v2722 = vadd.f32 0.0, %v2721
    %2723 = vmatmul.bf16.gmra.mxu0 %v2686
    %v2724 = vpop.f32.mrf.mxu0
    %v2725 = vadd.f32 0.0, %v2724
    %v2726 = vpop.f32.mrf.mxu0
    %v2727 = vadd.f32 0.0, %v2726
    %2728 = vmatmul.bf16.gmra.mxu0 %v2689
    %v2729 = vpop.f32.mrf.mxu0
    %v2730 = vadd.f32 0.0, %v2729
    %v2731 = vpop.f32.mrf.mxu0
    %v2732 = vadd.f32 0.0, %v2731
    %2733 = vmatmul.bf16.gmra.mxu0 %v2692
    %v2734 = vpop.f32.mrf.mxu0
    %v2735 = vadd.f32 0.0, %v2734
    %v2736 = vpop.f32.mrf.mxu0
    %v2737 = vadd.f32 0.0, %v2736
    %2738 = vmatmul.bf16.gmra.mxu0 %v2695
    %v2739 = vpop.f32.mrf.mxu0
    %v2740 = vadd.f32 0.0, %v2739
    %v2741 = vpop.f32.mrf.mxu0
    %v2742 = vadd.f32 0.0, %v2741
    %2743 = vmatmul.bf16.gmra.mxu0 %v2698
    %v2744 = vpop.f32.mrf.mxu0
    %v2745 = vadd.f32 0.0, %v2744
    %v2746 = vpop.f32.mrf.mxu0
    %v2747 = vadd.f32 0.0, %v2746
    %2748 = vdwg.mxu0
    %v2749 = vadd.f32 %v2620, %v2710
    %v2750 = vadd.f32 %v2621, %v2712
    %v2751 = vadd.f32 %v2622, %v2715
    %v2752 = vadd.f32 %v2623, %v2717
    %v2753 = vadd.f32 %v2624, %v2720
    %v2754 = vadd.f32 %v2625, %v2722
    %v2755 = vadd.f32 %v2626, %v2725
    %v2756 = vadd.f32 %v2627, %v2727
    %v2757 = vadd.f32 %v2628, %v2730
    %v2758 = vadd.f32 %v2629, %v2732
    %v2759 = vadd.f32 %v2630, %v2735
    %v2760 = vadd.f32 %v2631, %v2737
    %v2761 = vadd.f32 %v2632, %v2740
    %v2762 = vadd.f32 %v2633, %v2742
    %v2763 = vadd.f32 %v2634, %v2745
    %v2764 = vadd.f32 %v2635, %v2747
    %v2765 = vld [vmem:[%s6] sm:$0x1]
    %v2767 = vperm.slane %v2765, 0
    %v2769 = vadd.f32 %v2749, %v2767
    %v2770 = vadd.f32 %v2750, %v2767
    %v2771 = vadd.f32 %v2751, %v2767
    %v2772 = vadd.f32 %v2752, %v2767
    %v2773 = vadd.f32 %v2753, %v2767
    %v2774 = vadd.f32 %v2754, %v2767
    %v2775 = vadd.f32 %v2755, %v2767
    %v2776 = vadd.f32 %v2756, %v2767
    %v2777 = vadd.f32 %v2757, %v2767
    %v2778 = vadd.f32 %v2758, %v2767
    %v2779 = vadd.f32 %v2759, %v2767
    %v2780 = vadd.f32 %v2760, %v2767
    %v2781 = vadd.f32 %v2761, %v2767
    %v2782 = vadd.f32 %v2762, %v2767
    %v2783 = vadd.f32 %v2763, %v2767
    %v2784 = vadd.f32 %v2764, %v2767
    %vm2785 = vcmp.gt.f32.partialorder %v2769, 0.0
    %vm2786 = vcmp.gt.f32.partialorder %v2770, 0.0
    %vm2787 = vcmp.gt.f32.partialorder %v2771, 0.0
    %vm2788 = vcmp.gt.f32.partialorder %v2772, 0.0
    %vm2789 = vcmp.gt.f32.partialorder %v2773, 0.0
    %vm2790 = vcmp.gt.f32.partialorder %v2774, 0.0
    %vm2791 = vcmp.gt.f32.partialorder %v2775, 0.0
    %vm2792 = vcmp.gt.f32.partialorder %v2776, 0.0
    %vm2793 = vcmp.gt.f32.partialorder %v2777, 0.0
    %vm2794 = vcmp.gt.f32.partialorder %v2778, 0.0
    %vm2795 = vcmp.gt.f32.partialorder %v2779, 0.0
    %vm2796 = vcmp.gt.f32.partialorder %v2780, 0.0
    %vm2797 = vcmp.gt.f32.partialorder %v2781, 0.0
    %vm2798 = vcmp.gt.f32.partialorder %v2782, 0.0
    %vm2799 = vcmp.gt.f32.partialorder %v2783, 0.0
    %vm2800 = vcmp.gt.f32.partialorder %v2784, 0.0
    %v2801 = vmul.f32 %v2769, 0.01
    %v2802 = vmul.f32 %v2770, 0.01
    %v2803 = vmul.f32 %v2771, 0.01
    %v2804 = vmul.f32 %v2772, 0.01
    %v2805 = vmul.f32 %v2773, 0.01
    %v2806 = vmul.f32 %v2774, 0.01
    %v2807 = vmul.f32 %v2775, 0.01
    %v2808 = vmul.f32 %v2776, 0.01
    %v2809 = vmul.f32 %v2777, 0.01
    %v2810 = vmul.f32 %v2778, 0.01
    %v2811 = vmul.f32 %v2779, 0.01
    %v2812 = vmul.f32 %v2780, 0.01
    %v2813 = vmul.f32 %v2781, 0.01
    %v2814 = vmul.f32 %v2782, 0.01
    %v2815 = vmul.f32 %v2783, 0.01
    %v2816 = vmul.f32 %v2784, 0.01
    %v2817 = vsel %vm2785, %v2769, %v2801
    %v2818 = vsel %vm2786, %v2770, %v2802
    %v2819 = vsel %vm2787, %v2771, %v2803
    %v2820 = vsel %vm2788, %v2772, %v2804
    %v2821 = vsel %vm2789, %v2773, %v2805
    %v2822 = vsel %vm2790, %v2774, %v2806
    %v2823 = vsel %vm2791, %v2775, %v2807
    %v2824 = vsel %vm2792, %v2776, %v2808
    %v2825 = vsel %vm2793, %v2777, %v2809
    %v2826 = vsel %vm2794, %v2778, %v2810
    %v2827 = vsel %vm2795, %v2779, %v2811
    %v2828 = vsel %vm2796, %v2780, %v2812
    %v2829 = vsel %vm2797, %v2781, %v2813
    %v2830 = vsel %vm2798, %v2782, %v2814
    %v2831 = vsel %vm2799, %v2783, %v2815
    %v2832 = vsel %vm2800, %v2784, %v2816
    %2833 = vst.msk [vmem:[#allocation3] sm:$0xff] %vm28, %v2817
    %2834 = vst.msk [vmem:[#allocation3 + $0x8] sm:$0xff] %vm28, %v2818
    %2835 = vst.msk [vmem:[#allocation3 + $0x10] sm:$0xff] %vm28, %v2819
    %2836 = vst.msk [vmem:[#allocation3 + $0x18] sm:$0xff] %vm28, %v2820
    %2837 = vst.msk [vmem:[#allocation3 + $0x20] sm:$0xff] %vm28, %v2821
    %2838 = vst.msk [vmem:[#allocation3 + $0x28] sm:$0xff] %vm28, %v2822
    %2839 = vst.msk [vmem:[#allocation3 + $0x30] sm:$0xff] %vm28, %v2823
    %2840 = vst.msk [vmem:[#allocation3 + $0x38] sm:$0xff] %vm28, %v2824
    %2841 = vst.msk [vmem:[#allocation3 + $0x40] sm:$0xff] %vm28, %v2825
    %2842 = vst.msk [vmem:[#allocation3 + $0x48] sm:$0xff] %vm28, %v2826
    %2843 = vst.msk [vmem:[#allocation3 + $0x50] sm:$0xff] %vm28, %v2827
    %2844 = vst.msk [vmem:[#allocation3 + $0x58] sm:$0xff] %vm28, %v2828
    %2845 = vst.msk [vmem:[#allocation3 + $0x60] sm:$0xff] %vm28, %v2829
    %2846 = vst.msk [vmem:[#allocation3 + $0x68] sm:$0xff] %vm28, %v2830
    %2847 = vst.msk [vmem:[#allocation3 + $0x70] sm:$0xff] %vm28, %v2831
    %2848 = vst.msk [vmem:[#allocation3 + $0x78] sm:$0xff] %vm28, %v2832
    // Predicated region
    $region30: #{nohit_forward.1} parent=1 // pred_check
      _
    $region31: #{nohit_forward.1} parent=1 // pred_check_branch
      %2850 = sbr.rel (0) target = $region33
    $region32: #{nohit_forward.1} parent=1 // pred_region
      %2852 = vsyncadd [#allocation4], 0
      %s2853 = sshll.u32 [#allocation3], 4
      %s2854 = int_to_ptr.vmem [resolvable:$true] %s2853
      %s2855 = sshll.u32 %s7, 4
      %s2856 = int_to_ptr.hbm [resolvable:$true] %s2855
      %2861 = dma.vmem_to_hbm [thread:$0]  %s2854, 2048, %s2856, [#allocation4], 128, 128, 8
    $region33: #{nohit_forward.1} parent=1 // pred_fallthru
      _
    // Predicated region
    $region34: #{nohit_forward.1} parent=1 // pred_check
      _
    $region35: #{nohit_forward.1} parent=1 // pred_check_branch
      %2863 = sbr.rel (0) target = $region37
    $region36: #{nohit_forward.1} parent=1 // pred_region
      %2865 = dma.done [#allocation4], 2048
    $region37: #{nohit_forward.1} parent=1 // pred_fallthru
      _
    %2866 = vsyncpa [#allocation4], 1

</llo_original>
